<compile_context>
chip_gen: v7x
topology: tpu7x:2x2x1
jax: 0.10.0
libtpu: 0.0.40
codegen_flags: <defaults>
</compile_context>

<pallas_src>
import functools

import jax
import jax.numpy as jnp
from jax.experimental import pallas as pl
from jax.experimental.pallas import tpu as pltpu


def _motion_embedding_kernel(x0_ref, x1_ref, wa_ref, wb_ref, b1_ref, *refs,
                             num_later, point_dim, radius):
    """One program = (batch b, tile of cloud0 points, tile of cloud1 points)."""
    w_refs = refs[0:2 * num_later:2]
    b_refs = refs[1:2 * num_later:2]
    out_ref = refs[2 * num_later]
    acc_ref = refs[2 * num_later + 1]

    jt = pl.program_id(2)
    nj = pl.num_programs(2)

    x0 = x0_ref[0]                              # (C, TI)  cloud0 tile, points on lanes
    x1 = x1_ref[0]                              # (C, TJ)  cloud1 tile, points on lanes
    ti = x0.shape[1]

    pos0 = x0[:point_dim, :]                    # (pd, TI)  -> stored directly at the end
    pos1 = x1[:point_dim, :]                    # (pd, TJ)

    # ---- first layer, decomposed -------------------------------------------------
    # i-dependent term a3[i, c1, 0] = sum_c x0[c, i] * Wa[c1, c]  (tiny, VPU, C=8 wide).
    x0t = jnp.transpose(x0)                     # (TI, C)   small XLU transpose
    a3 = jnp.sum(x0t[:, None, :] * wa_ref[...][None, :, :],
                 axis=2, keepdims=True)         # (TI, C1, 1)
    # j-dependent term (MXU), first-layer bias folded in:
    bm = jnp.dot(wb_ref[...], x1, preferred_element_type=jnp.float32) + b1_ref[...]
    # pre-activation of layer 1 for every pair, lane-dense (TJ on lanes):
    h = jnp.maximum(a3 + bm[None, :, :], 0.0)   # (TI, C1, TJ)

    # ---- remaining layers: batched MXU matmuls (pair axis stays on lanes) ---------
    for w_ref, b_ref in zip(w_refs, b_refs):
        w_b = jnp.broadcast_to(w_ref[...], (ti,) + tuple(w_ref.shape))   # (TI, Co, Ci)
        h = jnp.einsum('boc,bcj->boj', w_b, h,
                       preferred_element_type=jnp.float32)               # (TI, Co, TJ)
        h = jnp.maximum(h + b_ref[...][None, :, :], 0.0)

    # ---- radius mask via Gram trick (squared distance, no pos_diff) ---------------
    if radius > 0.0:
        pos0t = x0t[:, :point_dim]                                        # (TI, pd)
        gram = jnp.dot(pos0t, pos1, preferred_element_type=jnp.float32)  # (TI, TJ)
        pn0 = jnp.sum(pos0t[:, None, :] * pos0t[:, None, :],
                      axis=2, keepdims=True)                              # (TI, 1, 1)
        pn1 = jnp.sum(pos1 * pos1, axis=0, keepdims=True)[None, :, :]     # (1, 1, TJ)
        d2 = pn0 + pn1 - 2.0 * gram[:, None, :]                           # (TI, 1, TJ)
        h = jnp.where(d2 >= radius * radius, 0.0, h)

    # ---- running max over cloud1 tiles (P3 accumulator) ---------------------------
    local = jnp.max(h, axis=2)                  # (TI, Cout)  lane reduce

    @pl.when(jt == 0)
    def _():
        # Init to 0 (not -inf): ReLU output is >= 0 and fully-masked rows must give 0.
        acc_ref[...] = jnp.zeros_like(acc_ref)

    acc_ref[...] = jnp.maximum(acc_ref[...], local)

    @pl.when(jt == nj - 1)
    def _():
        # Two sliced stores (no lane-axis concat); point axis is the lane axis.
        out_ref[0, :point_dim, :] = pos0
        out_ref[0, point_dim:, :] = jnp.transpose(acc_ref[...])


def _pick_tile(n, cap):
    if n <= cap:
        return n
    t = (cap // 128) * 128
    while t >= 128:
        if n % t == 0:
            return t
        t -= 128
    raise ValueError(f"cannot tile n={n}: need a divisor that is a multiple of 128 and <= {cap}")


def motion_embedding(clouds, weights, biases, *, point_dim=3, radius=0.0,
                     append_features=True, tile_i=128, tile_j=512):
    """clouds: (2B, C, N). weights[l]: (Cin_l, Cout_l). biases[l]: (Cout_l,)."""
    clouds = clouds.astype(jnp.float32)
    b2, c, n = clouds.shape
    assert b2 % 2 == 0, "clouds must stack [templates..., sources...]"
    b = b2 // 2
    nfeat = c - point_dim

    # First-layer decomposition (host-side weight plumbing, done once):
    #   pre_ij = [pos1_j - pos0_i, f0_i, f1_j] @ W1 + b1
    #          = x0_i @ Wa  +  Wb^T-form applied to x1_j  + b1
    w1 = weights[0].astype(jnp.float32)                      # (Cin1, C1)
    if append_features:
        assert w1.shape[0] == point_dim + 2 * nfeat
        wa = jnp.concatenate([-w1[:point_dim], w1[point_dim:point_dim + nfeat]], axis=0)
        wb = jnp.concatenate([w1[:point_dim], w1[point_dim + nfeat:]], axis=0)
    else:
        assert w1.shape[0] == c          # merged = x1 - x0 channel-wise
        wa = -w1
        wb = w1
    wa_k = jnp.transpose(wa)                                 # (C1, C): a_i = sum_c x0[c,i]*wa_k[:,c]
    wb_k = jnp.transpose(wb)                                 # (C1, C): b_j = wb_k @ x1_j
    b1_k = jnp.reshape(biases[0].astype(jnp.float32), (-1, 1))   # (C1, 1)

    # Later layers run transposed: h_{l+1} = relu(W^T h + b).
    wts = [jnp.transpose(w.astype(jnp.float32)) for w in weights[1:]]     # (Cout, Cin)
    bts = [jnp.reshape(bb.astype(jnp.float32), (-1, 1)) for bb in biases[1:]]
    num_later = len(wts)
    out_feat = weights[-1].shape[1]
    out_dim = point_dim + out_feat

    ti = _pick_tile(n, tile_i)       # cloud0 points per step (lanes of the output store)
    tj = _pick_tile(n, tile_j)       # cloud1 points per step (lane axis of every layer)
    grid = (b, n // ti, n // tj)

    kernel = functools.partial(_motion_embedding_kernel, num_later=num_later,
                               point_dim=point_dim, radius=float(radius))

    in_specs = [
        pl.BlockSpec((1, c, ti), lambda bi, it, jt: (bi, 0, it)),       # cloud0 tile
        pl.BlockSpec((1, c, tj), lambda bi, it, jt: (bi + b, 0, jt)),   # cloud1 tile (same batch)
        pl.BlockSpec(wa_k.shape, lambda bi, it, jt: (0, 0)),            # resident split weights
        pl.BlockSpec(wb_k.shape, lambda bi, it, jt: (0, 0)),
        pl.BlockSpec(b1_k.shape, lambda bi, it, jt: (0, 0)),
    ]
    wb_inputs = [wa_k, wb_k, b1_k]
    for w, bb in zip(wts, bts):
        in_specs.append(pl.BlockSpec(w.shape, lambda bi, it, jt: (0, 0)))
        in_specs.append(pl.BlockSpec(bb.shape, lambda bi, it, jt: (0, 0)))
        wb_inputs += [w, bb]

    out = pl.pallas_call(
        kernel,
        out_shape=jax.ShapeDtypeStruct((b, out_dim, n), jnp.float32),
        grid=grid,
        in_specs=in_specs,
        out_specs=pl.BlockSpec((1, out_dim, ti), lambda bi, it, jt: (bi, 0, it)),
        scratch_shapes=[pltpu.VMEM((ti, out_feat), jnp.float32)],        # running max
        compiler_params=pltpu.CompilerParams(
            dimension_semantics=("parallel", "parallel", "arbitrary"),
            vmem_limit_bytes=56 * 1024 * 1024),
    )(clouds, clouds, *wb_inputs)
    return out


def _reference(clouds, weights, biases, *, point_dim, radius, append_features):
    """Pure-JAX reference mirroring the PyTorch forward (GlobalGrouping path)."""
    b2, c, n = clouds.shape
    b = b2 // 2
    x0 = jnp.transpose(clouds[:b], (0, 2, 1))                # (B, N, C)
    x1 = jnp.transpose(clouds[b:], (0, 2, 1))
    pos0, f0 = x0[..., :point_dim], x0[..., point_dim:]
    pos1, f1 = x1[..., :point_dim], x1[..., point_dim:]
    pos_diff = pos1[:, None, :, :] - pos0[:, :, None, :]     # (B, N0, N1, pd)
    nf = c - point_dim
    if append_features:
        merged = jnp.concatenate(
            [pos_diff,
             jnp.broadcast_to(f0[:, :, None, :], (b, n, n, nf)),
             jnp.broadcast_to(f1[:, None, :, :], (b, n, n, nf))], axis=-1)
    else:
        merged = jnp.concatenate([pos_diff, f1[:, None, :, :] - f0[:, :, None, :]], axis=-1)
    h = merged
    for w, bb in zip(weights, biases):
        h = jnp.maximum(h @ w + bb, 0.0)
    if radius > 0.0:
        # Same Gram-form squared distance as the kernel so the self-test is insensitive
        # to FP rounding exactly at the radius boundary (mathematically identical test).
        gram = jnp.einsum('bid,bjd->bij', pos0, pos1)
        d2 = (jnp.sum(pos0 * pos0, axis=-1)[:, :, None]
              + jnp.sum(pos1 * pos1, axis=-1)[:, None, :] - 2.0 * gram)
        h = jnp.where((d2 >= radius * radius)[..., None], 0.0, h)
    feat = jnp.max(h, axis=2)                                # (B, N0, Cout)
    out = jnp.concatenate([pos0, feat], axis=-1)
    return jnp.transpose(out, (0, 2, 1))                     # (B, pd + Cout, N0)


if __name__ == "__main__":
    key = jax.random.PRNGKey(0)
    kc, kw, kb = jax.random.split(key, 3)

    B = 2              # batch pairs -> clouds first dim = 2*B = 4
    C = 8              # input_dim (3 xyz + 5 extra features)
    N = 16             # points per cloud
    POINT_DIM = 3
    RADIUS = 1.5       # > 0 exercises the masking path
    MLP = [32, 32]
    APPEND = True      # append_features (module default)

    clouds = jax.random.normal(kc, (2 * B, C, N), dtype=jnp.float32)

    cin0 = POINT_DIM + 2 * (C - POINT_DIM) if APPEND else C
    dims = [cin0] + MLP
    kws = jax.random.split(kw, len(MLP))
    kbs = jax.random.split(kb, len(MLP))
    weights = [0.2 * jax.random.normal(kws[l], (dims[l], dims[l + 1]), dtype=jnp.float32)
               for l in range(len(MLP))]
    biases = [0.1 * jax.random.normal(kbs[l], (dims[l + 1],), dtype=jnp.float32)
              for l in range(len(MLP))]

    out = motion_embedding(clouds, weights, biases, point_dim=POINT_DIM,
                           radius=RADIUS, append_features=APPEND)
    out = jax.block_until_ready(out)

    ref = _reference(clouds, weights, biases, point_dim=POINT_DIM,
                     radius=RADIUS, append_features=APPEND)
    assert out.shape == (B, POINT_DIM + MLP[-1], N), out.shape
    assert jnp.allclose(out, ref, rtol=1e-5, atol=1e-5), (out, ref)

    print("KERNEL_OK")
</pallas_src>

<mosaic_0001>
module attributes {stable_mosaic.version = 11 : i64} {
  func.func @_motion_embedding_kernel(%arg0: i32, %arg1: i32, %arg2: i32, %arg3: memref<1x8x16xf32, #tpu.memory_space<vmem>>, %arg4: memref<1x8x16xf32, #tpu.memory_space<vmem>>, %arg5: memref<32x8xf32, #tpu.memory_space<vmem>>, %arg6: memref<32x8xf32, #tpu.memory_space<vmem>>, %arg7: memref<32x1xf32, #tpu.memory_space<vmem>>, %arg8: memref<32x32xf32, #tpu.memory_space<vmem>>, %arg9: memref<32x1xf32, #tpu.memory_space<vmem>>, %arg10: memref<1x35x16xf32, #tpu.memory_space<vmem>>, %arg11: memref<16x32xf32, #tpu.memory_space<vmem>>) attributes {dimension_semantics = [#tpu.dimension_semantics<parallel>, #tpu.dimension_semantics<parallel>, #tpu.dimension_semantics<arbitrary>], iteration_bounds = array<i64: 2, 1, 1>, scalar_prefetch = 0 : i64, scratch_operands = 1 : i64, tpu.core_type = #tpu.core_type<tc>, window_params = [{transform_indices = @transform_0, window_bounds = array<i64: 1, 8, 16>}, {transform_indices = @transform_1, window_bounds = array<i64: 1, 8, 16>}, {pipeline_mode = #tpu.pipeline_mode<synchronous>, transform_indices = @transform_2, window_bounds = array<i64: 32, 8>}, {pipeline_mode = #tpu.pipeline_mode<synchronous>, transform_indices = @transform_3, window_bounds = array<i64: 32, 8>}, {pipeline_mode = #tpu.pipeline_mode<synchronous>, transform_indices = @transform_4, window_bounds = array<i64: 32, 1>}, {pipeline_mode = #tpu.pipeline_mode<synchronous>, transform_indices = @transform_5, window_bounds = array<i64: 32, 32>}, {pipeline_mode = #tpu.pipeline_mode<synchronous>, transform_indices = @transform_6, window_bounds = array<i64: 32, 1>}, {transform_indices = @transform_7, window_bounds = array<i64: 1, 35, 16>}]} {
    %c0 = arith.constant 0 : index
    %c0_0 = arith.constant 0 : index
    %c0_1 = arith.constant 0 : index
    %0 = vector.load %arg3[%c0, %c0_0, %c0_1] : memref<1x8x16xf32, #tpu.memory_space<vmem>>, vector<1x8x16xf32>
    %1 = vector.shape_cast %0 : vector<1x8x16xf32> to vector<8x16xf32>
    %c0_2 = arith.constant 0 : index
    %c0_3 = arith.constant 0 : index
    %c0_4 = arith.constant 0 : index
    %2 = vector.load %arg4[%c0_2, %c0_3, %c0_4] : memref<1x8x16xf32, #tpu.memory_space<vmem>>, vector<1x8x16xf32>
    %3 = vector.shape_cast %2 : vector<1x8x16xf32> to vector<8x16xf32>
    %4 = vector.extract_strided_slice %1 {offsets = [0, 0], sizes = [3, 16], strides = [1, 1]} : vector<8x16xf32> to vector<3x16xf32>
    %5 = vector.extract_strided_slice %3 {offsets = [0, 0], sizes = [3, 16], strides = [1, 1]} : vector<8x16xf32> to vector<3x16xf32>
    %6 = tpu.transpose %1, [1, 0] : vector<8x16xf32> -> vector<16x8xf32>
    %7 = vector.shape_cast %6 : vector<16x8xf32> to vector<16x1x8xf32>
    %c0_5 = arith.constant 0 : index
    %c0_6 = arith.constant 0 : index
    %8 = vector.load %arg5[%c0_5, %c0_6] : memref<32x8xf32, #tpu.memory_space<vmem>>, vector<32x8xf32>
    %9 = vector.shape_cast %8 : vector<32x8xf32> to vector<1x32x8xf32>
    %10 = vector.broadcast %7 : vector<16x1x8xf32> to vector<16x32x8xf32>
    %11 = vector.broadcast %9 : vector<1x32x8xf32> to vector<16x32x8xf32>
    %12 = arith.mulf %10, %11 : vector<16x32x8xf32>
    %cst = arith.constant dense<0.000000e+00> : vector<16x32xf32>
    %13 = vector.multi_reduction <add>, %12, %cst [2] : vector<16x32x8xf32> to vector<16x32xf32>
    %14 = vector.shape_cast %13 : vector<16x32xf32> to vector<16x32x1xf32>
    %c0_7 = arith.constant 0 : index
    %c0_8 = arith.constant 0 : index
    %15 = vector.load %arg6[%c0_7, %c0_8] : memref<32x8xf32, #tpu.memory_space<vmem>>, vector<32x8xf32>
    %cst_9 = arith.constant dense<0.000000e+00> : vector<32x16xf32>
    %16 = tpu.matmul %15, %3, %cst_9 {dimension_numbers = #tpu.dot_dimension_numbers<[1], [0], [0], [1], [0, 0, 1, 1], [], []>} : vector<32x8xf32>, vector<8x16xf32>, vector<32x16xf32> -> vector<32x16xf32>
    %c0_10 = arith.constant 0 : index
    %c0_11 = arith.constant 0 : index
    %17 = vector.load %arg7[%c0_10, %c0_11] : memref<32x1xf32, #tpu.memory_space<vmem>>, vector<32x1xf32>
    %18 = vector.broadcast %17 : vector<32x1xf32> to vector<32x16xf32>
    %19 = arith.addf %16, %18 : vector<32x16xf32>
    %20 = vector.shape_cast %19 : vector<32x16xf32> to vector<1x32x16xf32>
    %21 = vector.broadcast %14 : vector<16x32x1xf32> to vector<16x32x16xf32>
    %22 = vector.broadcast %20 : vector<1x32x16xf32> to vector<16x32x16xf32>
    %23 = arith.addf %21, %22 : vector<16x32x16xf32>
    %cst_12 = arith.constant 0.000000e+00 : f32
    %24 = vector.broadcast %cst_12 : f32 to vector<16x32x16xf32>
    %25 = arith.maximumf %23, %24 : vector<16x32x16xf32>
    %c0_13 = arith.constant 0 : index
    %c0_14 = arith.constant 0 : index
    %26 = vector.load %arg8[%c0_13, %c0_14] : memref<32x32xf32, #tpu.memory_space<vmem>>, vector<32x32xf32>
    %27 = vector.shape_cast %26 : vector<32x32xf32> to vector<1x32x32xf32>
    %28 = vector.broadcast %27 : vector<1x32x32xf32> to vector<16x32x32xf32>
    "tpu.trace_start"() <{level = 10 : i32, message = "boc,bcj->boj"}> : () -> ()
    %cst_15 = arith.constant dense<0.000000e+00> : vector<16x32x16xf32>
    %29 = tpu.matmul %28, %25, %cst_15 {dimension_numbers = #tpu.dot_dimension_numbers<[2], [1], [1], [2], [0, 0, 0, 1, 1, 2], [0], [0]>} : vector<16x32x32xf32>, vector<16x32x16xf32>, vector<16x32x16xf32> -> vector<16x32x16xf32>
    "tpu.trace_stop"() : () -> ()
    %c0_16 = arith.constant 0 : index
    %c0_17 = arith.constant 0 : index
    %30 = vector.load %arg9[%c0_16, %c0_17] : memref<32x1xf32, #tpu.memory_space<vmem>>, vector<32x1xf32>
    %31 = vector.shape_cast %30 : vector<32x1xf32> to vector<1x32x1xf32>
    %32 = vector.broadcast %31 : vector<1x32x1xf32> to vector<16x32x16xf32>
    %33 = arith.addf %29, %32 : vector<16x32x16xf32>
    %cst_18 = arith.constant 0.000000e+00 : f32
    %34 = vector.broadcast %cst_18 : f32 to vector<16x32x16xf32>
    %35 = arith.maximumf %33, %34 : vector<16x32x16xf32>
    %36 = vector.extract_strided_slice %6 {offsets = [0, 0], sizes = [16, 3], strides = [1, 1]} : vector<16x8xf32> to vector<16x3xf32>
    %cst_19 = arith.constant dense<0.000000e+00> : vector<16x16xf32>
    %37 = tpu.matmul %36, %5, %cst_19 {dimension_numbers = #tpu.dot_dimension_numbers<[1], [0], [0], [1], [0, 0, 1, 1], [], []>} : vector<16x3xf32>, vector<3x16xf32>, vector<16x16xf32> -> vector<16x16xf32>
    %38 = vector.shape_cast %36 : vector<16x3xf32> to vector<16x1x3xf32>
    %39 = vector.shape_cast %36 : vector<16x3xf32> to vector<16x1x3xf32>
    %40 = arith.mulf %38, %39 : vector<16x1x3xf32>
    %cst_20 = arith.constant dense<0.000000e+00> : vector<16x1xf32>
    %41 = vector.multi_reduction <add>, %40, %cst_20 [2] : vector<16x1x3xf32> to vector<16x1xf32>
    %42 = vector.shape_cast %41 : vector<16x1xf32> to vector<16x1x1xf32>
    %43 = arith.mulf %5, %5 : vector<3x16xf32>
    %cst_21 = arith.constant dense<0.000000e+00> : vector<16xf32>
    %44 = vector.multi_reduction <add>, %43, %cst_21 [0] : vector<3x16xf32> to vector<16xf32>
    %45 = vector.shape_cast %44 : vector<16xf32> to vector<1x16xf32>
    %46 = vector.shape_cast %45 : vector<1x16xf32> to vector<1x1x16xf32>
    %47 = vector.broadcast %42 : vector<16x1x1xf32> to vector<16x1x16xf32>
    %48 = vector.broadcast %46 : vector<1x1x16xf32> to vector<16x1x16xf32>
    %49 = arith.addf %47, %48 : vector<16x1x16xf32>
    %50 = vector.shape_cast %37 : vector<16x16xf32> to vector<16x1x16xf32>
    %cst_22 = arith.constant 2.000000e+00 : f32
    %51 = vector.broadcast %cst_22 : f32 to vector<16x1x16xf32>
    %52 = arith.mulf %51, %50 : vector<16x1x16xf32>
    %53 = arith.subf %49, %52 : vector<16x1x16xf32>
    %cst_23 = arith.constant 2.250000e+00 : f32
    %54 = vector.broadcast %cst_23 : f32 to vector<16x1x16xf32>
    %55 = arith.cmpf oge, %53, %54 : vector<16x1x16xf32>
    %cst_24 = arith.constant 0.000000e+00 : f32
    %56 = vector.shape_cast %55 : vector<16x1x16xi1> to vector<16x1x16xi1>
    %57 = vector.broadcast %56 : vector<16x1x16xi1> to vector<16x32x16xi1>
    %58 = vector.broadcast %cst_24 : f32 to vector<16x32x16xf32>
    %59 = arith.select %57, %58, %35 : vector<16x32x16xi1>, vector<16x32x16xf32>
    %cst_25 = arith.constant dense<0xFF800000> : vector<16x32xf32>
    %60 = vector.multi_reduction <maximumf>, %59, %cst_25 [2] : vector<16x32x16xf32> to vector<16x32xf32>
    %c0_i32 = arith.constant 0 : i32
    %61 = arith.cmpi eq, %arg2, %c0_i32 : i32
    %62 = arith.extui %61 : i1 to i32
    %c0_i32_26 = arith.constant 0 : i32
    %63 = arith.cmpi ne, %62, %c0_i32_26 : i32
    scf.if %63 {
      %cst_33 = arith.constant 0.000000e+00 : f32
      %70 = vector.broadcast %cst_33 : f32 to vector<16x32xf32>
      %c0_34 = arith.constant 0 : index
      %c0_35 = arith.constant 0 : index
      %71 = vector.load %arg11[%c0_34, %c0_35] : memref<16x32xf32, #tpu.memory_space<vmem>>, vector<16x32xf32>
      tpu.vector_store %arg11[%c0_34, %c0_35], %70 {strides = array<i32>} : memref<16x32xf32, #tpu.memory_space<vmem>>, vector<16x32xf32>,
    } else {
    }
    %c0_27 = arith.constant 0 : index
    %c0_28 = arith.constant 0 : index
    %64 = vector.load %arg11[%c0_27, %c0_28] : memref<16x32xf32, #tpu.memory_space<vmem>>, vector<16x32xf32>
    %65 = arith.maximumf %64, %60 : vector<16x32xf32>
    %c0_29 = arith.constant 0 : index
    %c0_30 = arith.constant 0 : index
    %66 = vector.load %arg11[%c0_29, %c0_30] : memref<16x32xf32, #tpu.memory_space<vmem>>, vector<16x32xf32>
    tpu.vector_store %arg11[%c0_29, %c0_30], %65 {strides = array<i32>} : memref<16x32xf32, #tpu.memory_space<vmem>>, vector<16x32xf32>,
    %c0_i32_31 = arith.constant 0 : i32
    %67 = arith.cmpi eq, %arg2, %c0_i32_31 : i32
    %68 = arith.extui %67 : i1 to i32
    %c0_i32_32 = arith.constant 0 : i32
    %69 = arith.cmpi ne, %68, %c0_i32_32 : i32
    scf.if %69 {
      %c0_33 = arith.constant 0 : index
      %c0_34 = arith.constant 0 : index
      %c0_35 = arith.constant 0 : index
      %70 = vector.load %arg10[%c0_33, %c0_34, %c0_35] : memref<1x35x16xf32, #tpu.memory_space<vmem>>, vector<1x3x16xf32>
      %71 = vector.shape_cast %70 : vector<1x3x16xf32> to vector<3x16xf32>
      %72 = vector.shape_cast %4 : vector<3x16xf32> to vector<1x3x16xf32>
      tpu.vector_store %arg10[%c0_33, %c0_34, %c0_35], %72 {strides = array<i32>} : memref<1x35x16xf32, #tpu.memory_space<vmem>>, vector<1x3x16xf32>,
      %c0_36 = arith.constant 0 : index
      %c0_37 = arith.constant 0 : index
      %73 = vector.load %arg11[%c0_36, %c0_37] : memref<16x32xf32, #tpu.memory_space<vmem>>, vector<16x32xf32>
      %74 = tpu.transpose %73, [1, 0] : vector<16x32xf32> -> vector<32x16xf32>
      %c0_38 = arith.constant 0 : index
      %c3 = arith.constant 3 : index
      %c0_39 = arith.constant 0 : index
      %75 = vector.load %arg10[%c0_38, %c3, %c0_39] : memref<1x35x16xf32, #tpu.memory_space<vmem>>, vector<1x32x16xf32>
      %76 = vector.shape_cast %75 : vector<1x32x16xf32> to vector<32x16xf32>
      %77 = vector.shape_cast %74 : vector<32x16xf32> to vector<1x32x16xf32>
      tpu.vector_store %arg10[%c0_38, %c3, %c0_39], %77 {strides = array<i32>} : memref<1x35x16xf32, #tpu.memory_space<vmem>>, vector<1x32x16xf32>,
    } else {
    }
    return
  }
  func.func @transform_0(%arg0: i32, %arg1: i32, %arg2: i32) -> (i32, i32, i32) {
    %c0_i32 = arith.constant 0 : i32
    %c0_i32_0 = arith.constant 0 : i32
    return %arg0, %c0_i32, %arg1 : i32, i32, i32
  }
  func.func @transform_1(%arg0: i32, %arg1: i32, %arg2: i32) -> (i32, i32, i32) {
    %c2_i32 = arith.constant 2 : i32
    %0 = arith.addi %arg0, %c2_i32 : i32
    %c0_i32 = arith.constant 0 : i32
    %c0_i32_0 = arith.constant 0 : i32
    return %0, %c0_i32, %arg2 : i32, i32, i32
  }
  func.func @transform_2(%arg0: i32, %arg1: i32, %arg2: i32) -> (i32, i32) {
    %c0_i32 = arith.constant 0 : i32
    %c0_i32_0 = arith.constant 0 : i32
    %c0_i32_1 = arith.constant 0 : i32
    return %c0_i32, %c0_i32_0 : i32, i32
  }
  func.func @transform_3(%arg0: i32, %arg1: i32, %arg2: i32) -> (i32, i32) {
    %c0_i32 = arith.constant 0 : i32
    %c0_i32_0 = arith.constant 0 : i32
    %c0_i32_1 = arith.constant 0 : i32
    return %c0_i32, %c0_i32_0 : i32, i32
  }
  func.func @transform_4(%arg0: i32, %arg1: i32, %arg2: i32) -> (i32, i32) {
    %c0_i32 = arith.constant 0 : i32
    %c0_i32_0 = arith.constant 0 : i32
    %c0_i32_1 = arith.constant 0 : i32
    return %c0_i32, %c0_i32_0 : i32, i32
  }
  func.func @transform_5(%arg0: i32, %arg1: i32, %arg2: i32) -> (i32, i32) {
    %c0_i32 = arith.constant 0 : i32
    %c0_i32_0 = arith.constant 0 : i32
    %c0_i32_1 = arith.constant 0 : i32
    return %c0_i32, %c0_i32_0 : i32, i32
  }
  func.func @transform_6(%arg0: i32, %arg1: i32, %arg2: i32) -> (i32, i32) {
    %c0_i32 = arith.constant 0 : i32
    %c0_i32_0 = arith.constant 0 : i32
    %c0_i32_1 = arith.constant 0 : i32
    return %c0_i32, %c0_i32_0 : i32, i32
  }
  func.func @transform_7(%arg0: i32, %arg1: i32, %arg2: i32) -> (i32, i32, i32) {
    %c0_i32 = arith.constant 0 : i32
    %c0_i32_0 = arith.constant 0 : i32
    return %arg0, %c0_i32, %arg1 : i32, i32, i32
  }
}

</mosaic_0001>

<llo_original>
// kernel: tpu_custom_call.1
$region0: #{tpu_custom_call.1}
  #allocation0 [shape = 'u32[]', space=smem, size = 0x4, offset = 0x4, fixed_abs, tag = 'smem constant byte address 0x4 - core index']
  #allocation1 [shape = 'u32[144,128]{1,0:T(1,128)}', space=vmem, size = 0x12000, scoped, tag = 'internal scratch']
  #allocation2 [shape = 'f32[16,32]{1,0:T(8,128)}', space=vmem, size = 0x2000, scoped, tag = 'scratch operand']
  %s0 = inlined_call_operand.vmem [shape: f32[4,8,16], index: 0, kind: input, shape index: {}]
  %s1 = inlined_call_operand.vmem [shape: f32[4,8,16], index: 1, kind: input, shape index: {}]
  %s2 = inlined_call_operand.vmem [shape: f32[32,8], index: 2, kind: input, shape index: {}]
  %s3 = inlined_call_operand.vmem [shape: f32[32,8], index: 3, kind: input, shape index: {}]
  %s4 = inlined_call_operand.vmem [shape: f32[32,1], index: 4, kind: input, shape index: {}]
  %s5 = inlined_call_operand.vmem [shape: f32[32,32], index: 5, kind: input, shape index: {}]
  %s6 = inlined_call_operand.vmem [shape: f32[32,1], index: 6, kind: input, shape index: {}]
  %s7 = inlined_call_operand.vmem [shape: f32[2,35,16], index: 7, kind: output, shape index: {}]
  %s8 = sld [smem:[#allocation0]]
  $region69: #{tpu_custom_call.1} parent=0
    _
  %s10 = ssub.s32 1, %s8
  %s11 = scalar_select 0, %s10, %s8
  loop: start=0, step=1, limit=4
  $region2: #{tpu_custom_call.1} parent=0 // loop_pre_header
    _
  $region3: #{tpu_custom_call.1} parent=0 // loop_header
    %s13 = sphi 0, %s17
    %p14 = scmp.ge.s32.totalorder %s13, 4
    %s20 = sphi 0, %s39
    %s21 = sphi 0, %s35
    %s22 = sphi 0, %s31
    %s23 = sphi 0, %s20
    %s24 = sphi 0, %s21
    %s25 = sphi 0, %s22
    %s26 = sphi 0, %s23
    %s27 = sphi 0, %s24
    %s28 = sphi 0, %s25
    %s44 = sphi 0, %s46
    %s47 = sphi 0, %s44
    %s48 = sphi 0, %s47
    %s64 = sphi 0, %s48
    %s74 = sphi 0, %s76
    %s77 = sphi 0, %s74
    %s78 = sphi 0, %s77
    %s94 = sphi 0, %s78
    %s98 = sphi 0, %s98
    %s100 = sphi 0, %s98
    %s101 = sphi 0, %s100
    %s115 = sphi 0, %s101
    %s119 = sphi 0, %s119
    %s121 = sphi 0, %s119
    %s122 = sphi 0, %s121
    %s136 = sphi 0, %s122
    %s140 = sphi 0, %s140
    %s142 = sphi 0, %s140
    %s143 = sphi 0, %s142
    %s157 = sphi 0, %s143
    %s161 = sphi 0, %s161
    %s163 = sphi 0, %s161
    %s164 = sphi 0, %s163
    %s178 = sphi 0, %s164
    %s182 = sphi 0, %s182
    %s184 = sphi 0, %s182
    %s185 = sphi 0, %s184
    %s199 = sphi 0, %s185
    %s207 = sphi 0, %s209
    %s210 = sphi 0, %s207
    %s211 = sphi 0, %s210
    %s227 = sphi 0, %s211
  $region4: #{tpu_custom_call.1} parent=0 // loop_header_branch
    %16 = sbr.rel (%p14) target = $region8
  $region5: #{tpu_custom_call.1} parent=0 // loop_body
    %s18 = ssub.s32 %s13, 1
    %s19 = ssub.s32 %s13, 2
    %s29 = sadd.s32 1, %s22
    %p30 = scmp.ge.s32.totalorder %s29, 1
    %s31 = scalar_select %p30, 0, %s29
    %s32 = sadd.s32 1, %s21
    %s33 = scalar_select %p30, %s32, %s21
    %p34 = scmp.ge.s32.totalorder %s33, 1
    %s35 = scalar_select %p34, 0, %s33
    %s36 = sadd.s32 1, %s20
    %s37 = scalar_select %p34, %s36, %s20
    %p38 = scmp.ge.s32.totalorder %s37, 2
    %s39 = scalar_select %p38, 0, %s37
    %s40 = ssub.s32 %s20, %s39
    %s41 = ssub.s32 %s21, %s35
    %s42 = sor.u32 %s40, %s41
    %p43 = scmp.eq.s32.totalorder %s42, 0
    %s45 = sadd.s32 %s44, 1
    %s46 = scalar_select %p43, %s44, %s45
    %p49 = pneg %p43
    %p50 = scmp.eq.s32.totalorder %s13, 1
    %p51 = por %p49, %p50
    %p52 = scmp.ne.s32.totalorder %s44, %s47
    %p53 = scmp.eq.s32.totalorder %s13, 0
    %p54 = por %p52, %p53
    %p55 = scmp.ne.s32.totalorder %s44, %s47
    %p56 = scmp.eq.s32.totalorder %s18, 1
    %p57 = por %p55, %p56
    %p58 = scmp.ne.s32.totalorder %s47, %s48
    %p59 = scmp.eq.s32.totalorder %s18, 0
    %p60 = por %p58, %p59
    %p61 = scmp.ne.s32.totalorder %s47, %s48
    %p62 = scmp.eq.s32.totalorder %s19, 1
    %p63 = por %p61, %p62
    %p65 = scmp.ne.s32.totalorder %s48, %s64
    %p66 = scmp.eq.s32.totalorder %s19, 0
    %p67 = por %p65, %p66
    %s68 = sadd.s32 %s20, 2
    %s69 = sadd.s32 %s39, 2
    %s70 = ssub.s32 %s68, %s69
    %s71 = ssub.s32 %s22, %s31
    %s72 = sor.u32 %s70, %s71
    %p73 = scmp.eq.s32.totalorder %s72, 0
    %s75 = sadd.s32 %s74, 1
    %s76 = scalar_select %p73, %s74, %s75
    %p79 = pneg %p73
    %p80 = scmp.eq.s32.totalorder %s13, 1
    %p81 = por %p79, %p80
    %p82 = scmp.ne.s32.totalorder %s74, %s77
    %p83 = scmp.eq.s32.totalorder %s13, 0
    %p84 = por %p82, %p83
    %p85 = scmp.ne.s32.totalorder %s74, %s77
    %p86 = scmp.eq.s32.totalorder %s18, 1
    %p87 = por %p85, %p86
    %p88 = scmp.ne.s32.totalorder %s77, %s78
    %p89 = scmp.eq.s32.totalorder %s18, 0
    %p90 = por %p88, %p89
    %p91 = scmp.ne.s32.totalorder %s77, %s78
    %p92 = scmp.eq.s32.totalorder %s19, 1
    %p93 = por %p91, %p92
    %p95 = scmp.ne.s32.totalorder %s78, %s94
    %p96 = scmp.eq.s32.totalorder %s19, 0
    %p97 = por %p95, %p96
    %s99 = sadd.s32 %s98, 1
    %p102 = scmp.eq.s32.totalorder %s13, 1
    %p103 = scmp.ne.s32.totalorder %s98, %s100
    %p104 = scmp.eq.s32.totalorder %s13, 0
    %p105 = por %p103, %p104
    %p106 = scmp.ne.s32.totalorder %s98, %s100
    %p107 = scmp.eq.s32.totalorder %s18, 1
    %p108 = por %p106, %p107
    %p109 = scmp.ne.s32.totalorder %s100, %s101
    %p110 = scmp.eq.s32.totalorder %s18, 0
    %p111 = por %p109, %p110
    %p112 = scmp.ne.s32.totalorder %s100, %s101
    %p113 = scmp.eq.s32.totalorder %s19, 1
    %p114 = por %p112, %p113
    %p116 = scmp.ne.s32.totalorder %s101, %s115
    %p117 = scmp.eq.s32.totalorder %s19, 0
    %p118 = por %p116, %p117
    %s120 = sadd.s32 %s119, 1
    %p123 = scmp.eq.s32.totalorder %s13, 1
    %p124 = scmp.ne.s32.totalorder %s119, %s121
    %p125 = scmp.eq.s32.totalorder %s13, 0
    %p126 = por %p124, %p125
    %p127 = scmp.ne.s32.totalorder %s119, %s121
    %p128 = scmp.eq.s32.totalorder %s18, 1
    %p129 = por %p127, %p128
    %p130 = scmp.ne.s32.totalorder %s121, %s122
    %p131 = scmp.eq.s32.totalorder %s18, 0
    %p132 = por %p130, %p131
    %p133 = scmp.ne.s32.totalorder %s121, %s122
    %p134 = scmp.eq.s32.totalorder %s19, 1
    %p135 = por %p133, %p134
    %p137 = scmp.ne.s32.totalorder %s122, %s136
    %p138 = scmp.eq.s32.totalorder %s19, 0
    %p139 = por %p137, %p138
    %s141 = sadd.s32 %s140, 1
    %p144 = scmp.eq.s32.totalorder %s13, 1
    %p145 = scmp.ne.s32.totalorder %s140, %s142
    %p146 = scmp.eq.s32.totalorder %s13, 0
    %p147 = por %p145, %p146
    %p148 = scmp.ne.s32.totalorder %s140, %s142
    %p149 = scmp.eq.s32.totalorder %s18, 1
    %p150 = por %p148, %p149
    %p151 = scmp.ne.s32.totalorder %s142, %s143
    %p152 = scmp.eq.s32.totalorder %s18, 0
    %p153 = por %p151, %p152
    %p154 = scmp.ne.s32.totalorder %s142, %s143
    %p155 = scmp.eq.s32.totalorder %s19, 1
    %p156 = por %p154, %p155
    %p158 = scmp.ne.s32.totalorder %s143, %s157
    %p159 = scmp.eq.s32.totalorder %s19, 0
    %p160 = por %p158, %p159
    %s162 = sadd.s32 %s161, 1
    %p165 = scmp.eq.s32.totalorder %s13, 1
    %p166 = scmp.ne.s32.totalorder %s161, %s163
    %p167 = scmp.eq.s32.totalorder %s13, 0
    %p168 = por %p166, %p167
    %p169 = scmp.ne.s32.totalorder %s161, %s163
    %p170 = scmp.eq.s32.totalorder %s18, 1
    %p171 = por %p169, %p170
    %p172 = scmp.ne.s32.totalorder %s163, %s164
    %p173 = scmp.eq.s32.totalorder %s18, 0
    %p174 = por %p172, %p173
    %p175 = scmp.ne.s32.totalorder %s163, %s164
    %p176 = scmp.eq.s32.totalorder %s19, 1
    %p177 = por %p175, %p176
    %p179 = scmp.ne.s32.totalorder %s164, %s178
    %p180 = scmp.eq.s32.totalorder %s19, 0
    %p181 = por %p179, %p180
    %s183 = sadd.s32 %s182, 1
    %p186 = scmp.eq.s32.totalorder %s13, 1
    %p187 = scmp.ne.s32.totalorder %s182, %s184
    %p188 = scmp.eq.s32.totalorder %s13, 0
    %p189 = por %p187, %p188
    %p190 = scmp.ne.s32.totalorder %s182, %s184
    %p191 = scmp.eq.s32.totalorder %s18, 1
    %p192 = por %p190, %p191
    %p193 = scmp.ne.s32.totalorder %s184, %s185
    %p194 = scmp.eq.s32.totalorder %s18, 0
    %p195 = por %p193, %p194
    %p196 = scmp.ne.s32.totalorder %s184, %s185
    %p197 = scmp.eq.s32.totalorder %s19, 1
    %p198 = por %p196, %p197
    %p200 = scmp.ne.s32.totalorder %s185, %s199
    %p201 = scmp.eq.s32.totalorder %s19, 0
    %p202 = por %p200, %p201
    %s203 = ssub.s32 %s20, %s39
    %s204 = ssub.s32 %s21, %s35
    %s205 = sor.u32 %s203, %s204
    %p206 = scmp.eq.s32.totalorder %s205, 0
    %s208 = sadd.s32 %s207, 1
    %s209 = scalar_select %p206, %s207, %s208
    %p212 = pneg %p206
    %p213 = scmp.eq.s32.totalorder %s13, 1
    %p214 = por %p212, %p213
    %p215 = scmp.ne.s32.totalorder %s207, %s210
    %p216 = scmp.eq.s32.totalorder %s13, 0
    %p217 = por %p215, %p216
    %p218 = scmp.ne.s32.totalorder %s207, %s210
    %p219 = scmp.eq.s32.totalorder %s18, 1
    %p220 = por %p218, %p219
    %p221 = scmp.ne.s32.totalorder %s210, %s211
    %p222 = scmp.eq.s32.totalorder %s18, 0
    %p223 = por %p221, %p222
    %p224 = scmp.ne.s32.totalorder %s210, %s211
    %p225 = scmp.eq.s32.totalorder %s19, 1
    %p226 = por %p224, %p225
    %p228 = scmp.ne.s32.totalorder %s211, %s227
    %p229 = scmp.eq.s32.totalorder %s19, 0
    %p230 = por %p228, %p229
    %p231 = scmp.le.s32.totalorder 1, %s13
    %p232 = scmp.lt.s32.totalorder %s13, 3
    %p233 = pnand %p231, %p232
    %p234 = pneg %p233
    // Predicated region
    $region9: #{tpu_custom_call.1} parent=5 // pred_check
      _
    $region10: #{tpu_custom_call.1} parent=5 // pred_check_branch
      %236 = sbr.rel (%p233) target = $region12
    $region11: #{tpu_custom_call.1} parent=5 // pred_region
      %s237 = ssub.s32 %s13, 1
      // Predicated region
      $region13: #{tpu_custom_call.1} parent=11 // pred_check
        %p238 = pneg %p111
      $region14: #{tpu_custom_call.1} parent=11 // pred_check_branch
        %240 = sbr.rel (%p238) target = $region16
      $region15: #{tpu_custom_call.1} parent=11 // pred_region
        _
      $region16: #{tpu_custom_call.1} parent=11 // pred_fallthru
        _
      // Predicated region
      $region17: #{tpu_custom_call.1} parent=11 // pred_check
        %p241 = pneg %p132
      $region18: #{tpu_custom_call.1} parent=11 // pred_check_branch
        %243 = sbr.rel (%p241) target = $region20
      $region19: #{tpu_custom_call.1} parent=11 // pred_region
        _
      $region20: #{tpu_custom_call.1} parent=11 // pred_fallthru
        _
      // Predicated region
      $region21: #{tpu_custom_call.1} parent=11 // pred_check
        %p244 = pneg %p153
      $region22: #{tpu_custom_call.1} parent=11 // pred_check_branch
        %246 = sbr.rel (%p244) target = $region24
      $region23: #{tpu_custom_call.1} parent=11 // pred_region
        _
      $region24: #{tpu_custom_call.1} parent=11 // pred_fallthru
        _
      // Predicated region
      $region25: #{tpu_custom_call.1} parent=11 // pred_check
        %p247 = pneg %p174
      $region26: #{tpu_custom_call.1} parent=11 // pred_check_branch
        %249 = sbr.rel (%p247) target = $region28
      $region27: #{tpu_custom_call.1} parent=11 // pred_region
        _
      $region28: #{tpu_custom_call.1} parent=11 // pred_fallthru
        _
      // Predicated region
      $region29: #{tpu_custom_call.1} parent=11 // pred_check
        %p250 = pneg %p195
      $region30: #{tpu_custom_call.1} parent=11 // pred_check_branch
        %252 = sbr.rel (%p250) target = $region32
      $region31: #{tpu_custom_call.1} parent=11 // pred_region
        _
      $region32: #{tpu_custom_call.1} parent=11 // pred_fallthru
        _
    $region12: #{tpu_custom_call.1} parent=5 // pred_fallthru
      _
    %p253 = scmp.lt.s32.totalorder %s13, 2
    // Predicated region
    $region33: #{tpu_custom_call.1} parent=5 // pred_check
      %p254 = pneg %p253
    $region34: #{tpu_custom_call.1} parent=5 // pred_check_branch
      %256 = sbr.rel (%p254) target = $region36
    $region35: #{tpu_custom_call.1} parent=5 // pred_region
      // Predicated region
      $region37: #{tpu_custom_call.1} parent=35 // pred_check
        %p257 = pneg %p54
      $region38: #{tpu_custom_call.1} parent=35 // pred_check_branch
        %259 = sbr.rel (%p257) target = $region40
      $region39: #{tpu_custom_call.1} parent=35 // pred_region
        %p260 = scmp.lt.s32.totalorder %s20, 3
        %s261 = scalar_select %p260, %s20, 3
        %p262 = scmp.lt.s32.totalorder %s21, 0
        %s263 = scalar_select %p262, %s21, 0
        %s264 = sadd.s32 %s263, %s261
        %s265 = smul.addr %s264, 8
        %s266 = scalar_lea.vmem %s0, %s265
      $region40: #{tpu_custom_call.1} parent=35 // pred_fallthru
        _
      // Predicated region
      $region41: #{tpu_custom_call.1} parent=35 // pred_check
        %p267 = pneg %p84
      $region42: #{tpu_custom_call.1} parent=35 // pred_check_branch
        %269 = sbr.rel (%p267) target = $region44
      $region43: #{tpu_custom_call.1} parent=35 // pred_region
        %s270 = sadd.s32 %s20, 2
        %p271 = scmp.lt.s32.totalorder %s270, 3
        %s272 = scalar_select %p271, %s270, 3
        %p273 = scmp.lt.s32.totalorder %s22, 0
        %s274 = scalar_select %p273, %s22, 0
        %s275 = sadd.s32 %s274, %s272
        %s276 = smul.addr %s275, 8
        %s277 = scalar_lea.vmem %s1, %s276
        %s278 = sadd.s32 %s20, 2
      $region44: #{tpu_custom_call.1} parent=35 // pred_fallthru
        _
    $region36: #{tpu_custom_call.1} parent=5 // pred_fallthru
      _
    %p279 = scmp.le.s32.totalorder 1, %s13
    %p280 = scmp.lt.s32.totalorder %s13, 3
    %p281 = pnand %p279, %p280
    %p282 = pneg %p281
    // Predicated region
    $region45: #{tpu_custom_call.1} parent=5 // pred_check
      _
    $region46: #{tpu_custom_call.1} parent=5 // pred_check_branch
      %284 = sbr.rel (%p281) target = $region48
    $region47: #{tpu_custom_call.1} parent=5 // pred_region
      %s285 = ssub.s32 %s13, 1
      %p286 = scmp.lt.s32.totalorder %s23, 3
      %s287 = scalar_select %p286, %s23, 3
      %p288 = scmp.lt.s32.totalorder %s24, 0
      %s289 = scalar_select %p288, %s24, 0
      %s290 = sadd.s32 %s289, %s287
      %s291 = smul.addr %s290, 8
      %s292 = scalar_lea.vmem %s0, %s291
      %p293 = pneg %p60
      %p294 = pneg %p57
      %s295 = sadd.s32 %s23, 2
      %p296 = scmp.lt.s32.totalorder %s295, 3
      %s297 = scalar_select %p296, %s295, 3
      %p298 = scmp.lt.s32.totalorder %s25, 0
      %s299 = scalar_select %p298, %s25, 0
      %s300 = sadd.s32 %s299, %s297
      %s301 = smul.addr %s300, 8
      %s302 = scalar_lea.vmem %s1, %s301
      %p303 = pneg %p90
      %p304 = pneg %p87
      %p305 = pneg %p111
      %p306 = pneg %p108
      %p307 = pneg %p132
      %p308 = pneg %p129
      %p309 = pneg %p153
      %p310 = pneg %p150
      %p311 = pneg %p174
      %p312 = pneg %p171
      %p313 = pneg %p195
      %p314 = pneg %p192
      %p315 = pneg %p223
      %p316 = pneg %p220
      %p317 = scmp.lt.s32.totalorder %s23, 1
      %s318 = scalar_select %p317, %s23, 1
      %p319 = scmp.lt.s32.totalorder %s24, 0
      %s320 = scalar_select %p319, %s24, 0
      %s321 = smul.addr %s318, 5
      %s322 = sadd.s32 %s320, %s321
      %s323 = smul.addr %s322, 8
      %s324 = scalar_lea.vmem %s7, %s323
      %p325 = scmp.lt.s32.totalorder %s23, 3
      %s326 = scalar_select %p325, %s23, 3
      %p327 = scmp.lt.s32.totalorder %s24, 0
      %s328 = scalar_select %p327, %s24, 0
      %s329 = sadd.s32 %s328, %s326
      %s330 = smul.addr %s329, 8
      %s331 = scalar_lea.vmem %s0, %s330
      %s332 = sadd.s32 %s23, 2
      %p333 = scmp.lt.s32.totalorder %s332, 3
      %s334 = scalar_select %p333, %s332, 3
      %p335 = scmp.lt.s32.totalorder %s25, 0
      %s336 = scalar_select %p335, %s25, 0
      %s337 = sadd.s32 %s336, %s334
      %s338 = smul.addr %s337, 8
      %s339 = scalar_lea.vmem %s1, %s338
      %s340 = sadd.s32 %s23, 2
      %p341 = scmp.lt.s32.totalorder %s23, 1
      %s342 = scalar_select %p341, %s23, 1
      %p343 = scmp.lt.s32.totalorder %s24, 0
      %s344 = scalar_select %p343, %s24, 0
      %s345 = smul.addr %s342, 5
      %s346 = sadd.s32 %s344, %s345
      %s347 = smul.addr %s346, 8
      %s348 = scalar_lea.vmem %s7, %s347
      %v349 = vld [vmem:[%s331] sm:$0xff]
      %v350 = vld [vmem:[%s339] sm:$0xff]
      %351 = vxpose.xlu0.b32.start [1/16] %v349, 128
      %352 = vxpose.xlu0.b32.cont [2/16] 0.0, 128
      %353 = vxpose.xlu0.b32.cont [3/16] 0.0, 128
      %354 = vxpose.xlu0.b32.cont [4/16] 0.0, 128
      %355 = vxpose.xlu0.b32.cont [5/16] 0.0, 128
      %356 = vxpose.xlu0.b32.cont [6/16] 0.0, 128
      %357 = vxpose.xlu0.b32.cont [7/16] 0.0, 128
      %358 = vxpose.xlu0.b32.cont [8/16] 0.0, 128
      %359 = vxpose.xlu0.b32.cont [9/16] 0.0, 128
      %360 = vxpose.xlu0.b32.cont [10/16] 0.0, 128
      %361 = vxpose.xlu0.b32.cont [11/16] 0.0, 128
      %362 = vxpose.xlu0.b32.cont [12/16] 0.0, 128
      %363 = vxpose.xlu0.b32.cont [13/16] 0.0, 128
      %364 = vxpose.xlu0.b32.cont [14/16] 0.0, 128
      %365 = vxpose.xlu0.b32.cont [15/16] 0.0, 128
      %366 = vxpose.xlu0.b32.end [16/16] 0.0, 128
      %v367 = vpop.trf.xlu0
      %v368 = vpop.trf.xlu0
      %v369 = vpop.trf.xlu0
      %v370 = vpop.trf.xlu0
      %v371 = vpop.trf.xlu0
      %v372 = vpop.trf.xlu0
      %v373 = vpop.trf.xlu0
      %v374 = vpop.trf.xlu0
      %v375 = vpop.trf.xlu0
      %v376 = vpop.trf.xlu0
      %v377 = vpop.trf.xlu0
      %v378 = vpop.trf.xlu0
      %v379 = vpop.trf.xlu0
      %v380 = vpop.trf.xlu0
      %v381 = vpop.trf.xlu0
      %v382 = vpop.trf.xlu0
      %v385 = vcombine.high %v367, %v367
      %v387 = vunpack.c.l.s4 1966171168
      %v388 = vunpack.c.0.s8 %v387
      %v389 = vlaneseq
      %v390 = vshrl.u32 %v389, 7
      %v391 = vsub.s32 %v388, %v390
      %v392 = vrot.slane %v367, %v391
      %v394 = vunpack.c.l.s4 1966171168
      %v395 = vunpack.c.0.s8 %v394
      %v396 = vlaneseq
      %v397 = vshrl.u32 %v396, 7
      %v398 = vsub.s32 %v395, %v397
      %v399 = vrot.slane %v385, %v398
      %v400 = vcombine.high %v392, %v392
      %v401 = vcombine.high %v399, %v399
      %v403 = vunpack.c.l.s4 1966171168
      %v404 = vunpack.c.0.s8 %v403
      %v405 = vlaneseq
      %v406 = vshrl.u32 %v405, 7
      %v407 = vsub.s32 %v404, %v406
      %v408 = vrot.slane %v392, %v407
      %v410 = vunpack.c.l.s4 1966171168
      %v411 = vunpack.c.0.s8 %v410
      %v412 = vlaneseq
      %v413 = vshrl.u32 %v412, 7
      %v414 = vsub.s32 %v411, %v413
      %v415 = vrot.slane %v399, %v414
      %v417 = vunpack.c.l.s4 1966171168
      %v418 = vunpack.c.0.s8 %v417
      %v419 = vlaneseq
      %v420 = vshrl.u32 %v419, 7
      %v421 = vsub.s32 %v418, %v420
      %v422 = vrot.slane %v400, %v421
      %v424 = vunpack.c.l.s4 1966171168
      %v425 = vunpack.c.0.s8 %v424
      %v426 = vlaneseq
      %v427 = vshrl.u32 %v426, 7
      %v428 = vsub.s32 %v425, %v427
      %v429 = vrot.slane %v401, %v428
      %v430 = vcombine.high %v408, %v408
      %v431 = vcombine.high %v415, %v415
      %v432 = vcombine.high %v422, %v422
      %v433 = vcombine.high %v429, %v429
      %v434 = vcombine.high %v368, %v368
      %v436 = vunpack.c.l.s4 1966171168
      %v437 = vunpack.c.0.s8 %v436
      %v438 = vlaneseq
      %v439 = vshrl.u32 %v438, 7
      %v440 = vsub.s32 %v437, %v439
      %v441 = vrot.slane %v368, %v440
      %v443 = vunpack.c.l.s4 1966171168
      %v444 = vunpack.c.0.s8 %v443
      %v445 = vlaneseq
      %v446 = vshrl.u32 %v445, 7
      %v447 = vsub.s32 %v444, %v446
      %v448 = vrot.slane %v434, %v447
      %v449 = vcombine.high %v441, %v441
      %v450 = vcombine.high %v448, %v448
      %v452 = vunpack.c.l.s4 1966171168
      %v453 = vunpack.c.0.s8 %v452
      %v454 = vlaneseq
      %v455 = vshrl.u32 %v454, 7
      %v456 = vsub.s32 %v453, %v455
      %v457 = vrot.slane %v441, %v456
      %v459 = vunpack.c.l.s4 1966171168
      %v460 = vunpack.c.0.s8 %v459
      %v461 = vlaneseq
      %v462 = vshrl.u32 %v461, 7
      %v463 = vsub.s32 %v460, %v462
      %v464 = vrot.slane %v448, %v463
      %v466 = vunpack.c.l.s4 1966171168
      %v467 = vunpack.c.0.s8 %v466
      %v468 = vlaneseq
      %v469 = vshrl.u32 %v468, 7
      %v470 = vsub.s32 %v467, %v469
      %v471 = vrot.slane %v449, %v470
      %v473 = vunpack.c.l.s4 1966171168
      %v474 = vunpack.c.0.s8 %v473
      %v475 = vlaneseq
      %v476 = vshrl.u32 %v475, 7
      %v477 = vsub.s32 %v474, %v476
      %v478 = vrot.slane %v450, %v477
      %v479 = vcombine.high %v457, %v457
      %v480 = vcombine.high %v464, %v464
      %v481 = vcombine.high %v471, %v471
      %v482 = vcombine.high %v478, %v478
      %v483 = vld [vmem:[%s2] sm:$0xff]
      %v484 = vld [vmem:[%s2 + $0x8] sm:$0xff]
      %v485 = vld [vmem:[%s2 + $0x10] sm:$0xff]
      %v486 = vld [vmem:[%s2 + $0x18] sm:$0xff]
      %v487 = vlaneseq
      %v488 = vshrl.u32 %v487, 7
      %v489 = vsub.s32 0, %v488
      %v490 = vrot.slane %v408, %v489
      %v491 = vlaneseq
      %v492 = vshrl.u32 %v491, 7
      %v493 = vsub.s32 0, %v492
      %v494 = vrot.slane %v422, %v493
      %v495 = vlaneseq
      %v496 = vshrl.u32 %v495, 7
      %v497 = vsub.s32 0, %v496
      %v498 = vrot.slane %v430, %v497
      %v499 = vlaneseq
      %v500 = vshrl.u32 %v499, 7
      %v501 = vsub.s32 0, %v500
      %v502 = vrot.slane %v432, %v501
      %v503 = vlaneseq
      %v504 = vshrl.u32 %v503, 7
      %v505 = vsub.s32 0, %v504
      %v506 = vrot.slane %v415, %v505
      %v507 = vlaneseq
      %v508 = vshrl.u32 %v507, 7
      %v509 = vsub.s32 0, %v508
      %v510 = vrot.slane %v429, %v509
      %v511 = vlaneseq
      %v512 = vshrl.u32 %v511, 7
      %v513 = vsub.s32 0, %v512
      %v514 = vrot.slane %v431, %v513
      %v515 = vlaneseq
      %v516 = vshrl.u32 %v515, 7
      %v517 = vsub.s32 0, %v516
      %v518 = vrot.slane %v433, %v517
      %v519 = vlaneseq
      %v520 = vshrl.u32 %v519, 7
      %v521 = vsub.s32 0, %v520
      %v522 = vrot.slane %v457, %v521
      %v523 = vlaneseq
      %v524 = vshrl.u32 %v523, 7
      %v525 = vsub.s32 0, %v524
      %v526 = vrot.slane %v471, %v525
      %v527 = vlaneseq
      %v528 = vshrl.u32 %v527, 7
      %v529 = vsub.s32 0, %v528
      %v530 = vrot.slane %v479, %v529
      %v531 = vlaneseq
      %v532 = vshrl.u32 %v531, 7
      %v533 = vsub.s32 0, %v532
      %v534 = vrot.slane %v481, %v533
      %v535 = vlaneseq
      %v536 = vshrl.u32 %v535, 7
      %v537 = vsub.s32 0, %v536
      %v538 = vrot.slane %v464, %v537
      %v539 = vlaneseq
      %v540 = vshrl.u32 %v539, 7
      %v541 = vsub.s32 0, %v540
      %v542 = vrot.slane %v478, %v541
      %v543 = vlaneseq
      %v544 = vshrl.u32 %v543, 7
      %v545 = vsub.s32 0, %v544
      %v546 = vrot.slane %v480, %v545
      %v547 = vlaneseq
      %v548 = vshrl.u32 %v547, 7
      %v549 = vsub.s32 0, %v548
      %v550 = vrot.slane %v482, %v549
      %v567 = vmul.f32 %v490, %v483
      %v568 = vmul.f32 %v490, %v484
      %v569 = vmul.f32 %v490, %v485
      %v570 = vmul.f32 %v490, %v486
      %v571 = vmul.f32 %v494, %v483
      %v572 = vmul.f32 %v494, %v484
      %v573 = vmul.f32 %v494, %v485
      %v574 = vmul.f32 %v494, %v486
      %v575 = vmul.f32 %v498, %v483
      %v576 = vmul.f32 %v498, %v484
      %v577 = vmul.f32 %v498, %v485
      %v578 = vmul.f32 %v498, %v486
      %v579 = vmul.f32 %v502, %v483
      %v580 = vmul.f32 %v502, %v484
      %v581 = vmul.f32 %v502, %v485
      %v582 = vmul.f32 %v502, %v486
      %v583 = vmul.f32 %v506, %v483
      %v584 = vmul.f32 %v506, %v484
      %v585 = vmul.f32 %v506, %v485
      %v586 = vmul.f32 %v506, %v486
      %v587 = vmul.f32 %v510, %v483
      %v588 = vmul.f32 %v510, %v484
      %v589 = vmul.f32 %v510, %v485
      %v590 = vmul.f32 %v510, %v486
      %v591 = vmul.f32 %v514, %v483
      %v592 = vmul.f32 %v514, %v484
      %v593 = vmul.f32 %v514, %v485
      %v594 = vmul.f32 %v514, %v486
      %v595 = vmul.f32 %v518, %v483
      %v596 = vmul.f32 %v518, %v484
      %v597 = vmul.f32 %v518, %v485
      %v598 = vmul.f32 %v518, %v486
      %v599 = vmul.f32 %v522, %v483
      %v600 = vmul.f32 %v522, %v484
      %v601 = vmul.f32 %v522, %v485
      %v602 = vmul.f32 %v522, %v486
      %v603 = vmul.f32 %v526, %v483
      %v604 = vmul.f32 %v526, %v484
      %v605 = vmul.f32 %v526, %v485
      %v606 = vmul.f32 %v526, %v486
      %v607 = vmul.f32 %v530, %v483
      %v608 = vmul.f32 %v530, %v484
      %v609 = vmul.f32 %v530, %v485
      %v610 = vmul.f32 %v530, %v486
      %v611 = vmul.f32 %v534, %v483
      %v612 = vmul.f32 %v534, %v484
      %v613 = vmul.f32 %v534, %v485
      %v614 = vmul.f32 %v534, %v486
      %v615 = vmul.f32 %v538, %v483
      %v616 = vmul.f32 %v538, %v484
      %v617 = vmul.f32 %v538, %v485
      %v618 = vmul.f32 %v538, %v486
      %v619 = vmul.f32 %v542, %v483
      %v620 = vmul.f32 %v542, %v484
      %v621 = vmul.f32 %v542, %v485
      %v622 = vmul.f32 %v542, %v486
      %v623 = vmul.f32 %v546, %v483
      %v624 = vmul.f32 %v546, %v484
      %v625 = vmul.f32 %v546, %v485
      %v626 = vmul.f32 %v546, %v486
      %v627 = vmul.f32 %v550, %v483
      %v628 = vmul.f32 %v550, %v484
      %v629 = vmul.f32 %v550, %v485
      %v630 = vmul.f32 %v550, %v486
      %vm631 = vcmask 64512
      %v632 = vsel %vm631, %v567, 0.0
      %633 = vadd.xlane.f32.xlu0 %v632
      %v634 = vpop.xlane.xlu0 %633
      %v635 = vsel %vm631, %v568, 0.0
      %636 = vadd.xlane.f32.xlu0 %v635
      %v637 = vpop.xlane.xlu0 %636
      %v638 = vsel %vm631, %v569, 0.0
      %639 = vadd.xlane.f32.xlu0 %v638
      %v640 = vpop.xlane.xlu0 %639
      %v641 = vsel %vm631, %v570, 0.0
      %642 = vadd.xlane.f32.xlu0 %v641
      %v643 = vpop.xlane.xlu0 %642
      %v644 = vsel %vm631, %v571, 0.0
      %645 = vadd.xlane.f32.xlu0 %v644
      %v646 = vpop.xlane.xlu0 %645
      %v647 = vsel %vm631, %v572, 0.0
      %648 = vadd.xlane.f32.xlu0 %v647
      %v649 = vpop.xlane.xlu0 %648
      %v650 = vsel %vm631, %v573, 0.0
      %651 = vadd.xlane.f32.xlu0 %v650
      %v652 = vpop.xlane.xlu0 %651
      %v653 = vsel %vm631, %v574, 0.0
      %654 = vadd.xlane.f32.xlu0 %v653
      %v655 = vpop.xlane.xlu0 %654
      %v656 = vsel %vm631, %v575, 0.0
      %657 = vadd.xlane.f32.xlu0 %v656
      %v658 = vpop.xlane.xlu0 %657
      %v659 = vsel %vm631, %v576, 0.0
      %660 = vadd.xlane.f32.xlu0 %v659
      %v661 = vpop.xlane.xlu0 %660
      %v662 = vsel %vm631, %v577, 0.0
      %663 = vadd.xlane.f32.xlu0 %v662
      %v664 = vpop.xlane.xlu0 %663
      %v665 = vsel %vm631, %v578, 0.0
      %666 = vadd.xlane.f32.xlu0 %v665
      %v667 = vpop.xlane.xlu0 %666
      %v668 = vsel %vm631, %v579, 0.0
      %669 = vadd.xlane.f32.xlu0 %v668
      %v670 = vpop.xlane.xlu0 %669
      %v671 = vsel %vm631, %v580, 0.0
      %672 = vadd.xlane.f32.xlu0 %v671
      %v673 = vpop.xlane.xlu0 %672
      %v674 = vsel %vm631, %v581, 0.0
      %675 = vadd.xlane.f32.xlu0 %v674
      %v676 = vpop.xlane.xlu0 %675
      %v677 = vsel %vm631, %v582, 0.0
      %678 = vadd.xlane.f32.xlu0 %v677
      %v679 = vpop.xlane.xlu0 %678
      %v680 = vsel %vm631, %v583, 0.0
      %681 = vadd.xlane.f32.xlu0 %v680
      %v682 = vpop.xlane.xlu0 %681
      %v683 = vsel %vm631, %v584, 0.0
      %684 = vadd.xlane.f32.xlu0 %v683
      %v685 = vpop.xlane.xlu0 %684
      %v686 = vsel %vm631, %v585, 0.0
      %687 = vadd.xlane.f32.xlu0 %v686
      %v688 = vpop.xlane.xlu0 %687
      %v689 = vsel %vm631, %v586, 0.0
      %690 = vadd.xlane.f32.xlu0 %v689
      %v691 = vpop.xlane.xlu0 %690
      %v692 = vsel %vm631, %v587, 0.0
      %693 = vadd.xlane.f32.xlu0 %v692
      %v694 = vpop.xlane.xlu0 %693
      %v695 = vsel %vm631, %v588, 0.0
      %696 = vadd.xlane.f32.xlu0 %v695
      %v697 = vpop.xlane.xlu0 %696
      %v698 = vsel %vm631, %v589, 0.0
      %699 = vadd.xlane.f32.xlu0 %v698
      %v700 = vpop.xlane.xlu0 %699
      %v701 = vsel %vm631, %v590, 0.0
      %702 = vadd.xlane.f32.xlu0 %v701
      %v703 = vpop.xlane.xlu0 %702
      %v704 = vsel %vm631, %v591, 0.0
      %705 = vadd.xlane.f32.xlu0 %v704
      %v706 = vpop.xlane.xlu0 %705
      %v707 = vsel %vm631, %v592, 0.0
      %708 = vadd.xlane.f32.xlu0 %v707
      %v709 = vpop.xlane.xlu0 %708
      %v710 = vsel %vm631, %v593, 0.0
      %711 = vadd.xlane.f32.xlu0 %v710
      %v712 = vpop.xlane.xlu0 %711
      %v713 = vsel %vm631, %v594, 0.0
      %714 = vadd.xlane.f32.xlu0 %v713
      %v715 = vpop.xlane.xlu0 %714
      %v716 = vsel %vm631, %v595, 0.0
      %717 = vadd.xlane.f32.xlu0 %v716
      %v718 = vpop.xlane.xlu0 %717
      %v719 = vsel %vm631, %v596, 0.0
      %720 = vadd.xlane.f32.xlu0 %v719
      %v721 = vpop.xlane.xlu0 %720
      %v722 = vsel %vm631, %v597, 0.0
      %723 = vadd.xlane.f32.xlu0 %v722
      %v724 = vpop.xlane.xlu0 %723
      %v725 = vsel %vm631, %v598, 0.0
      %726 = vadd.xlane.f32.xlu0 %v725
      %v727 = vpop.xlane.xlu0 %726
      %v728 = vsel %vm631, %v599, 0.0
      %729 = vadd.xlane.f32.xlu0 %v728
      %v730 = vpop.xlane.xlu0 %729
      %v731 = vsel %vm631, %v600, 0.0
      %732 = vadd.xlane.f32.xlu0 %v731
      %v733 = vpop.xlane.xlu0 %732
      %v734 = vsel %vm631, %v601, 0.0
      %735 = vadd.xlane.f32.xlu0 %v734
      %v736 = vpop.xlane.xlu0 %735
      %v737 = vsel %vm631, %v602, 0.0
      %738 = vadd.xlane.f32.xlu0 %v737
      %v739 = vpop.xlane.xlu0 %738
      %v740 = vsel %vm631, %v603, 0.0
      %741 = vadd.xlane.f32.xlu0 %v740
      %v742 = vpop.xlane.xlu0 %741
      %v743 = vsel %vm631, %v604, 0.0
      %744 = vadd.xlane.f32.xlu0 %v743
      %v745 = vpop.xlane.xlu0 %744
      %v746 = vsel %vm631, %v605, 0.0
      %747 = vadd.xlane.f32.xlu0 %v746
      %v748 = vpop.xlane.xlu0 %747
      %v749 = vsel %vm631, %v606, 0.0
      %750 = vadd.xlane.f32.xlu0 %v749
      %v751 = vpop.xlane.xlu0 %750
      %v752 = vsel %vm631, %v607, 0.0
      %753 = vadd.xlane.f32.xlu0 %v752
      %v754 = vpop.xlane.xlu0 %753
      %v755 = vsel %vm631, %v608, 0.0
      %756 = vadd.xlane.f32.xlu0 %v755
      %v757 = vpop.xlane.xlu0 %756
      %v758 = vsel %vm631, %v609, 0.0
      %759 = vadd.xlane.f32.xlu0 %v758
      %v760 = vpop.xlane.xlu0 %759
      %v761 = vsel %vm631, %v610, 0.0
      %762 = vadd.xlane.f32.xlu0 %v761
      %v763 = vpop.xlane.xlu0 %762
      %v764 = vsel %vm631, %v611, 0.0
      %765 = vadd.xlane.f32.xlu0 %v764
      %v766 = vpop.xlane.xlu0 %765
      %v767 = vsel %vm631, %v612, 0.0
      %768 = vadd.xlane.f32.xlu0 %v767
      %v769 = vpop.xlane.xlu0 %768
      %v770 = vsel %vm631, %v613, 0.0
      %771 = vadd.xlane.f32.xlu0 %v770
      %v772 = vpop.xlane.xlu0 %771
      %v773 = vsel %vm631, %v614, 0.0
      %774 = vadd.xlane.f32.xlu0 %v773
      %v775 = vpop.xlane.xlu0 %774
      %v776 = vsel %vm631, %v615, 0.0
      %777 = vadd.xlane.f32.xlu0 %v776
      %v778 = vpop.xlane.xlu0 %777
      %v779 = vsel %vm631, %v616, 0.0
      %780 = vadd.xlane.f32.xlu0 %v779
      %v781 = vpop.xlane.xlu0 %780
      %v782 = vsel %vm631, %v617, 0.0
      %783 = vadd.xlane.f32.xlu0 %v782
      %v784 = vpop.xlane.xlu0 %783
      %v785 = vsel %vm631, %v618, 0.0
      %786 = vadd.xlane.f32.xlu0 %v785
      %v787 = vpop.xlane.xlu0 %786
      %v788 = vsel %vm631, %v619, 0.0
      %789 = vadd.xlane.f32.xlu0 %v788
      %v790 = vpop.xlane.xlu0 %789
      %v791 = vsel %vm631, %v620, 0.0
      %792 = vadd.xlane.f32.xlu0 %v791
      %v793 = vpop.xlane.xlu0 %792
      %v794 = vsel %vm631, %v621, 0.0
      %795 = vadd.xlane.f32.xlu0 %v794
      %v796 = vpop.xlane.xlu0 %795
      %v797 = vsel %vm631, %v622, 0.0
      %798 = vadd.xlane.f32.xlu0 %v797
      %v799 = vpop.xlane.xlu0 %798
      %v800 = vsel %vm631, %v623, 0.0
      %801 = vadd.xlane.f32.xlu0 %v800
      %v802 = vpop.xlane.xlu0 %801
      %v803 = vsel %vm631, %v624, 0.0
      %804 = vadd.xlane.f32.xlu0 %v803
      %v805 = vpop.xlane.xlu0 %804
      %v806 = vsel %vm631, %v625, 0.0
      %807 = vadd.xlane.f32.xlu0 %v806
      %v808 = vpop.xlane.xlu0 %807
      %v809 = vsel %vm631, %v626, 0.0
      %810 = vadd.xlane.f32.xlu0 %v809
      %v811 = vpop.xlane.xlu0 %810
      %v812 = vsel %vm631, %v627, 0.0
      %813 = vadd.xlane.f32.xlu0 %v812
      %v814 = vpop.xlane.xlu0 %813
      %v815 = vsel %vm631, %v628, 0.0
      %816 = vadd.xlane.f32.xlu0 %v815
      %v817 = vpop.xlane.xlu0 %816
      %v818 = vsel %vm631, %v629, 0.0
      %819 = vadd.xlane.f32.xlu0 %v818
      %v820 = vpop.xlane.xlu0 %819
      %v821 = vsel %vm631, %v630, 0.0
      %822 = vadd.xlane.f32.xlu0 %v821
      %v823 = vpop.xlane.xlu0 %822
      %v824 = vld [vmem:[%s3] sm:$0xff]
      %v825 = vld [vmem:[%s3 + $0x8] sm:$0xff]
      %v826 = vld [vmem:[%s3 + $0x10] sm:$0xff]
      %v827 = vld [vmem:[%s3 + $0x18] sm:$0xff]
      %v828 = vld [vmem:[%s4] sm:$0xff]
      %v829 = vld [vmem:[%s4 + $0x8] sm:$0xff]
      %v830 = vld [vmem:[%s4 + $0x10] sm:$0xff]
      %v831 = vld [vmem:[%s4 + $0x18] sm:$0xff]
      %833 = vset.pattern.permute.xlu0 0
      %834 = vperm.xlu0 %833, %v828
      %v835 = vpop.permute.xlu0 %834
      %838 = vset.pattern.permute.xlu0 0
      %839 = vperm.xlu0 %838, %v829
      %v840 = vpop.permute.xlu0 %839
      %843 = vset.pattern.permute.xlu0 0
      %844 = vperm.xlu0 %843, %v830
      %v845 = vpop.permute.xlu0 %844
      %848 = vset.pattern.permute.xlu0 0
      %849 = vperm.xlu0 %848, %v831
      %v850 = vpop.permute.xlu0 %849
      %v853 = vsel %vm631, %v824, 0
      %v856 = vsel %vm631, %v825, 0
      %v859 = vsel %vm631, %v826, 0
      %v862 = vsel %vm631, %v827, 0
      %864 = vmatprep.subr.mxu0 0.0
      %865 = vmatpush1.msra.mxu0 %v350
      %866 = vmatprep.subr.mxu0 0.0
      %867 = vmatpush1.msra.mxu0 0.0
      %868 = vmatprep.subr.mxu0 0.0
      %869 = vmatpush1.msra.mxu0 0.0
      %870 = vmatprep.subr.mxu0 0.0
      %871 = vmatpush1.msra.mxu0 0.0
      %872 = vmatprep.subr.mxu0 0.0
      %873 = vmatpush1.msra.mxu0 0.0
      %874 = vmatprep.subr.mxu0 0.0
      %875 = vmatpush1.msra.mxu0 0.0
      %876 = vmatprep.subr.mxu0 0.0
      %877 = vmatpush1.msra.mxu0 0.0
      %878 = vmatprep.subr.mxu0 0.0
      %879 = vmatpush1.msra.mxu0 0.0
      %880 = vmatprep.subr.mxu0 0.0
      %881 = vmatpush1.msra.mxu0 0.0
      %882 = vmatprep.subr.mxu0 0.0
      %883 = vmatpush1.msra.mxu0 0.0
      %884 = vmatprep.subr.mxu0 0.0
      %885 = vmatpush1.msra.mxu0 0.0
      %886 = vmatprep.subr.mxu0 0.0
      %887 = vmatpush1.msra.mxu0 0.0
      %888 = vmatprep.subr.mxu0 0.0
      %889 = vmatpush1.msra.mxu0 0.0
      %890 = vmatprep.subr.mxu0 0.0
      %891 = vmatpush1.msra.mxu0 0.0
      %892 = vmatprep.subr.mxu0 0.0
      %893 = vmatpush1.msra.mxu0 0.0
      %894 = vmatprep.subr.mxu0 0.0
      %895 = vmatpush1.msra.mxu0 0.0
      %896 = vmatprep.subr.mxu0 0.0
      %897 = vmatpush1.msra.mxu0 0.0
      %898 = vmatprep.subr.mxu0 0.0
      %899 = vmatpush1.msra.mxu0 0.0
      %900 = vmatprep.subr.mxu0 0.0
      %901 = vmatpush1.msra.mxu0 0.0
      %902 = vmatprep.subr.mxu0 0.0
      %903 = vmatpush1.msra.mxu0 0.0
      %904 = vmatprep.subr.mxu0 0.0
      %905 = vmatpush1.msra.mxu0 0.0
      %906 = vmatprep.subr.mxu0 0.0
      %907 = vmatpush1.msra.mxu0 0.0
      %908 = vmatprep.subr.mxu0 0.0
      %909 = vmatpush1.msra.mxu0 0.0
      %910 = vmatprep.subr.mxu0 0.0
      %911 = vmatpush1.msra.mxu0 0.0
      %912 = vmatprep.subr.mxu0 0.0
      %913 = vmatpush1.msra.mxu0 0.0
      %914 = vmatprep.subr.mxu0 0.0
      %915 = vmatpush1.msra.mxu0 0.0
      %916 = vmatprep.subr.mxu0 0.0
      %917 = vmatpush1.msra.mxu0 0.0
      %918 = vmatprep.subr.mxu0 0.0
      %919 = vmatpush1.msra.mxu0 0.0
      %920 = vmatprep.subr.mxu0 0.0
      %921 = vmatpush1.msra.mxu0 0.0
      %922 = vmatprep.subr.mxu0 0.0
      %923 = vmatpush1.msra.mxu0 0.0
      %924 = vmatprep.subr.mxu0 0.0
      %925 = vmatpush1.msra.mxu0 0.0
      %926 = vmatprep.subr.mxu0 0.0
      %927 = vmatpush1.msra.mxu0 0.0
      %928 = vmatprep.mubr.f32.mxu0 0.0
      %929 = vmatmul.mubr.f32.gmra.mrb[0].mxu0 %v853
      %v930 = vpop.f32.mrb[0].mxu0
      %v931 = vadd.f32 %v835, %v930
      %v932 = vpop.f32.mrb[0].mxu0
      %933 = vmatprep.mubr.f32.mxu0 0.0
      %934 = vmatmul.mubr.f32.gmra.mrb[0].mxu0 %v856
      %v935 = vpop.f32.mrb[0].mxu0
      %v936 = vadd.f32 %v840, %v935
      %v937 = vpop.f32.mrb[0].mxu0
      %938 = vmatprep.mubr.f32.mxu0 0.0
      %939 = vmatmul.mubr.f32.gmra.mrb[0].mxu0 %v859
      %v940 = vpop.f32.mrb[0].mxu0
      %v941 = vadd.f32 %v845, %v940
      %v942 = vpop.f32.mrb[0].mxu0
      %943 = vmatprep.mubr.f32.mxu0 0.0
      %944 = vmatmul.mubr.f32.gmra.mrb[0].mxu0 %v862
      %v945 = vpop.f32.mrb[0].mxu0
      %v946 = vadd.f32 %v850, %v945
      %v947 = vpop.f32.mrb[0].mxu0
      %948 = vdwg.mxu0
      %v949 = vadd.f32 %v634, %v931
      %v950 = vadd.f32 %v637, %v936
      %v951 = vadd.f32 %v640, %v941
      %v952 = vadd.f32 %v643, %v946
      %v953 = vadd.f32 %v646, %v931
      %v954 = vadd.f32 %v649, %v936
      %v955 = vadd.f32 %v652, %v941
      %v956 = vadd.f32 %v655, %v946
      %v957 = vadd.f32 %v658, %v931
      %v958 = vadd.f32 %v661, %v936
      %v959 = vadd.f32 %v664, %v941
      %v960 = vadd.f32 %v667, %v946
      %v961 = vadd.f32 %v670, %v931
      %v962 = vadd.f32 %v673, %v936
      %v963 = vadd.f32 %v676, %v941
      %v964 = vadd.f32 %v679, %v946
      %v965 = vadd.f32 %v682, %v931
      %v966 = vadd.f32 %v685, %v936
      %v967 = vadd.f32 %v688, %v941
      %v968 = vadd.f32 %v691, %v946
      %v969 = vadd.f32 %v694, %v931
      %v970 = vadd.f32 %v697, %v936
      %v971 = vadd.f32 %v700, %v941
      %v972 = vadd.f32 %v703, %v946
      %v973 = vadd.f32 %v706, %v931
      %v974 = vadd.f32 %v709, %v936
      %v975 = vadd.f32 %v712, %v941
      %v976 = vadd.f32 %v715, %v946
      %v977 = vadd.f32 %v718, %v931
      %v978 = vadd.f32 %v721, %v936
      %v979 = vadd.f32 %v724, %v941
      %v980 = vadd.f32 %v727, %v946
      %v981 = vadd.f32 %v730, %v931
      %v982 = vadd.f32 %v733, %v936
      %v983 = vadd.f32 %v736, %v941
      %v984 = vadd.f32 %v739, %v946
      %v985 = vadd.f32 %v742, %v931
      %v986 = vadd.f32 %v745, %v936
      %v987 = vadd.f32 %v748, %v941
      %v988 = vadd.f32 %v751, %v946
      %v989 = vadd.f32 %v754, %v931
      %v990 = vadd.f32 %v757, %v936
      %v991 = vadd.f32 %v760, %v941
      %v992 = vadd.f32 %v763, %v946
      %v993 = vadd.f32 %v766, %v931
      %v994 = vadd.f32 %v769, %v936
      %v995 = vadd.f32 %v772, %v941
      %v996 = vadd.f32 %v775, %v946
      %v997 = vadd.f32 %v778, %v931
      %v998 = vadd.f32 %v781, %v936
      %v999 = vadd.f32 %v784, %v941
      %v1000 = vadd.f32 %v787, %v946
      %v1001 = vadd.f32 %v790, %v931
      %v1002 = vadd.f32 %v793, %v936
      %v1003 = vadd.f32 %v796, %v941
      %v1004 = vadd.f32 %v799, %v946
      %v1005 = vadd.f32 %v802, %v931
      %v1006 = vadd.f32 %v805, %v936
      %v1007 = vadd.f32 %v808, %v941
      %v1008 = vadd.f32 %v811, %v946
      %v1009 = vadd.f32 %v814, %v931
      %v1010 = vadd.f32 %v817, %v936
      %v1011 = vadd.f32 %v820, %v941
      %v1012 = vadd.f32 %v823, %v946
      %v1013 = vmax.f32 %v949, 0.0
      %v1014 = vmax.f32 %v950, 0.0
      %v1015 = vmax.f32 %v951, 0.0
      %v1016 = vmax.f32 %v952, 0.0
      %v1017 = vmax.f32 %v953, 0.0
      %v1018 = vmax.f32 %v954, 0.0
      %v1019 = vmax.f32 %v955, 0.0
      %v1020 = vmax.f32 %v956, 0.0
      %v1021 = vmax.f32 %v957, 0.0
      %v1022 = vmax.f32 %v958, 0.0
      %v1023 = vmax.f32 %v959, 0.0
      %v1024 = vmax.f32 %v960, 0.0
      %v1025 = vmax.f32 %v961, 0.0
      %v1026 = vmax.f32 %v962, 0.0
      %v1027 = vmax.f32 %v963, 0.0
      %v1028 = vmax.f32 %v964, 0.0
      %v1029 = vmax.f32 %v965, 0.0
      %v1030 = vmax.f32 %v966, 0.0
      %v1031 = vmax.f32 %v967, 0.0
      %v1032 = vmax.f32 %v968, 0.0
      %v1033 = vmax.f32 %v969, 0.0
      %v1034 = vmax.f32 %v970, 0.0
      %v1035 = vmax.f32 %v971, 0.0
      %v1036 = vmax.f32 %v972, 0.0
      %v1037 = vmax.f32 %v973, 0.0
      %v1038 = vmax.f32 %v974, 0.0
      %v1039 = vmax.f32 %v975, 0.0
      %v1040 = vmax.f32 %v976, 0.0
      %v1041 = vmax.f32 %v977, 0.0
      %v1042 = vmax.f32 %v978, 0.0
      %v1043 = vmax.f32 %v979, 0.0
      %v1044 = vmax.f32 %v980, 0.0
      %v1045 = vmax.f32 %v981, 0.0
      %v1046 = vmax.f32 %v982, 0.0
      %v1047 = vmax.f32 %v983, 0.0
      %v1048 = vmax.f32 %v984, 0.0
      %v1049 = vmax.f32 %v985, 0.0
      %v1050 = vmax.f32 %v986, 0.0
      %v1051 = vmax.f32 %v987, 0.0
      %v1052 = vmax.f32 %v988, 0.0
      %v1053 = vmax.f32 %v989, 0.0
      %v1054 = vmax.f32 %v990, 0.0
      %v1055 = vmax.f32 %v991, 0.0
      %v1056 = vmax.f32 %v992, 0.0
      %v1057 = vmax.f32 %v993, 0.0
      %v1058 = vmax.f32 %v994, 0.0
      %v1059 = vmax.f32 %v995, 0.0
      %v1060 = vmax.f32 %v996, 0.0
      %v1061 = vmax.f32 %v997, 0.0
      %v1062 = vmax.f32 %v998, 0.0
      %v1063 = vmax.f32 %v999, 0.0
      %v1064 = vmax.f32 %v1000, 0.0
      %v1065 = vmax.f32 %v1001, 0.0
      %v1066 = vmax.f32 %v1002, 0.0
      %v1067 = vmax.f32 %v1003, 0.0
      %v1068 = vmax.f32 %v1004, 0.0
      %v1069 = vmax.f32 %v1005, 0.0
      %v1070 = vmax.f32 %v1006, 0.0
      %v1071 = vmax.f32 %v1007, 0.0
      %v1072 = vmax.f32 %v1008, 0.0
      %v1073 = vmax.f32 %v1009, 0.0
      %v1074 = vmax.f32 %v1010, 0.0
      %v1075 = vmax.f32 %v1011, 0.0
      %v1076 = vmax.f32 %v1012, 0.0
      %v1077 = vld [vmem:[%s5] sm:$0xff]
      %v1078 = vld [vmem:[%s5 + $0x8] sm:$0xff]
      %v1079 = vld [vmem:[%s5 + $0x10] sm:$0xff]
      %v1080 = vld [vmem:[%s5 + $0x18] sm:$0xff]
      %v1081 = vld [vmem:[%s6] sm:$0xff]
      %v1082 = vld [vmem:[%s6 + $0x8] sm:$0xff]
      %v1083 = vld [vmem:[%s6 + $0x10] sm:$0xff]
      %v1084 = vld [vmem:[%s6 + $0x18] sm:$0xff]
      %1086 = vset.pattern.permute.xlu0 0
      %1087 = vperm.xlu0 %1086, %v1081
      %v1088 = vpop.permute.xlu0 %1087
      %1091 = vset.pattern.permute.xlu0 0
      %1092 = vperm.xlu0 %1091, %v1082
      %v1093 = vpop.permute.xlu0 %1092
      %1096 = vset.pattern.permute.xlu0 0
      %1097 = vperm.xlu0 %1096, %v1083
      %v1098 = vpop.permute.xlu0 %1097
      %1101 = vset.pattern.permute.xlu0 0
      %1102 = vperm.xlu0 %1101, %v1084
      %v1103 = vpop.permute.xlu0 %1102
      %vm1105 = vcmask 261120
      %v1107 = vsel %vm1105, %v1077, 0
      %v1110 = vsel %vm1105, %v1078, 0
      %v1113 = vsel %vm1105, %v1079, 0
      %v1116 = vsel %vm1105, %v1080, 0
      %1118 = vmatprep.subr.mxu0 0.0
      %1119 = vmatpush1.msra.mxu0 %v1013
      %1120 = vmatprep.subr.mxu0 0.0
      %1121 = vmatpush1.msra.mxu0 %v1014
      %1122 = vmatprep.subr.mxu0 0.0
      %1123 = vmatpush1.msra.mxu0 %v1015
      %1124 = vmatprep.subr.mxu0 0.0
      %1125 = vmatpush1.msra.mxu0 %v1016
      %1126 = vmatprep.subr.mxu0 0.0
      %1127 = vmatpush1.msra.mxu0 0.0
      %1128 = vmatprep.subr.mxu0 0.0
      %1129 = vmatpush1.msra.mxu0 0.0
      %1130 = vmatprep.subr.mxu0 0.0
      %1131 = vmatpush1.msra.mxu0 0.0
      %1132 = vmatprep.subr.mxu0 0.0
      %1133 = vmatpush1.msra.mxu0 0.0
      %1134 = vmatprep.subr.mxu0 0.0
      %1135 = vmatpush1.msra.mxu0 0.0
      %1136 = vmatprep.subr.mxu0 0.0
      %1137 = vmatpush1.msra.mxu0 0.0
      %1138 = vmatprep.subr.mxu0 0.0
      %1139 = vmatpush1.msra.mxu0 0.0
      %1140 = vmatprep.subr.mxu0 0.0
      %1141 = vmatpush1.msra.mxu0 0.0
      %1142 = vmatprep.subr.mxu0 0.0
      %1143 = vmatpush1.msra.mxu0 0.0
      %1144 = vmatprep.subr.mxu0 0.0
      %1145 = vmatpush1.msra.mxu0 0.0
      %1146 = vmatprep.subr.mxu0 0.0
      %1147 = vmatpush1.msra.mxu0 0.0
      %1148 = vmatprep.subr.mxu0 0.0
      %1149 = vmatpush1.msra.mxu0 0.0
      %1150 = vmatprep.subr.mxu0 0.0
      %1151 = vmatpush1.msra.mxu0 0.0
      %1152 = vmatprep.subr.mxu0 0.0
      %1153 = vmatpush1.msra.mxu0 0.0
      %1154 = vmatprep.subr.mxu0 0.0
      %1155 = vmatpush1.msra.mxu0 0.0
      %1156 = vmatprep.subr.mxu0 0.0
      %1157 = vmatpush1.msra.mxu0 0.0
      %1158 = vmatprep.subr.mxu0 0.0
      %1159 = vmatpush1.msra.mxu0 0.0
      %1160 = vmatprep.subr.mxu0 0.0
      %1161 = vmatpush1.msra.mxu0 0.0
      %1162 = vmatprep.subr.mxu0 0.0
      %1163 = vmatpush1.msra.mxu0 0.0
      %1164 = vmatprep.subr.mxu0 0.0
      %1165 = vmatpush1.msra.mxu0 0.0
      %1166 = vmatprep.subr.mxu0 0.0
      %1167 = vmatpush1.msra.mxu0 0.0
      %1168 = vmatprep.subr.mxu0 0.0
      %1169 = vmatpush1.msra.mxu0 0.0
      %1170 = vmatprep.subr.mxu0 0.0
      %1171 = vmatpush1.msra.mxu0 0.0
      %1172 = vmatprep.subr.mxu0 0.0
      %1173 = vmatpush1.msra.mxu0 0.0
      %1174 = vmatprep.subr.mxu0 0.0
      %1175 = vmatpush1.msra.mxu0 0.0
      %1176 = vmatprep.subr.mxu0 0.0
      %1177 = vmatpush1.msra.mxu0 0.0
      %1178 = vmatprep.subr.mxu0 0.0
      %1179 = vmatpush1.msra.mxu0 0.0
      %1180 = vmatprep.subr.mxu0 0.0
      %1181 = vmatpush1.msra.mxu0 0.0
      %1182 = vmatprep.mubr.f32.mxu0 0.0
      %1183 = vmatmul.mubr.f32.gmra.mrb[0].mxu0 %v1107
      %v1184 = vpop.f32.mrb[0].mxu0
      %v1185 = vadd.f32 %v1088, %v1184
      %v1186 = vpop.f32.mrb[0].mxu0
      %1187 = vmatprep.mubr.f32.mxu0 0.0
      %1188 = vmatmul.mubr.f32.gmra.mrb[0].mxu0 %v1110
      %v1189 = vpop.f32.mrb[0].mxu0
      %v1190 = vadd.f32 %v1093, %v1189
      %v1191 = vpop.f32.mrb[0].mxu0
      %1192 = vmatprep.mubr.f32.mxu0 0.0
      %1193 = vmatmul.mubr.f32.gmra.mrb[0].mxu0 %v1113
      %v1194 = vpop.f32.mrb[0].mxu0
      %v1195 = vadd.f32 %v1098, %v1194
      %v1196 = vpop.f32.mrb[0].mxu0
      %1197 = vmatprep.mubr.f32.mxu0 0.0
      %1198 = vmatmul.mubr.f32.gmra.mrb[0].mxu0 %v1116
      %v1199 = vpop.f32.mrb[0].mxu0
      %v1200 = vadd.f32 %v1103, %v1199
      %v1201 = vpop.f32.mrb[0].mxu0
      %1202 = vdwg.mxu0
      %1203 = vmatprep.subr.mxu0 0.0
      %1204 = vmatpush1.msra.mxu0 %v1017
      %1205 = vmatprep.subr.mxu0 0.0
      %1206 = vmatpush1.msra.mxu0 %v1018
      %1207 = vmatprep.subr.mxu0 0.0
      %1208 = vmatpush1.msra.mxu0 %v1019
      %1209 = vmatprep.subr.mxu0 0.0
      %1210 = vmatpush1.msra.mxu0 %v1020
      %1211 = vmatprep.subr.mxu0 0.0
      %1212 = vmatpush1.msra.mxu0 0.0
      %1213 = vmatprep.subr.mxu0 0.0
      %1214 = vmatpush1.msra.mxu0 0.0
      %1215 = vmatprep.subr.mxu0 0.0
      %1216 = vmatpush1.msra.mxu0 0.0
      %1217 = vmatprep.subr.mxu0 0.0
      %1218 = vmatpush1.msra.mxu0 0.0
      %1219 = vmatprep.subr.mxu0 0.0
      %1220 = vmatpush1.msra.mxu0 0.0
      %1221 = vmatprep.subr.mxu0 0.0
      %1222 = vmatpush1.msra.mxu0 0.0
      %1223 = vmatprep.subr.mxu0 0.0
      %1224 = vmatpush1.msra.mxu0 0.0
      %1225 = vmatprep.subr.mxu0 0.0
      %1226 = vmatpush1.msra.mxu0 0.0
      %1227 = vmatprep.subr.mxu0 0.0
      %1228 = vmatpush1.msra.mxu0 0.0
      %1229 = vmatprep.subr.mxu0 0.0
      %1230 = vmatpush1.msra.mxu0 0.0
      %1231 = vmatprep.subr.mxu0 0.0
      %1232 = vmatpush1.msra.mxu0 0.0
      %1233 = vmatprep.subr.mxu0 0.0
      %1234 = vmatpush1.msra.mxu0 0.0
      %1235 = vmatprep.subr.mxu0 0.0
      %1236 = vmatpush1.msra.mxu0 0.0
      %1237 = vmatprep.subr.mxu0 0.0
      %1238 = vmatpush1.msra.mxu0 0.0
      %1239 = vmatprep.subr.mxu0 0.0
      %1240 = vmatpush1.msra.mxu0 0.0
      %1241 = vmatprep.subr.mxu0 0.0
      %1242 = vmatpush1.msra.mxu0 0.0
      %1243 = vmatprep.subr.mxu0 0.0
      %1244 = vmatpush1.msra.mxu0 0.0
      %1245 = vmatprep.subr.mxu0 0.0
      %1246 = vmatpush1.msra.mxu0 0.0
      %1247 = vmatprep.subr.mxu0 0.0
      %1248 = vmatpush1.msra.mxu0 0.0
      %1249 = vmatprep.subr.mxu0 0.0
      %1250 = vmatpush1.msra.mxu0 0.0
      %1251 = vmatprep.subr.mxu0 0.0
      %1252 = vmatpush1.msra.mxu0 0.0
      %1253 = vmatprep.subr.mxu0 0.0
      %1254 = vmatpush1.msra.mxu0 0.0
      %1255 = vmatprep.subr.mxu0 0.0
      %1256 = vmatpush1.msra.mxu0 0.0
      %1257 = vmatprep.subr.mxu0 0.0
      %1258 = vmatpush1.msra.mxu0 0.0
      %1259 = vmatprep.subr.mxu0 0.0
      %1260 = vmatpush1.msra.mxu0 0.0
      %1261 = vmatprep.subr.mxu0 0.0
      %1262 = vmatpush1.msra.mxu0 0.0
      %1263 = vmatprep.subr.mxu0 0.0
      %1264 = vmatpush1.msra.mxu0 0.0
      %1265 = vmatprep.subr.mxu0 0.0
      %1266 = vmatpush1.msra.mxu0 0.0
      %1267 = vmatprep.mubr.f32.mxu0 0.0
      %1268 = vmatmul.mubr.f32.gmra.mrb[0].mxu0 %v1107
      %v1269 = vpop.f32.mrb[0].mxu0
      %v1270 = vadd.f32 %v1088, %v1269
      %v1271 = vpop.f32.mrb[0].mxu0
      %1272 = vmatprep.mubr.f32.mxu0 0.0
      %1273 = vmatmul.mubr.f32.gmra.mrb[0].mxu0 %v1110
      %v1274 = vpop.f32.mrb[0].mxu0
      %v1275 = vadd.f32 %v1093, %v1274
      %v1276 = vpop.f32.mrb[0].mxu0
      %1277 = vmatprep.mubr.f32.mxu0 0.0
      %1278 = vmatmul.mubr.f32.gmra.mrb[0].mxu0 %v1113
      %v1279 = vpop.f32.mrb[0].mxu0
      %v1280 = vadd.f32 %v1098, %v1279
      %v1281 = vpop.f32.mrb[0].mxu0
      %1282 = vmatprep.mubr.f32.mxu0 0.0
      %1283 = vmatmul.mubr.f32.gmra.mrb[0].mxu0 %v1116
      %v1284 = vpop.f32.mrb[0].mxu0
      %v1285 = vadd.f32 %v1103, %v1284
      %v1286 = vpop.f32.mrb[0].mxu0
      %1287 = vdwg.mxu0
      %1288 = vmatprep.subr.mxu0 0.0
      %1289 = vmatpush1.msra.mxu0 %v1021
      %1290 = vmatprep.subr.mxu0 0.0
      %1291 = vmatpush1.msra.mxu0 %v1022
      %1292 = vmatprep.subr.mxu0 0.0
      %1293 = vmatpush1.msra.mxu0 %v1023
      %1294 = vmatprep.subr.mxu0 0.0
      %1295 = vmatpush1.msra.mxu0 %v1024
      %1296 = vmatprep.subr.mxu0 0.0
      %1297 = vmatpush1.msra.mxu0 0.0
      %1298 = vmatprep.subr.mxu0 0.0
      %1299 = vmatpush1.msra.mxu0 0.0
      %1300 = vmatprep.subr.mxu0 0.0
      %1301 = vmatpush1.msra.mxu0 0.0
      %1302 = vmatprep.subr.mxu0 0.0
      %1303 = vmatpush1.msra.mxu0 0.0
      %1304 = vmatprep.subr.mxu0 0.0
      %1305 = vmatpush1.msra.mxu0 0.0
      %1306 = vmatprep.subr.mxu0 0.0
      %1307 = vmatpush1.msra.mxu0 0.0
      %1308 = vmatprep.subr.mxu0 0.0
      %1309 = vmatpush1.msra.mxu0 0.0
      %1310 = vmatprep.subr.mxu0 0.0
      %1311 = vmatpush1.msra.mxu0 0.0
      %1312 = vmatprep.subr.mxu0 0.0
      %1313 = vmatpush1.msra.mxu0 0.0
      %1314 = vmatprep.subr.mxu0 0.0
      %1315 = vmatpush1.msra.mxu0 0.0
      %1316 = vmatprep.subr.mxu0 0.0
      %1317 = vmatpush1.msra.mxu0 0.0
      %1318 = vmatprep.subr.mxu0 0.0
      %1319 = vmatpush1.msra.mxu0 0.0
      %1320 = vmatprep.subr.mxu0 0.0
      %1321 = vmatpush1.msra.mxu0 0.0
      %1322 = vmatprep.subr.mxu0 0.0
      %1323 = vmatpush1.msra.mxu0 0.0
      %1324 = vmatprep.subr.mxu0 0.0
      %1325 = vmatpush1.msra.mxu0 0.0
      %1326 = vmatprep.subr.mxu0 0.0
      %1327 = vmatpush1.msra.mxu0 0.0
      %1328 = vmatprep.subr.mxu0 0.0
      %1329 = vmatpush1.msra.mxu0 0.0
      %1330 = vmatprep.subr.mxu0 0.0
      %1331 = vmatpush1.msra.mxu0 0.0
      %1332 = vmatprep.subr.mxu0 0.0
      %1333 = vmatpush1.msra.mxu0 0.0
      %1334 = vmatprep.subr.mxu0 0.0
      %1335 = vmatpush1.msra.mxu0 0.0
      %1336 = vmatprep.subr.mxu0 0.0
      %1337 = vmatpush1.msra.mxu0 0.0
      %1338 = vmatprep.subr.mxu0 0.0
      %1339 = vmatpush1.msra.mxu0 0.0
      %1340 = vmatprep.subr.mxu0 0.0
      %1341 = vmatpush1.msra.mxu0 0.0
      %1342 = vmatprep.subr.mxu0 0.0
      %1343 = vmatpush1.msra.mxu0 0.0
      %1344 = vmatprep.subr.mxu0 0.0
      %1345 = vmatpush1.msra.mxu0 0.0
      %1346 = vmatprep.subr.mxu0 0.0
      %1347 = vmatpush1.msra.mxu0 0.0
      %1348 = vmatprep.subr.mxu0 0.0
      %1349 = vmatpush1.msra.mxu0 0.0
      %1350 = vmatprep.subr.mxu0 0.0
      %1351 = vmatpush1.msra.mxu0 0.0
      %1352 = vmatprep.mubr.f32.mxu0 0.0
      %1353 = vmatmul.mubr.f32.gmra.mrb[0].mxu0 %v1107
      %v1354 = vpop.f32.mrb[0].mxu0
      %v1355 = vadd.f32 %v1088, %v1354
      %v1356 = vpop.f32.mrb[0].mxu0
      %1357 = vmatprep.mubr.f32.mxu0 0.0
      %1358 = vmatmul.mubr.f32.gmra.mrb[0].mxu0 %v1110
      %v1359 = vpop.f32.mrb[0].mxu0
      %v1360 = vadd.f32 %v1093, %v1359
      %v1361 = vpop.f32.mrb[0].mxu0
      %1362 = vmatprep.mubr.f32.mxu0 0.0
      %1363 = vmatmul.mubr.f32.gmra.mrb[0].mxu0 %v1113
      %v1364 = vpop.f32.mrb[0].mxu0
      %v1365 = vadd.f32 %v1098, %v1364
      %v1366 = vpop.f32.mrb[0].mxu0
      %1367 = vmatprep.mubr.f32.mxu0 0.0
      %1368 = vmatmul.mubr.f32.gmra.mrb[0].mxu0 %v1116
      %v1369 = vpop.f32.mrb[0].mxu0
      %v1370 = vadd.f32 %v1103, %v1369
      %v1371 = vpop.f32.mrb[0].mxu0
      %1372 = vdwg.mxu0
      %1373 = vmatprep.subr.mxu0 0.0
      %1374 = vmatpush1.msra.mxu0 %v1025
      %1375 = vmatprep.subr.mxu0 0.0
      %1376 = vmatpush1.msra.mxu0 %v1026
      %1377 = vmatprep.subr.mxu0 0.0
      %1378 = vmatpush1.msra.mxu0 %v1027
      %1379 = vmatprep.subr.mxu0 0.0
      %1380 = vmatpush1.msra.mxu0 %v1028
      %1381 = vmatprep.subr.mxu0 0.0
      %1382 = vmatpush1.msra.mxu0 0.0
      %1383 = vmatprep.subr.mxu0 0.0
      %1384 = vmatpush1.msra.mxu0 0.0
      %1385 = vmatprep.subr.mxu0 0.0
      %1386 = vmatpush1.msra.mxu0 0.0
      %1387 = vmatprep.subr.mxu0 0.0
      %1388 = vmatpush1.msra.mxu0 0.0
      %1389 = vmatprep.subr.mxu0 0.0
      %1390 = vmatpush1.msra.mxu0 0.0
      %1391 = vmatprep.subr.mxu0 0.0
      %1392 = vmatpush1.msra.mxu0 0.0
      %1393 = vmatprep.subr.mxu0 0.0
      %1394 = vmatpush1.msra.mxu0 0.0
      %1395 = vmatprep.subr.mxu0 0.0
      %1396 = vmatpush1.msra.mxu0 0.0
      %1397 = vmatprep.subr.mxu0 0.0
      %1398 = vmatpush1.msra.mxu0 0.0
      %1399 = vmatprep.subr.mxu0 0.0
      %1400 = vmatpush1.msra.mxu0 0.0
      %1401 = vmatprep.subr.mxu0 0.0
      %1402 = vmatpush1.msra.mxu0 0.0
      %1403 = vmatprep.subr.mxu0 0.0
      %1404 = vmatpush1.msra.mxu0 0.0
      %1405 = vmatprep.subr.mxu0 0.0
      %1406 = vmatpush1.msra.mxu0 0.0
      %1407 = vmatprep.subr.mxu0 0.0
      %1408 = vmatpush1.msra.mxu0 0.0
      %1409 = vmatprep.subr.mxu0 0.0
      %1410 = vmatpush1.msra.mxu0 0.0
      %1411 = vmatprep.subr.mxu0 0.0
      %1412 = vmatpush1.msra.mxu0 0.0
      %1413 = vmatprep.subr.mxu0 0.0
      %1414 = vmatpush1.msra.mxu0 0.0
      %1415 = vmatprep.subr.mxu0 0.0
      %1416 = vmatpush1.msra.mxu0 0.0
      %1417 = vmatprep.subr.mxu0 0.0
      %1418 = vmatpush1.msra.mxu0 0.0
      %1419 = vmatprep.subr.mxu0 0.0
      %1420 = vmatpush1.msra.mxu0 0.0
      %1421 = vmatprep.subr.mxu0 0.0
      %1422 = vmatpush1.msra.mxu0 0.0
      %1423 = vmatprep.subr.mxu0 0.0
      %1424 = vmatpush1.msra.mxu0 0.0
      %1425 = vmatprep.subr.mxu0 0.0
      %1426 = vmatpush1.msra.mxu0 0.0
      %1427 = vmatprep.subr.mxu0 0.0
      %1428 = vmatpush1.msra.mxu0 0.0
      %1429 = vmatprep.subr.mxu0 0.0
      %1430 = vmatpush1.msra.mxu0 0.0
      %1431 = vmatprep.subr.mxu0 0.0
      %1432 = vmatpush1.msra.mxu0 0.0
      %1433 = vmatprep.subr.mxu0 0.0
      %1434 = vmatpush1.msra.mxu0 0.0
      %1435 = vmatprep.subr.mxu0 0.0
      %1436 = vmatpush1.msra.mxu0 0.0
      %1437 = vmatprep.mubr.f32.mxu0 0.0
      %1438 = vmatmul.mubr.f32.gmra.mrb[0].mxu0 %v1107
      %v1439 = vpop.f32.mrb[0].mxu0
      %v1440 = vadd.f32 %v1088, %v1439
      %v1441 = vpop.f32.mrb[0].mxu0
      %1442 = vmatprep.mubr.f32.mxu0 0.0
      %1443 = vmatmul.mubr.f32.gmra.mrb[0].mxu0 %v1110
      %v1444 = vpop.f32.mrb[0].mxu0
      %v1445 = vadd.f32 %v1093, %v1444
      %v1446 = vpop.f32.mrb[0].mxu0
      %1447 = vmatprep.mubr.f32.mxu0 0.0
      %1448 = vmatmul.mubr.f32.gmra.mrb[0].mxu0 %v1113
      %v1449 = vpop.f32.mrb[0].mxu0
      %v1450 = vadd.f32 %v1098, %v1449
      %v1451 = vpop.f32.mrb[0].mxu0
      %1452 = vmatprep.mubr.f32.mxu0 0.0
      %1453 = vmatmul.mubr.f32.gmra.mrb[0].mxu0 %v1116
      %v1454 = vpop.f32.mrb[0].mxu0
      %v1455 = vadd.f32 %v1103, %v1454
      %v1456 = vpop.f32.mrb[0].mxu0
      %1457 = vdwg.mxu0
      %1458 = vmatprep.subr.mxu0 0.0
      %1459 = vmatpush1.msra.mxu0 %v1029
      %1460 = vmatprep.subr.mxu0 0.0
      %1461 = vmatpush1.msra.mxu0 %v1030
      %1462 = vmatprep.subr.mxu0 0.0
      %1463 = vmatpush1.msra.mxu0 %v1031
      %1464 = vmatprep.subr.mxu0 0.0
      %1465 = vmatpush1.msra.mxu0 %v1032
      %1466 = vmatprep.subr.mxu0 0.0
      %1467 = vmatpush1.msra.mxu0 0.0
      %1468 = vmatprep.subr.mxu0 0.0
      %1469 = vmatpush1.msra.mxu0 0.0
      %1470 = vmatprep.subr.mxu0 0.0
      %1471 = vmatpush1.msra.mxu0 0.0
      %1472 = vmatprep.subr.mxu0 0.0
      %1473 = vmatpush1.msra.mxu0 0.0
      %1474 = vmatprep.subr.mxu0 0.0
      %1475 = vmatpush1.msra.mxu0 0.0
      %1476 = vmatprep.subr.mxu0 0.0
      %1477 = vmatpush1.msra.mxu0 0.0
      %1478 = vmatprep.subr.mxu0 0.0
      %1479 = vmatpush1.msra.mxu0 0.0
      %1480 = vmatprep.subr.mxu0 0.0
      %1481 = vmatpush1.msra.mxu0 0.0
      %1482 = vmatprep.subr.mxu0 0.0
      %1483 = vmatpush1.msra.mxu0 0.0
      %1484 = vmatprep.subr.mxu0 0.0
      %1485 = vmatpush1.msra.mxu0 0.0
      %1486 = vmatprep.subr.mxu0 0.0
      %1487 = vmatpush1.msra.mxu0 0.0
      %1488 = vmatprep.subr.mxu0 0.0
      %1489 = vmatpush1.msra.mxu0 0.0
      %1490 = vmatprep.subr.mxu0 0.0
      %1491 = vmatpush1.msra.mxu0 0.0
      %1492 = vmatprep.subr.mxu0 0.0
      %1493 = vmatpush1.msra.mxu0 0.0
      %1494 = vmatprep.subr.mxu0 0.0
      %1495 = vmatpush1.msra.mxu0 0.0
      %1496 = vmatprep.subr.mxu0 0.0
      %1497 = vmatpush1.msra.mxu0 0.0
      %1498 = vmatprep.subr.mxu0 0.0
      %1499 = vmatpush1.msra.mxu0 0.0
      %1500 = vmatprep.subr.mxu0 0.0
      %1501 = vmatpush1.msra.mxu0 0.0
      %1502 = vmatprep.subr.mxu0 0.0
      %1503 = vmatpush1.msra.mxu0 0.0
      %1504 = vmatprep.subr.mxu0 0.0
      %1505 = vmatpush1.msra.mxu0 0.0
      %1506 = vmatprep.subr.mxu0 0.0
      %1507 = vmatpush1.msra.mxu0 0.0
      %1508 = vmatprep.subr.mxu0 0.0
      %1509 = vmatpush1.msra.mxu0 0.0
      %1510 = vmatprep.subr.mxu0 0.0
      %1511 = vmatpush1.msra.mxu0 0.0
      %1512 = vmatprep.subr.mxu0 0.0
      %1513 = vmatpush1.msra.mxu0 0.0
      %1514 = vmatprep.subr.mxu0 0.0
      %1515 = vmatpush1.msra.mxu0 0.0
      %1516 = vmatprep.subr.mxu0 0.0
      %1517 = vmatpush1.msra.mxu0 0.0
      %1518 = vmatprep.subr.mxu0 0.0
      %1519 = vmatpush1.msra.mxu0 0.0
      %1520 = vmatprep.subr.mxu0 0.0
      %1521 = vmatpush1.msra.mxu0 0.0
      %1522 = vmatprep.mubr.f32.mxu0 0.0
      %1523 = vmatmul.mubr.f32.gmra.mrb[0].mxu0 %v1107
      %v1524 = vpop.f32.mrb[0].mxu0
      %v1525 = vadd.f32 %v1088, %v1524
      %v1526 = vpop.f32.mrb[0].mxu0
      %1527 = vmatprep.mubr.f32.mxu0 0.0
      %1528 = vmatmul.mubr.f32.gmra.mrb[0].mxu0 %v1110
      %v1529 = vpop.f32.mrb[0].mxu0
      %v1530 = vadd.f32 %v1093, %v1529
      %v1531 = vpop.f32.mrb[0].mxu0
      %1532 = vmatprep.mubr.f32.mxu0 0.0
      %1533 = vmatmul.mubr.f32.gmra.mrb[0].mxu0 %v1113
      %v1534 = vpop.f32.mrb[0].mxu0
      %v1535 = vadd.f32 %v1098, %v1534
      %v1536 = vpop.f32.mrb[0].mxu0
      %1537 = vmatprep.mubr.f32.mxu0 0.0
      %1538 = vmatmul.mubr.f32.gmra.mrb[0].mxu0 %v1116
      %v1539 = vpop.f32.mrb[0].mxu0
      %v1540 = vadd.f32 %v1103, %v1539
      %v1541 = vpop.f32.mrb[0].mxu0
      %1542 = vdwg.mxu0
      %1543 = vmatprep.subr.mxu0 0.0
      %1544 = vmatpush1.msra.mxu0 %v1033
      %1545 = vmatprep.subr.mxu0 0.0
      %1546 = vmatpush1.msra.mxu0 %v1034
      %1547 = vmatprep.subr.mxu0 0.0
      %1548 = vmatpush1.msra.mxu0 %v1035
      %1549 = vmatprep.subr.mxu0 0.0
      %1550 = vmatpush1.msra.mxu0 %v1036
      %1551 = vmatprep.subr.mxu0 0.0
      %1552 = vmatpush1.msra.mxu0 0.0
      %1553 = vmatprep.subr.mxu0 0.0
      %1554 = vmatpush1.msra.mxu0 0.0
      %1555 = vmatprep.subr.mxu0 0.0
      %1556 = vmatpush1.msra.mxu0 0.0
      %1557 = vmatprep.subr.mxu0 0.0
      %1558 = vmatpush1.msra.mxu0 0.0
      %1559 = vmatprep.subr.mxu0 0.0
      %1560 = vmatpush1.msra.mxu0 0.0
      %1561 = vmatprep.subr.mxu0 0.0
      %1562 = vmatpush1.msra.mxu0 0.0
      %1563 = vmatprep.subr.mxu0 0.0
      %1564 = vmatpush1.msra.mxu0 0.0
      %1565 = vmatprep.subr.mxu0 0.0
      %1566 = vmatpush1.msra.mxu0 0.0
      %1567 = vmatprep.subr.mxu0 0.0
      %1568 = vmatpush1.msra.mxu0 0.0
      %1569 = vmatprep.subr.mxu0 0.0
      %1570 = vmatpush1.msra.mxu0 0.0
      %1571 = vmatprep.subr.mxu0 0.0
      %1572 = vmatpush1.msra.mxu0 0.0
      %1573 = vmatprep.subr.mxu0 0.0
      %1574 = vmatpush1.msra.mxu0 0.0
      %1575 = vmatprep.subr.mxu0 0.0
      %1576 = vmatpush1.msra.mxu0 0.0
      %1577 = vmatprep.subr.mxu0 0.0
      %1578 = vmatpush1.msra.mxu0 0.0
      %1579 = vmatprep.subr.mxu0 0.0
      %1580 = vmatpush1.msra.mxu0 0.0
      %1581 = vmatprep.subr.mxu0 0.0
      %1582 = vmatpush1.msra.mxu0 0.0
      %1583 = vmatprep.subr.mxu0 0.0
      %1584 = vmatpush1.msra.mxu0 0.0
      %1585 = vmatprep.subr.mxu0 0.0
      %1586 = vmatpush1.msra.mxu0 0.0
      %1587 = vmatprep.subr.mxu0 0.0
      %1588 = vmatpush1.msra.mxu0 0.0
      %1589 = vmatprep.subr.mxu0 0.0
      %1590 = vmatpush1.msra.mxu0 0.0
      %1591 = vmatprep.subr.mxu0 0.0
      %1592 = vmatpush1.msra.mxu0 0.0
      %1593 = vmatprep.subr.mxu0 0.0
      %1594 = vmatpush1.msra.mxu0 0.0
      %1595 = vmatprep.subr.mxu0 0.0
      %1596 = vmatpush1.msra.mxu0 0.0
      %1597 = vmatprep.subr.mxu0 0.0
      %1598 = vmatpush1.msra.mxu0 0.0
      %1599 = vmatprep.subr.mxu0 0.0
      %1600 = vmatpush1.msra.mxu0 0.0
      %1601 = vmatprep.subr.mxu0 0.0
      %1602 = vmatpush1.msra.mxu0 0.0
      %1603 = vmatprep.subr.mxu0 0.0
      %1604 = vmatpush1.msra.mxu0 0.0
      %1605 = vmatprep.subr.mxu0 0.0
      %1606 = vmatpush1.msra.mxu0 0.0
      %1607 = vmatprep.mubr.f32.mxu0 0.0
      %1608 = vmatmul.mubr.f32.gmra.mrb[0].mxu0 %v1107
      %v1609 = vpop.f32.mrb[0].mxu0
      %v1610 = vadd.f32 %v1088, %v1609
      %v1611 = vpop.f32.mrb[0].mxu0
      %1612 = vmatprep.mubr.f32.mxu0 0.0
      %1613 = vmatmul.mubr.f32.gmra.mrb[0].mxu0 %v1110
      %v1614 = vpop.f32.mrb[0].mxu0
      %v1615 = vadd.f32 %v1093, %v1614
      %v1616 = vpop.f32.mrb[0].mxu0
      %1617 = vmatprep.mubr.f32.mxu0 0.0
      %1618 = vmatmul.mubr.f32.gmra.mrb[0].mxu0 %v1113
      %v1619 = vpop.f32.mrb[0].mxu0
      %v1620 = vadd.f32 %v1098, %v1619
      %v1621 = vpop.f32.mrb[0].mxu0
      %1622 = vmatprep.mubr.f32.mxu0 0.0
      %1623 = vmatmul.mubr.f32.gmra.mrb[0].mxu0 %v1116
      %v1624 = vpop.f32.mrb[0].mxu0
      %v1625 = vadd.f32 %v1103, %v1624
      %v1626 = vpop.f32.mrb[0].mxu0
      %1627 = vdwg.mxu0
      %1628 = vmatprep.subr.mxu0 0.0
      %1629 = vmatpush1.msra.mxu0 %v1037
      %1630 = vmatprep.subr.mxu0 0.0
      %1631 = vmatpush1.msra.mxu0 %v1038
      %1632 = vmatprep.subr.mxu0 0.0
      %1633 = vmatpush1.msra.mxu0 %v1039
      %1634 = vmatprep.subr.mxu0 0.0
      %1635 = vmatpush1.msra.mxu0 %v1040
      %1636 = vmatprep.subr.mxu0 0.0
      %1637 = vmatpush1.msra.mxu0 0.0
      %1638 = vmatprep.subr.mxu0 0.0
      %1639 = vmatpush1.msra.mxu0 0.0
      %1640 = vmatprep.subr.mxu0 0.0
      %1641 = vmatpush1.msra.mxu0 0.0
      %1642 = vmatprep.subr.mxu0 0.0
      %1643 = vmatpush1.msra.mxu0 0.0
      %1644 = vmatprep.subr.mxu0 0.0
      %1645 = vmatpush1.msra.mxu0 0.0
      %1646 = vmatprep.subr.mxu0 0.0
      %1647 = vmatpush1.msra.mxu0 0.0
      %1648 = vmatprep.subr.mxu0 0.0
      %1649 = vmatpush1.msra.mxu0 0.0
      %1650 = vmatprep.subr.mxu0 0.0
      %1651 = vmatpush1.msra.mxu0 0.0
      %1652 = vmatprep.subr.mxu0 0.0
      %1653 = vmatpush1.msra.mxu0 0.0
      %1654 = vmatprep.subr.mxu0 0.0
      %1655 = vmatpush1.msra.mxu0 0.0
      %1656 = vmatprep.subr.mxu0 0.0
      %1657 = vmatpush1.msra.mxu0 0.0
      %1658 = vmatprep.subr.mxu0 0.0
      %1659 = vmatpush1.msra.mxu0 0.0
      %1660 = vmatprep.subr.mxu0 0.0
      %1661 = vmatpush1.msra.mxu0 0.0
      %1662 = vmatprep.subr.mxu0 0.0
      %1663 = vmatpush1.msra.mxu0 0.0
      %1664 = vmatprep.subr.mxu0 0.0
      %1665 = vmatpush1.msra.mxu0 0.0
      %1666 = vmatprep.subr.mxu0 0.0
      %1667 = vmatpush1.msra.mxu0 0.0
      %1668 = vmatprep.subr.mxu0 0.0
      %1669 = vmatpush1.msra.mxu0 0.0
      %1670 = vmatprep.subr.mxu0 0.0
      %1671 = vmatpush1.msra.mxu0 0.0
      %1672 = vmatprep.subr.mxu0 0.0
      %1673 = vmatpush1.msra.mxu0 0.0
      %1674 = vmatprep.subr.mxu0 0.0
      %1675 = vmatpush1.msra.mxu0 0.0
      %1676 = vmatprep.subr.mxu0 0.0
      %1677 = vmatpush1.msra.mxu0 0.0
      %1678 = vmatprep.subr.mxu0 0.0
      %1679 = vmatpush1.msra.mxu0 0.0
      %1680 = vmatprep.subr.mxu0 0.0
      %1681 = vmatpush1.msra.mxu0 0.0
      %1682 = vmatprep.subr.mxu0 0.0
      %1683 = vmatpush1.msra.mxu0 0.0
      %1684 = vmatprep.subr.mxu0 0.0
      %1685 = vmatpush1.msra.mxu0 0.0
      %1686 = vmatprep.subr.mxu0 0.0
      %1687 = vmatpush1.msra.mxu0 0.0
      %1688 = vmatprep.subr.mxu0 0.0
      %1689 = vmatpush1.msra.mxu0 0.0
      %1690 = vmatprep.subr.mxu0 0.0
      %1691 = vmatpush1.msra.mxu0 0.0
      %1692 = vmatprep.mubr.f32.mxu0 0.0
      %1693 = vmatmul.mubr.f32.gmra.mrb[0].mxu0 %v1107
      %v1694 = vpop.f32.mrb[0].mxu0
      %v1695 = vadd.f32 %v1088, %v1694
      %v1696 = vpop.f32.mrb[0].mxu0
      %1697 = vmatprep.mubr.f32.mxu0 0.0
      %1698 = vmatmul.mubr.f32.gmra.mrb[0].mxu0 %v1110
      %v1699 = vpop.f32.mrb[0].mxu0
      %v1700 = vadd.f32 %v1093, %v1699
      %v1701 = vpop.f32.mrb[0].mxu0
      %1702 = vmatprep.mubr.f32.mxu0 0.0
      %1703 = vmatmul.mubr.f32.gmra.mrb[0].mxu0 %v1113
      %v1704 = vpop.f32.mrb[0].mxu0
      %v1705 = vadd.f32 %v1098, %v1704
      %v1706 = vpop.f32.mrb[0].mxu0
      %1707 = vmatprep.mubr.f32.mxu0 0.0
      %1708 = vmatmul.mubr.f32.gmra.mrb[0].mxu0 %v1116
      %v1709 = vpop.f32.mrb[0].mxu0
      %v1710 = vadd.f32 %v1103, %v1709
      %v1711 = vpop.f32.mrb[0].mxu0
      %1712 = vdwg.mxu0
      %1713 = vmatprep.subr.mxu0 0.0
      %1714 = vmatpush1.msra.mxu0 %v1041
      %1715 = vmatprep.subr.mxu0 0.0
      %1716 = vmatpush1.msra.mxu0 %v1042
      %1717 = vmatprep.subr.mxu0 0.0
      %1718 = vmatpush1.msra.mxu0 %v1043
      %1719 = vmatprep.subr.mxu0 0.0
      %1720 = vmatpush1.msra.mxu0 %v1044
      %1721 = vmatprep.subr.mxu0 0.0
      %1722 = vmatpush1.msra.mxu0 0.0
      %1723 = vmatprep.subr.mxu0 0.0
      %1724 = vmatpush1.msra.mxu0 0.0
      %1725 = vmatprep.subr.mxu0 0.0
      %1726 = vmatpush1.msra.mxu0 0.0
      %1727 = vmatprep.subr.mxu0 0.0
      %1728 = vmatpush1.msra.mxu0 0.0
      %1729 = vmatprep.subr.mxu0 0.0
      %1730 = vmatpush1.msra.mxu0 0.0
      %1731 = vmatprep.subr.mxu0 0.0
      %1732 = vmatpush1.msra.mxu0 0.0
      %1733 = vmatprep.subr.mxu0 0.0
      %1734 = vmatpush1.msra.mxu0 0.0
      %1735 = vmatprep.subr.mxu0 0.0
      %1736 = vmatpush1.msra.mxu0 0.0
      %1737 = vmatprep.subr.mxu0 0.0
      %1738 = vmatpush1.msra.mxu0 0.0
      %1739 = vmatprep.subr.mxu0 0.0
      %1740 = vmatpush1.msra.mxu0 0.0
      %1741 = vmatprep.subr.mxu0 0.0
      %1742 = vmatpush1.msra.mxu0 0.0
      %1743 = vmatprep.subr.mxu0 0.0
      %1744 = vmatpush1.msra.mxu0 0.0
      %1745 = vmatprep.subr.mxu0 0.0
      %1746 = vmatpush1.msra.mxu0 0.0
      %1747 = vmatprep.subr.mxu0 0.0
      %1748 = vmatpush1.msra.mxu0 0.0
      %1749 = vmatprep.subr.mxu0 0.0
      %1750 = vmatpush1.msra.mxu0 0.0
      %1751 = vmatprep.subr.mxu0 0.0
      %1752 = vmatpush1.msra.mxu0 0.0
      %1753 = vmatprep.subr.mxu0 0.0
      %1754 = vmatpush1.msra.mxu0 0.0
      %1755 = vmatprep.subr.mxu0 0.0
      %1756 = vmatpush1.msra.mxu0 0.0
      %1757 = vmatprep.subr.mxu0 0.0
      %1758 = vmatpush1.msra.mxu0 0.0
      %1759 = vmatprep.subr.mxu0 0.0
      %1760 = vmatpush1.msra.mxu0 0.0
      %1761 = vmatprep.subr.mxu0 0.0
      %1762 = vmatpush1.msra.mxu0 0.0
      %1763 = vmatprep.subr.mxu0 0.0
      %1764 = vmatpush1.msra.mxu0 0.0
      %1765 = vmatprep.subr.mxu0 0.0
      %1766 = vmatpush1.msra.mxu0 0.0
      %1767 = vmatprep.subr.mxu0 0.0
      %1768 = vmatpush1.msra.mxu0 0.0
      %1769 = vmatprep.subr.mxu0 0.0
      %1770 = vmatpush1.msra.mxu0 0.0
      %1771 = vmatprep.subr.mxu0 0.0
      %1772 = vmatpush1.msra.mxu0 0.0
      %1773 = vmatprep.subr.mxu0 0.0
      %1774 = vmatpush1.msra.mxu0 0.0
      %1775 = vmatprep.subr.mxu0 0.0
      %1776 = vmatpush1.msra.mxu0 0.0
      %1777 = vmatprep.mubr.f32.mxu0 0.0
      %1778 = vmatmul.mubr.f32.gmra.mrb[0].mxu0 %v1107
      %v1779 = vpop.f32.mrb[0].mxu0
      %v1780 = vadd.f32 %v1088, %v1779
      %v1781 = vpop.f32.mrb[0].mxu0
      %1782 = vmatprep.mubr.f32.mxu0 0.0
      %1783 = vmatmul.mubr.f32.gmra.mrb[0].mxu0 %v1110
      %v1784 = vpop.f32.mrb[0].mxu0
      %v1785 = vadd.f32 %v1093, %v1784
      %v1786 = vpop.f32.mrb[0].mxu0
      %1787 = vmatprep.mubr.f32.mxu0 0.0
      %1788 = vmatmul.mubr.f32.gmra.mrb[0].mxu0 %v1113
      %v1789 = vpop.f32.mrb[0].mxu0
      %v1790 = vadd.f32 %v1098, %v1789
      %v1791 = vpop.f32.mrb[0].mxu0
      %1792 = vmatprep.mubr.f32.mxu0 0.0
      %1793 = vmatmul.mubr.f32.gmra.mrb[0].mxu0 %v1116
      %v1794 = vpop.f32.mrb[0].mxu0
      %v1795 = vadd.f32 %v1103, %v1794
      %v1796 = vpop.f32.mrb[0].mxu0
      %1797 = vdwg.mxu0
      %1798 = vmatprep.subr.mxu0 0.0
      %1799 = vmatpush1.msra.mxu0 %v1045
      %1800 = vmatprep.subr.mxu0 0.0
      %1801 = vmatpush1.msra.mxu0 %v1046
      %1802 = vmatprep.subr.mxu0 0.0
      %1803 = vmatpush1.msra.mxu0 %v1047
      %1804 = vmatprep.subr.mxu0 0.0
      %1805 = vmatpush1.msra.mxu0 %v1048
      %1806 = vmatprep.subr.mxu0 0.0
      %1807 = vmatpush1.msra.mxu0 0.0
      %1808 = vmatprep.subr.mxu0 0.0
      %1809 = vmatpush1.msra.mxu0 0.0
      %1810 = vmatprep.subr.mxu0 0.0
      %1811 = vmatpush1.msra.mxu0 0.0
      %1812 = vmatprep.subr.mxu0 0.0
      %1813 = vmatpush1.msra.mxu0 0.0
      %1814 = vmatprep.subr.mxu0 0.0
      %1815 = vmatpush1.msra.mxu0 0.0
      %1816 = vmatprep.subr.mxu0 0.0
      %1817 = vmatpush1.msra.mxu0 0.0
      %1818 = vmatprep.subr.mxu0 0.0
      %1819 = vmatpush1.msra.mxu0 0.0
      %1820 = vmatprep.subr.mxu0 0.0
      %1821 = vmatpush1.msra.mxu0 0.0
      %1822 = vmatprep.subr.mxu0 0.0
      %1823 = vmatpush1.msra.mxu0 0.0
      %1824 = vmatprep.subr.mxu0 0.0
      %1825 = vmatpush1.msra.mxu0 0.0
      %1826 = vmatprep.subr.mxu0 0.0
      %1827 = vmatpush1.msra.mxu0 0.0
      %1828 = vmatprep.subr.mxu0 0.0
      %1829 = vmatpush1.msra.mxu0 0.0
      %1830 = vmatprep.subr.mxu0 0.0
      %1831 = vmatpush1.msra.mxu0 0.0
      %1832 = vmatprep.subr.mxu0 0.0
      %1833 = vmatpush1.msra.mxu0 0.0
      %1834 = vmatprep.subr.mxu0 0.0
      %1835 = vmatpush1.msra.mxu0 0.0
      %1836 = vmatprep.subr.mxu0 0.0
      %1837 = vmatpush1.msra.mxu0 0.0
      %1838 = vmatprep.subr.mxu0 0.0
      %1839 = vmatpush1.msra.mxu0 0.0
      %1840 = vmatprep.subr.mxu0 0.0
      %1841 = vmatpush1.msra.mxu0 0.0
      %1842 = vmatprep.subr.mxu0 0.0
      %1843 = vmatpush1.msra.mxu0 0.0
      %1844 = vmatprep.subr.mxu0 0.0
      %1845 = vmatpush1.msra.mxu0 0.0
      %1846 = vmatprep.subr.mxu0 0.0
      %1847 = vmatpush1.msra.mxu0 0.0
      %1848 = vmatprep.subr.mxu0 0.0
      %1849 = vmatpush1.msra.mxu0 0.0
      %1850 = vmatprep.subr.mxu0 0.0
      %1851 = vmatpush1.msra.mxu0 0.0
      %1852 = vmatprep.subr.mxu0 0.0
      %1853 = vmatpush1.msra.mxu0 0.0
      %1854 = vmatprep.subr.mxu0 0.0
      %1855 = vmatpush1.msra.mxu0 0.0
      %1856 = vmatprep.subr.mxu0 0.0
      %1857 = vmatpush1.msra.mxu0 0.0
      %1858 = vmatprep.subr.mxu0 0.0
      %1859 = vmatpush1.msra.mxu0 0.0
      %1860 = vmatprep.subr.mxu0 0.0
      %1861 = vmatpush1.msra.mxu0 0.0
      %1862 = vmatprep.mubr.f32.mxu0 0.0
      %1863 = vmatmul.mubr.f32.gmra.mrb[0].mxu0 %v1107
      %v1864 = vpop.f32.mrb[0].mxu0
      %v1865 = vadd.f32 %v1088, %v1864
      %v1866 = vpop.f32.mrb[0].mxu0
      %1867 = vmatprep.mubr.f32.mxu0 0.0
      %1868 = vmatmul.mubr.f32.gmra.mrb[0].mxu0 %v1110
      %v1869 = vpop.f32.mrb[0].mxu0
      %v1870 = vadd.f32 %v1093, %v1869
      %v1871 = vpop.f32.mrb[0].mxu0
      %1872 = vmatprep.mubr.f32.mxu0 0.0
      %1873 = vmatmul.mubr.f32.gmra.mrb[0].mxu0 %v1113
      %v1874 = vpop.f32.mrb[0].mxu0
      %v1875 = vadd.f32 %v1098, %v1874
      %v1876 = vpop.f32.mrb[0].mxu0
      %1877 = vmatprep.mubr.f32.mxu0 0.0
      %1878 = vmatmul.mubr.f32.gmra.mrb[0].mxu0 %v1116
      %v1879 = vpop.f32.mrb[0].mxu0
      %v1880 = vadd.f32 %v1103, %v1879
      %v1881 = vpop.f32.mrb[0].mxu0
      %1882 = vdwg.mxu0
      %1883 = vmatprep.subr.mxu0 0.0
      %1884 = vmatpush1.msra.mxu0 %v1049
      %1885 = vmatprep.subr.mxu0 0.0
      %1886 = vmatpush1.msra.mxu0 %v1050
      %1887 = vmatprep.subr.mxu0 0.0
      %1888 = vmatpush1.msra.mxu0 %v1051
      %1889 = vmatprep.subr.mxu0 0.0
      %1890 = vmatpush1.msra.mxu0 %v1052
      %1891 = vmatprep.subr.mxu0 0.0
      %1892 = vmatpush1.msra.mxu0 0.0
      %1893 = vmatprep.subr.mxu0 0.0
      %1894 = vmatpush1.msra.mxu0 0.0
      %1895 = vmatprep.subr.mxu0 0.0
      %1896 = vmatpush1.msra.mxu0 0.0
      %1897 = vmatprep.subr.mxu0 0.0
      %1898 = vmatpush1.msra.mxu0 0.0
      %1899 = vmatprep.subr.mxu0 0.0
      %1900 = vmatpush1.msra.mxu0 0.0
      %1901 = vmatprep.subr.mxu0 0.0
      %1902 = vmatpush1.msra.mxu0 0.0
      %1903 = vmatprep.subr.mxu0 0.0
      %1904 = vmatpush1.msra.mxu0 0.0
      %1905 = vmatprep.subr.mxu0 0.0
      %1906 = vmatpush1.msra.mxu0 0.0
      %1907 = vmatprep.subr.mxu0 0.0
      %1908 = vmatpush1.msra.mxu0 0.0
      %1909 = vmatprep.subr.mxu0 0.0
      %1910 = vmatpush1.msra.mxu0 0.0
      %1911 = vmatprep.subr.mxu0 0.0
      %1912 = vmatpush1.msra.mxu0 0.0
      %1913 = vmatprep.subr.mxu0 0.0
      %1914 = vmatpush1.msra.mxu0 0.0
      %1915 = vmatprep.subr.mxu0 0.0
      %1916 = vmatpush1.msra.mxu0 0.0
      %1917 = vmatprep.subr.mxu0 0.0
      %1918 = vmatpush1.msra.mxu0 0.0
      %1919 = vmatprep.subr.mxu0 0.0
      %1920 = vmatpush1.msra.mxu0 0.0
      %1921 = vmatprep.subr.mxu0 0.0
      %1922 = vmatpush1.msra.mxu0 0.0
      %1923 = vmatprep.subr.mxu0 0.0
      %1924 = vmatpush1.msra.mxu0 0.0
      %1925 = vmatprep.subr.mxu0 0.0
      %1926 = vmatpush1.msra.mxu0 0.0
      %1927 = vmatprep.subr.mxu0 0.0
      %1928 = vmatpush1.msra.mxu0 0.0
      %1929 = vmatprep.subr.mxu0 0.0
      %1930 = vmatpush1.msra.mxu0 0.0
      %1931 = vmatprep.subr.mxu0 0.0
      %1932 = vmatpush1.msra.mxu0 0.0
      %1933 = vmatprep.subr.mxu0 0.0
      %1934 = vmatpush1.msra.mxu0 0.0
      %1935 = vmatprep.subr.mxu0 0.0
      %1936 = vmatpush1.msra.mxu0 0.0
      %1937 = vmatprep.subr.mxu0 0.0
      %1938 = vmatpush1.msra.mxu0 0.0
      %1939 = vmatprep.subr.mxu0 0.0
      %1940 = vmatpush1.msra.mxu0 0.0
      %1941 = vmatprep.subr.mxu0 0.0
      %1942 = vmatpush1.msra.mxu0 0.0
      %1943 = vmatprep.subr.mxu0 0.0
      %1944 = vmatpush1.msra.mxu0 0.0
      %1945 = vmatprep.subr.mxu0 0.0
      %1946 = vmatpush1.msra.mxu0 0.0
      %1947 = vmatprep.mubr.f32.mxu0 0.0
      %1948 = vmatmul.mubr.f32.gmra.mrb[0].mxu0 %v1107
      %v1949 = vpop.f32.mrb[0].mxu0
      %v1950 = vadd.f32 %v1088, %v1949
      %v1951 = vpop.f32.mrb[0].mxu0
      %1952 = vmatprep.mubr.f32.mxu0 0.0
      %1953 = vmatmul.mubr.f32.gmra.mrb[0].mxu0 %v1110
      %v1954 = vpop.f32.mrb[0].mxu0
      %v1955 = vadd.f32 %v1093, %v1954
      %v1956 = vpop.f32.mrb[0].mxu0
      %1957 = vmatprep.mubr.f32.mxu0 0.0
      %1958 = vmatmul.mubr.f32.gmra.mrb[0].mxu0 %v1113
      %v1959 = vpop.f32.mrb[0].mxu0
      %v1960 = vadd.f32 %v1098, %v1959
      %v1961 = vpop.f32.mrb[0].mxu0
      %1962 = vmatprep.mubr.f32.mxu0 0.0
      %1963 = vmatmul.mubr.f32.gmra.mrb[0].mxu0 %v1116
      %v1964 = vpop.f32.mrb[0].mxu0
      %v1965 = vadd.f32 %v1103, %v1964
      %v1966 = vpop.f32.mrb[0].mxu0
      %1967 = vdwg.mxu0
      %1968 = vmatprep.subr.mxu0 0.0
      %1969 = vmatpush1.msra.mxu0 %v1053
      %1970 = vmatprep.subr.mxu0 0.0
      %1971 = vmatpush1.msra.mxu0 %v1054
      %1972 = vmatprep.subr.mxu0 0.0
      %1973 = vmatpush1.msra.mxu0 %v1055
      %1974 = vmatprep.subr.mxu0 0.0
      %1975 = vmatpush1.msra.mxu0 %v1056
      %1976 = vmatprep.subr.mxu0 0.0
      %1977 = vmatpush1.msra.mxu0 0.0
      %1978 = vmatprep.subr.mxu0 0.0
      %1979 = vmatpush1.msra.mxu0 0.0
      %1980 = vmatprep.subr.mxu0 0.0
      %1981 = vmatpush1.msra.mxu0 0.0
      %1982 = vmatprep.subr.mxu0 0.0
      %1983 = vmatpush1.msra.mxu0 0.0
      %1984 = vmatprep.subr.mxu0 0.0
      %1985 = vmatpush1.msra.mxu0 0.0
      %1986 = vmatprep.subr.mxu0 0.0
      %1987 = vmatpush1.msra.mxu0 0.0
      %1988 = vmatprep.subr.mxu0 0.0
      %1989 = vmatpush1.msra.mxu0 0.0
      %1990 = vmatprep.subr.mxu0 0.0
      %1991 = vmatpush1.msra.mxu0 0.0
      %1992 = vmatprep.subr.mxu0 0.0
      %1993 = vmatpush1.msra.mxu0 0.0
      %1994 = vmatprep.subr.mxu0 0.0
      %1995 = vmatpush1.msra.mxu0 0.0
      %1996 = vmatprep.subr.mxu0 0.0
      %1997 = vmatpush1.msra.mxu0 0.0
      %1998 = vmatprep.subr.mxu0 0.0
      %1999 = vmatpush1.msra.mxu0 0.0
      %2000 = vmatprep.subr.mxu0 0.0
      %2001 = vmatpush1.msra.mxu0 0.0
      %2002 = vmatprep.subr.mxu0 0.0
      %2003 = vmatpush1.msra.mxu0 0.0
      %2004 = vmatprep.subr.mxu0 0.0
      %2005 = vmatpush1.msra.mxu0 0.0
      %2006 = vmatprep.subr.mxu0 0.0
      %2007 = vmatpush1.msra.mxu0 0.0
      %2008 = vmatprep.subr.mxu0 0.0
      %2009 = vmatpush1.msra.mxu0 0.0
      %2010 = vmatprep.subr.mxu0 0.0
      %2011 = vmatpush1.msra.mxu0 0.0
      %2012 = vmatprep.subr.mxu0 0.0
      %2013 = vmatpush1.msra.mxu0 0.0
      %2014 = vmatprep.subr.mxu0 0.0
      %2015 = vmatpush1.msra.mxu0 0.0
      %2016 = vmatprep.subr.mxu0 0.0
      %2017 = vmatpush1.msra.mxu0 0.0
      %2018 = vmatprep.subr.mxu0 0.0
      %2019 = vmatpush1.msra.mxu0 0.0
      %2020 = vmatprep.subr.mxu0 0.0
      %2021 = vmatpush1.msra.mxu0 0.0
      %2022 = vmatprep.subr.mxu0 0.0
      %2023 = vmatpush1.msra.mxu0 0.0
      %2024 = vmatprep.subr.mxu0 0.0
      %2025 = vmatpush1.msra.mxu0 0.0
      %2026 = vmatprep.subr.mxu0 0.0
      %2027 = vmatpush1.msra.mxu0 0.0
      %2028 = vmatprep.subr.mxu0 0.0
      %2029 = vmatpush1.msra.mxu0 0.0
      %2030 = vmatprep.subr.mxu0 0.0
      %2031 = vmatpush1.msra.mxu0 0.0
      %2032 = vmatprep.mubr.f32.mxu0 0.0
      %2033 = vmatmul.mubr.f32.gmra.mrb[0].mxu0 %v1107
      %v2034 = vpop.f32.mrb[0].mxu0
      %v2035 = vadd.f32 %v1088, %v2034
      %v2036 = vpop.f32.mrb[0].mxu0
      %2037 = vmatprep.mubr.f32.mxu0 0.0
      %2038 = vmatmul.mubr.f32.gmra.mrb[0].mxu0 %v1110
      %v2039 = vpop.f32.mrb[0].mxu0
      %v2040 = vadd.f32 %v1093, %v2039
      %v2041 = vpop.f32.mrb[0].mxu0
      %2042 = vmatprep.mubr.f32.mxu0 0.0
      %2043 = vmatmul.mubr.f32.gmra.mrb[0].mxu0 %v1113
      %v2044 = vpop.f32.mrb[0].mxu0
      %v2045 = vadd.f32 %v1098, %v2044
      %v2046 = vpop.f32.mrb[0].mxu0
      %2047 = vmatprep.mubr.f32.mxu0 0.0
      %2048 = vmatmul.mubr.f32.gmra.mrb[0].mxu0 %v1116
      %v2049 = vpop.f32.mrb[0].mxu0
      %v2050 = vadd.f32 %v1103, %v2049
      %v2051 = vpop.f32.mrb[0].mxu0
      %2052 = vdwg.mxu0
      %2053 = vmatprep.subr.mxu0 0.0
      %2054 = vmatpush1.msra.mxu0 %v1057
      %2055 = vmatprep.subr.mxu0 0.0
      %2056 = vmatpush1.msra.mxu0 %v1058
      %2057 = vmatprep.subr.mxu0 0.0
      %2058 = vmatpush1.msra.mxu0 %v1059
      %2059 = vmatprep.subr.mxu0 0.0
      %2060 = vmatpush1.msra.mxu0 %v1060
      %2061 = vmatprep.subr.mxu0 0.0
      %2062 = vmatpush1.msra.mxu0 0.0
      %2063 = vmatprep.subr.mxu0 0.0
      %2064 = vmatpush1.msra.mxu0 0.0
      %2065 = vmatprep.subr.mxu0 0.0
      %2066 = vmatpush1.msra.mxu0 0.0
      %2067 = vmatprep.subr.mxu0 0.0
      %2068 = vmatpush1.msra.mxu0 0.0
      %2069 = vmatprep.subr.mxu0 0.0
      %2070 = vmatpush1.msra.mxu0 0.0
      %2071 = vmatprep.subr.mxu0 0.0
      %2072 = vmatpush1.msra.mxu0 0.0
      %2073 = vmatprep.subr.mxu0 0.0
      %2074 = vmatpush1.msra.mxu0 0.0
      %2075 = vmatprep.subr.mxu0 0.0
      %2076 = vmatpush1.msra.mxu0 0.0
      %2077 = vmatprep.subr.mxu0 0.0
      %2078 = vmatpush1.msra.mxu0 0.0
      %2079 = vmatprep.subr.mxu0 0.0
      %2080 = vmatpush1.msra.mxu0 0.0
      %2081 = vmatprep.subr.mxu0 0.0
      %2082 = vmatpush1.msra.mxu0 0.0
      %2083 = vmatprep.subr.mxu0 0.0
      %2084 = vmatpush1.msra.mxu0 0.0
      %2085 = vmatprep.subr.mxu0 0.0
      %2086 = vmatpush1.msra.mxu0 0.0
      %2087 = vmatprep.subr.mxu0 0.0
      %2088 = vmatpush1.msra.mxu0 0.0
      %2089 = vmatprep.subr.mxu0 0.0
      %2090 = vmatpush1.msra.mxu0 0.0
      %2091 = vmatprep.subr.mxu0 0.0
      %2092 = vmatpush1.msra.mxu0 0.0
      %2093 = vmatprep.subr.mxu0 0.0
      %2094 = vmatpush1.msra.mxu0 0.0
      %2095 = vmatprep.subr.mxu0 0.0
      %2096 = vmatpush1.msra.mxu0 0.0
      %2097 = vmatprep.subr.mxu0 0.0
      %2098 = vmatpush1.msra.mxu0 0.0
      %2099 = vmatprep.subr.mxu0 0.0
      %2100 = vmatpush1.msra.mxu0 0.0
      %2101 = vmatprep.subr.mxu0 0.0
      %2102 = vmatpush1.msra.mxu0 0.0
      %2103 = vmatprep.subr.mxu0 0.0
      %2104 = vmatpush1.msra.mxu0 0.0
      %2105 = vmatprep.subr.mxu0 0.0
      %2106 = vmatpush1.msra.mxu0 0.0
      %2107 = vmatprep.subr.mxu0 0.0
      %2108 = vmatpush1.msra.mxu0 0.0
      %2109 = vmatprep.subr.mxu0 0.0
      %2110 = vmatpush1.msra.mxu0 0.0
      %2111 = vmatprep.subr.mxu0 0.0
      %2112 = vmatpush1.msra.mxu0 0.0
      %2113 = vmatprep.subr.mxu0 0.0
      %2114 = vmatpush1.msra.mxu0 0.0
      %2115 = vmatprep.subr.mxu0 0.0
      %2116 = vmatpush1.msra.mxu0 0.0
      %2117 = vmatprep.mubr.f32.mxu0 0.0
      %2118 = vmatmul.mubr.f32.gmra.mrb[0].mxu0 %v1107
      %v2119 = vpop.f32.mrb[0].mxu0
      %v2120 = vadd.f32 %v1088, %v2119
      %v2121 = vpop.f32.mrb[0].mxu0
      %2122 = vmatprep.mubr.f32.mxu0 0.0
      %2123 = vmatmul.mubr.f32.gmra.mrb[0].mxu0 %v1110
      %v2124 = vpop.f32.mrb[0].mxu0
      %v2125 = vadd.f32 %v1093, %v2124
      %v2126 = vpop.f32.mrb[0].mxu0
      %2127 = vmatprep.mubr.f32.mxu0 0.0
      %2128 = vmatmul.mubr.f32.gmra.mrb[0].mxu0 %v1113
      %v2129 = vpop.f32.mrb[0].mxu0
      %v2130 = vadd.f32 %v1098, %v2129
      %v2131 = vpop.f32.mrb[0].mxu0
      %2132 = vmatprep.mubr.f32.mxu0 0.0
      %2133 = vmatmul.mubr.f32.gmra.mrb[0].mxu0 %v1116
      %v2134 = vpop.f32.mrb[0].mxu0
      %v2135 = vadd.f32 %v1103, %v2134
      %v2136 = vpop.f32.mrb[0].mxu0
      %2137 = vdwg.mxu0
      %2138 = vmatprep.subr.mxu0 0.0
      %2139 = vmatpush1.msra.mxu0 %v1061
      %2140 = vmatprep.subr.mxu0 0.0
      %2141 = vmatpush1.msra.mxu0 %v1062
      %2142 = vmatprep.subr.mxu0 0.0
      %2143 = vmatpush1.msra.mxu0 %v1063
      %2144 = vmatprep.subr.mxu0 0.0
      %2145 = vmatpush1.msra.mxu0 %v1064
      %2146 = vmatprep.subr.mxu0 0.0
      %2147 = vmatpush1.msra.mxu0 0.0
      %2148 = vmatprep.subr.mxu0 0.0
      %2149 = vmatpush1.msra.mxu0 0.0
      %2150 = vmatprep.subr.mxu0 0.0
      %2151 = vmatpush1.msra.mxu0 0.0
      %2152 = vmatprep.subr.mxu0 0.0
      %2153 = vmatpush1.msra.mxu0 0.0
      %2154 = vmatprep.subr.mxu0 0.0
      %2155 = vmatpush1.msra.mxu0 0.0
      %2156 = vmatprep.subr.mxu0 0.0
      %2157 = vmatpush1.msra.mxu0 0.0
      %2158 = vmatprep.subr.mxu0 0.0
      %2159 = vmatpush1.msra.mxu0 0.0
      %2160 = vmatprep.subr.mxu0 0.0
      %2161 = vmatpush1.msra.mxu0 0.0
      %2162 = vmatprep.subr.mxu0 0.0
      %2163 = vmatpush1.msra.mxu0 0.0
      %2164 = vmatprep.subr.mxu0 0.0
      %2165 = vmatpush1.msra.mxu0 0.0
      %2166 = vmatprep.subr.mxu0 0.0
      %2167 = vmatpush1.msra.mxu0 0.0
      %2168 = vmatprep.subr.mxu0 0.0
      %2169 = vmatpush1.msra.mxu0 0.0
      %2170 = vmatprep.subr.mxu0 0.0
      %2171 = vmatpush1.msra.mxu0 0.0
      %2172 = vmatprep.subr.mxu0 0.0
      %2173 = vmatpush1.msra.mxu0 0.0
      %2174 = vmatprep.subr.mxu0 0.0
      %2175 = vmatpush1.msra.mxu0 0.0
      %2176 = vmatprep.subr.mxu0 0.0
      %2177 = vmatpush1.msra.mxu0 0.0
      %2178 = vmatprep.subr.mxu0 0.0
      %2179 = vmatpush1.msra.mxu0 0.0
      %2180 = vmatprep.subr.mxu0 0.0
      %2181 = vmatpush1.msra.mxu0 0.0
      %2182 = vmatprep.subr.mxu0 0.0
      %2183 = vmatpush1.msra.mxu0 0.0
      %2184 = vmatprep.subr.mxu0 0.0
      %2185 = vmatpush1.msra.mxu0 0.0
      %2186 = vmatprep.subr.mxu0 0.0
      %2187 = vmatpush1.msra.mxu0 0.0
      %2188 = vmatprep.subr.mxu0 0.0
      %2189 = vmatpush1.msra.mxu0 0.0
      %2190 = vmatprep.subr.mxu0 0.0
      %2191 = vmatpush1.msra.mxu0 0.0
      %2192 = vmatprep.subr.mxu0 0.0
      %2193 = vmatpush1.msra.mxu0 0.0
      %2194 = vmatprep.subr.mxu0 0.0
      %2195 = vmatpush1.msra.mxu0 0.0
      %2196 = vmatprep.subr.mxu0 0.0
      %2197 = vmatpush1.msra.mxu0 0.0
      %2198 = vmatprep.subr.mxu0 0.0
      %2199 = vmatpush1.msra.mxu0 0.0
      %2200 = vmatprep.subr.mxu0 0.0
      %2201 = vmatpush1.msra.mxu0 0.0
      %2202 = vmatprep.mubr.f32.mxu0 0.0
      %2203 = vmatmul.mubr.f32.gmra.mrb[0].mxu0 %v1107
      %v2204 = vpop.f32.mrb[0].mxu0
      %v2205 = vadd.f32 %v1088, %v2204
      %v2206 = vpop.f32.mrb[0].mxu0
      %2207 = vmatprep.mubr.f32.mxu0 0.0
      %2208 = vmatmul.mubr.f32.gmra.mrb[0].mxu0 %v1110
      %v2209 = vpop.f32.mrb[0].mxu0
      %v2210 = vadd.f32 %v1093, %v2209
      %v2211 = vpop.f32.mrb[0].mxu0
      %2212 = vmatprep.mubr.f32.mxu0 0.0
      %2213 = vmatmul.mubr.f32.gmra.mrb[0].mxu0 %v1113
      %v2214 = vpop.f32.mrb[0].mxu0
      %v2215 = vadd.f32 %v1098, %v2214
      %v2216 = vpop.f32.mrb[0].mxu0
      %2217 = vmatprep.mubr.f32.mxu0 0.0
      %2218 = vmatmul.mubr.f32.gmra.mrb[0].mxu0 %v1116
      %v2219 = vpop.f32.mrb[0].mxu0
      %v2220 = vadd.f32 %v1103, %v2219
      %v2221 = vpop.f32.mrb[0].mxu0
      %2222 = vdwg.mxu0
      %2223 = vmatprep.subr.mxu0 0.0
      %2224 = vmatpush1.msra.mxu0 %v1065
      %2225 = vmatprep.subr.mxu0 0.0
      %2226 = vmatpush1.msra.mxu0 %v1066
      %2227 = vmatprep.subr.mxu0 0.0
      %2228 = vmatpush1.msra.mxu0 %v1067
      %2229 = vmatprep.subr.mxu0 0.0
      %2230 = vmatpush1.msra.mxu0 %v1068
      %2231 = vmatprep.subr.mxu0 0.0
      %2232 = vmatpush1.msra.mxu0 0.0
      %2233 = vmatprep.subr.mxu0 0.0
      %2234 = vmatpush1.msra.mxu0 0.0
      %2235 = vmatprep.subr.mxu0 0.0
      %2236 = vmatpush1.msra.mxu0 0.0
      %2237 = vmatprep.subr.mxu0 0.0
      %2238 = vmatpush1.msra.mxu0 0.0
      %2239 = vmatprep.subr.mxu0 0.0
      %2240 = vmatpush1.msra.mxu0 0.0
      %2241 = vmatprep.subr.mxu0 0.0
      %2242 = vmatpush1.msra.mxu0 0.0
      %2243 = vmatprep.subr.mxu0 0.0
      %2244 = vmatpush1.msra.mxu0 0.0
      %2245 = vmatprep.subr.mxu0 0.0
      %2246 = vmatpush1.msra.mxu0 0.0
      %2247 = vmatprep.subr.mxu0 0.0
      %2248 = vmatpush1.msra.mxu0 0.0
      %2249 = vmatprep.subr.mxu0 0.0
      %2250 = vmatpush1.msra.mxu0 0.0
      %2251 = vmatprep.subr.mxu0 0.0
      %2252 = vmatpush1.msra.mxu0 0.0
      %2253 = vmatprep.subr.mxu0 0.0
      %2254 = vmatpush1.msra.mxu0 0.0
      %2255 = vmatprep.subr.mxu0 0.0
      %2256 = vmatpush1.msra.mxu0 0.0
      %2257 = vmatprep.subr.mxu0 0.0
      %2258 = vmatpush1.msra.mxu0 0.0
      %2259 = vmatprep.subr.mxu0 0.0
      %2260 = vmatpush1.msra.mxu0 0.0
      %2261 = vmatprep.subr.mxu0 0.0
      %2262 = vmatpush1.msra.mxu0 0.0
      %2263 = vmatprep.subr.mxu0 0.0
      %2264 = vmatpush1.msra.mxu0 0.0
      %2265 = vmatprep.subr.mxu0 0.0
      %2266 = vmatpush1.msra.mxu0 0.0
      %2267 = vmatprep.subr.mxu0 0.0
      %2268 = vmatpush1.msra.mxu0 0.0
      %2269 = vmatprep.subr.mxu0 0.0
      %2270 = vmatpush1.msra.mxu0 0.0
      %2271 = vmatprep.subr.mxu0 0.0
      %2272 = vmatpush1.msra.mxu0 0.0
      %2273 = vmatprep.subr.mxu0 0.0
      %2274 = vmatpush1.msra.mxu0 0.0
      %2275 = vmatprep.subr.mxu0 0.0
      %2276 = vmatpush1.msra.mxu0 0.0
      %2277 = vmatprep.subr.mxu0 0.0
      %2278 = vmatpush1.msra.mxu0 0.0
      %2279 = vmatprep.subr.mxu0 0.0
      %2280 = vmatpush1.msra.mxu0 0.0
      %2281 = vmatprep.subr.mxu0 0.0
      %2282 = vmatpush1.msra.mxu0 0.0
      %2283 = vmatprep.subr.mxu0 0.0
      %2284 = vmatpush1.msra.mxu0 0.0
      %2285 = vmatprep.subr.mxu0 0.0
      %2286 = vmatpush1.msra.mxu0 0.0
      %2287 = vmatprep.mubr.f32.mxu0 0.0
      %2288 = vmatmul.mubr.f32.gmra.mrb[0].mxu0 %v1107
      %v2289 = vpop.f32.mrb[0].mxu0
      %v2290 = vadd.f32 %v1088, %v2289
      %v2291 = vpop.f32.mrb[0].mxu0
      %2292 = vmatprep.mubr.f32.mxu0 0.0
      %2293 = vmatmul.mubr.f32.gmra.mrb[0].mxu0 %v1110
      %v2294 = vpop.f32.mrb[0].mxu0
      %v2295 = vadd.f32 %v1093, %v2294
      %v2296 = vpop.f32.mrb[0].mxu0
      %2297 = vmatprep.mubr.f32.mxu0 0.0
      %2298 = vmatmul.mubr.f32.gmra.mrb[0].mxu0 %v1113
      %v2299 = vpop.f32.mrb[0].mxu0
      %v2300 = vadd.f32 %v1098, %v2299
      %v2301 = vpop.f32.mrb[0].mxu0
      %2302 = vmatprep.mubr.f32.mxu0 0.0
      %2303 = vmatmul.mubr.f32.gmra.mrb[0].mxu0 %v1116
      %v2304 = vpop.f32.mrb[0].mxu0
      %v2305 = vadd.f32 %v1103, %v2304
      %v2306 = vpop.f32.mrb[0].mxu0
      %2307 = vdwg.mxu0
      %2308 = vmatprep.subr.mxu0 0.0
      %2309 = vmatpush1.msra.mxu0 %v1069
      %2310 = vmatprep.subr.mxu0 0.0
      %2311 = vmatpush1.msra.mxu0 %v1070
      %2312 = vmatprep.subr.mxu0 0.0
      %2313 = vmatpush1.msra.mxu0 %v1071
      %2314 = vmatprep.subr.mxu0 0.0
      %2315 = vmatpush1.msra.mxu0 %v1072
      %2316 = vmatprep.subr.mxu0 0.0
      %2317 = vmatpush1.msra.mxu0 0.0
      %2318 = vmatprep.subr.mxu0 0.0
      %2319 = vmatpush1.msra.mxu0 0.0
      %2320 = vmatprep.subr.mxu0 0.0
      %2321 = vmatpush1.msra.mxu0 0.0
      %2322 = vmatprep.subr.mxu0 0.0
      %2323 = vmatpush1.msra.mxu0 0.0
      %2324 = vmatprep.subr.mxu0 0.0
      %2325 = vmatpush1.msra.mxu0 0.0
      %2326 = vmatprep.subr.mxu0 0.0
      %2327 = vmatpush1.msra.mxu0 0.0
      %2328 = vmatprep.subr.mxu0 0.0
      %2329 = vmatpush1.msra.mxu0 0.0
      %2330 = vmatprep.subr.mxu0 0.0
      %2331 = vmatpush1.msra.mxu0 0.0
      %2332 = vmatprep.subr.mxu0 0.0
      %2333 = vmatpush1.msra.mxu0 0.0
      %2334 = vmatprep.subr.mxu0 0.0
      %2335 = vmatpush1.msra.mxu0 0.0
      %2336 = vmatprep.subr.mxu0 0.0
      %2337 = vmatpush1.msra.mxu0 0.0
      %2338 = vmatprep.subr.mxu0 0.0
      %2339 = vmatpush1.msra.mxu0 0.0
      %2340 = vmatprep.subr.mxu0 0.0
      %2341 = vmatpush1.msra.mxu0 0.0
      %2342 = vmatprep.subr.mxu0 0.0
      %2343 = vmatpush1.msra.mxu0 0.0
      %2344 = vmatprep.subr.mxu0 0.0
      %2345 = vmatpush1.msra.mxu0 0.0
      %2346 = vmatprep.subr.mxu0 0.0
      %2347 = vmatpush1.msra.mxu0 0.0
      %2348 = vmatprep.subr.mxu0 0.0
      %2349 = vmatpush1.msra.mxu0 0.0
      %2350 = vmatprep.subr.mxu0 0.0
      %2351 = vmatpush1.msra.mxu0 0.0
      %2352 = vmatprep.subr.mxu0 0.0
      %2353 = vmatpush1.msra.mxu0 0.0
      %2354 = vmatprep.subr.mxu0 0.0
      %2355 = vmatpush1.msra.mxu0 0.0
      %2356 = vmatprep.subr.mxu0 0.0
      %2357 = vmatpush1.msra.mxu0 0.0
      %2358 = vmatprep.subr.mxu0 0.0
      %2359 = vmatpush1.msra.mxu0 0.0
      %2360 = vmatprep.subr.mxu0 0.0
      %2361 = vmatpush1.msra.mxu0 0.0
      %2362 = vmatprep.subr.mxu0 0.0
      %2363 = vmatpush1.msra.mxu0 0.0
      %2364 = vmatprep.subr.mxu0 0.0
      %2365 = vmatpush1.msra.mxu0 0.0
      %2366 = vmatprep.subr.mxu0 0.0
      %2367 = vmatpush1.msra.mxu0 0.0
      %2368 = vmatprep.subr.mxu0 0.0
      %2369 = vmatpush1.msra.mxu0 0.0
      %2370 = vmatprep.subr.mxu0 0.0
      %2371 = vmatpush1.msra.mxu0 0.0
      %2372 = vmatprep.mubr.f32.mxu0 0.0
      %2373 = vmatmul.mubr.f32.gmra.mrb[0].mxu0 %v1107
      %v2374 = vpop.f32.mrb[0].mxu0
      %v2375 = vadd.f32 %v1088, %v2374
      %v2376 = vpop.f32.mrb[0].mxu0
      %2377 = vmatprep.mubr.f32.mxu0 0.0
      %2378 = vmatmul.mubr.f32.gmra.mrb[0].mxu0 %v1110
      %v2379 = vpop.f32.mrb[0].mxu0
      %v2380 = vadd.f32 %v1093, %v2379
      %v2381 = vpop.f32.mrb[0].mxu0
      %2382 = vmatprep.mubr.f32.mxu0 0.0
      %2383 = vmatmul.mubr.f32.gmra.mrb[0].mxu0 %v1113
      %v2384 = vpop.f32.mrb[0].mxu0
      %v2385 = vadd.f32 %v1098, %v2384
      %v2386 = vpop.f32.mrb[0].mxu0
      %2387 = vmatprep.mubr.f32.mxu0 0.0
      %2388 = vmatmul.mubr.f32.gmra.mrb[0].mxu0 %v1116
      %v2389 = vpop.f32.mrb[0].mxu0
      %v2390 = vadd.f32 %v1103, %v2389
      %v2391 = vpop.f32.mrb[0].mxu0
      %2392 = vdwg.mxu0
      %2393 = vmatprep.subr.mxu0 0.0
      %2394 = vmatpush1.msra.mxu0 %v1073
      %2395 = vmatprep.subr.mxu0 0.0
      %2396 = vmatpush1.msra.mxu0 %v1074
      %2397 = vmatprep.subr.mxu0 0.0
      %2398 = vmatpush1.msra.mxu0 %v1075
      %2399 = vmatprep.subr.mxu0 0.0
      %2400 = vmatpush1.msra.mxu0 %v1076
      %2401 = vmatprep.subr.mxu0 0.0
      %2402 = vmatpush1.msra.mxu0 0.0
      %2403 = vmatprep.subr.mxu0 0.0
      %2404 = vmatpush1.msra.mxu0 0.0
      %2405 = vmatprep.subr.mxu0 0.0
      %2406 = vmatpush1.msra.mxu0 0.0
      %2407 = vmatprep.subr.mxu0 0.0
      %2408 = vmatpush1.msra.mxu0 0.0
      %2409 = vmatprep.subr.mxu0 0.0
      %2410 = vmatpush1.msra.mxu0 0.0
      %2411 = vmatprep.subr.mxu0 0.0
      %2412 = vmatpush1.msra.mxu0 0.0
      %2413 = vmatprep.subr.mxu0 0.0
      %2414 = vmatpush1.msra.mxu0 0.0
      %2415 = vmatprep.subr.mxu0 0.0
      %2416 = vmatpush1.msra.mxu0 0.0
      %2417 = vmatprep.subr.mxu0 0.0
      %2418 = vmatpush1.msra.mxu0 0.0
      %2419 = vmatprep.subr.mxu0 0.0
      %2420 = vmatpush1.msra.mxu0 0.0
      %2421 = vmatprep.subr.mxu0 0.0
      %2422 = vmatpush1.msra.mxu0 0.0
      %2423 = vmatprep.subr.mxu0 0.0
      %2424 = vmatpush1.msra.mxu0 0.0
      %2425 = vmatprep.subr.mxu0 0.0
      %2426 = vmatpush1.msra.mxu0 0.0
      %2427 = vmatprep.subr.mxu0 0.0
      %2428 = vmatpush1.msra.mxu0 0.0
      %2429 = vmatprep.subr.mxu0 0.0
      %2430 = vmatpush1.msra.mxu0 0.0
      %2431 = vmatprep.subr.mxu0 0.0
      %2432 = vmatpush1.msra.mxu0 0.0
      %2433 = vmatprep.subr.mxu0 0.0
      %2434 = vmatpush1.msra.mxu0 0.0
      %2435 = vmatprep.subr.mxu0 0.0
      %2436 = vmatpush1.msra.mxu0 0.0
      %2437 = vmatprep.subr.mxu0 0.0
      %2438 = vmatpush1.msra.mxu0 0.0
      %2439 = vmatprep.subr.mxu0 0.0
      %2440 = vmatpush1.msra.mxu0 0.0
      %2441 = vmatprep.subr.mxu0 0.0
      %2442 = vmatpush1.msra.mxu0 0.0
      %2443 = vmatprep.subr.mxu0 0.0
      %2444 = vmatpush1.msra.mxu0 0.0
      %2445 = vmatprep.subr.mxu0 0.0
      %2446 = vmatpush1.msra.mxu0 0.0
      %2447 = vmatprep.subr.mxu0 0.0
      %2448 = vmatpush1.msra.mxu0 0.0
      %2449 = vmatprep.subr.mxu0 0.0
      %2450 = vmatpush1.msra.mxu0 0.0
      %2451 = vmatprep.subr.mxu0 0.0
      %2452 = vmatpush1.msra.mxu0 0.0
      %2453 = vmatprep.subr.mxu0 0.0
      %2454 = vmatpush1.msra.mxu0 0.0
      %2455 = vmatprep.subr.mxu0 0.0
      %2456 = vmatpush1.msra.mxu0 0.0
      %2457 = vmatprep.mubr.f32.mxu0 0.0
      %2458 = vmatmul.mubr.f32.gmra.mrb[0].mxu0 %v1107
      %v2459 = vpop.f32.mrb[0].mxu0
      %v2460 = vadd.f32 %v1088, %v2459
      %v2461 = vpop.f32.mrb[0].mxu0
      %2462 = vmatprep.mubr.f32.mxu0 0.0
      %2463 = vmatmul.mubr.f32.gmra.mrb[0].mxu0 %v1110
      %v2464 = vpop.f32.mrb[0].mxu0
      %v2465 = vadd.f32 %v1093, %v2464
      %v2466 = vpop.f32.mrb[0].mxu0
      %2467 = vmatprep.mubr.f32.mxu0 0.0
      %2468 = vmatmul.mubr.f32.gmra.mrb[0].mxu0 %v1113
      %v2469 = vpop.f32.mrb[0].mxu0
      %v2470 = vadd.f32 %v1098, %v2469
      %v2471 = vpop.f32.mrb[0].mxu0
      %2472 = vmatprep.mubr.f32.mxu0 0.0
      %2473 = vmatmul.mubr.f32.gmra.mrb[0].mxu0 %v1116
      %v2474 = vpop.f32.mrb[0].mxu0
      %v2475 = vadd.f32 %v1103, %v2474
      %v2476 = vpop.f32.mrb[0].mxu0
      %2477 = vdwg.mxu0
      %v2478 = vmax.f32 %v1185, 0.0
      %v2479 = vmax.f32 %v1190, 0.0
      %v2480 = vmax.f32 %v1195, 0.0
      %v2481 = vmax.f32 %v1200, 0.0
      %v2482 = vmax.f32 %v1270, 0.0
      %v2483 = vmax.f32 %v1275, 0.0
      %v2484 = vmax.f32 %v1280, 0.0
      %v2485 = vmax.f32 %v1285, 0.0
      %v2486 = vmax.f32 %v1355, 0.0
      %v2487 = vmax.f32 %v1360, 0.0
      %v2488 = vmax.f32 %v1365, 0.0
      %v2489 = vmax.f32 %v1370, 0.0
      %v2490 = vmax.f32 %v1440, 0.0
      %v2491 = vmax.f32 %v1445, 0.0
      %v2492 = vmax.f32 %v1450, 0.0
      %v2493 = vmax.f32 %v1455, 0.0
      %v2494 = vmax.f32 %v1525, 0.0
      %v2495 = vmax.f32 %v1530, 0.0
      %v2496 = vmax.f32 %v1535, 0.0
      %v2497 = vmax.f32 %v1540, 0.0
      %v2498 = vmax.f32 %v1610, 0.0
      %v2499 = vmax.f32 %v1615, 0.0
      %v2500 = vmax.f32 %v1620, 0.0
      %v2501 = vmax.f32 %v1625, 0.0
      %v2502 = vmax.f32 %v1695, 0.0
      %v2503 = vmax.f32 %v1700, 0.0
      %v2504 = vmax.f32 %v1705, 0.0
      %v2505 = vmax.f32 %v1710, 0.0
      %v2506 = vmax.f32 %v1780, 0.0
      %v2507 = vmax.f32 %v1785, 0.0
      %v2508 = vmax.f32 %v1790, 0.0
      %v2509 = vmax.f32 %v1795, 0.0
      %v2510 = vmax.f32 %v1865, 0.0
      %v2511 = vmax.f32 %v1870, 0.0
      %v2512 = vmax.f32 %v1875, 0.0
      %v2513 = vmax.f32 %v1880, 0.0
      %v2514 = vmax.f32 %v1950, 0.0
      %v2515 = vmax.f32 %v1955, 0.0
      %v2516 = vmax.f32 %v1960, 0.0
      %v2517 = vmax.f32 %v1965, 0.0
      %v2518 = vmax.f32 %v2035, 0.0
      %v2519 = vmax.f32 %v2040, 0.0
      %v2520 = vmax.f32 %v2045, 0.0
      %v2521 = vmax.f32 %v2050, 0.0
      %v2522 = vmax.f32 %v2120, 0.0
      %v2523 = vmax.f32 %v2125, 0.0
      %v2524 = vmax.f32 %v2130, 0.0
      %v2525 = vmax.f32 %v2135, 0.0
      %v2526 = vmax.f32 %v2205, 0.0
      %v2527 = vmax.f32 %v2210, 0.0
      %v2528 = vmax.f32 %v2215, 0.0
      %v2529 = vmax.f32 %v2220, 0.0
      %v2530 = vmax.f32 %v2290, 0.0
      %v2531 = vmax.f32 %v2295, 0.0
      %v2532 = vmax.f32 %v2300, 0.0
      %v2533 = vmax.f32 %v2305, 0.0
      %v2534 = vmax.f32 %v2375, 0.0
      %v2535 = vmax.f32 %v2380, 0.0
      %v2536 = vmax.f32 %v2385, 0.0
      %v2537 = vmax.f32 %v2390, 0.0
      %v2538 = vmax.f32 %v2460, 0.0
      %v2539 = vmax.f32 %v2465, 0.0
      %v2540 = vmax.f32 %v2470, 0.0
      %v2541 = vmax.f32 %v2475, 0.0
      %vm2542 = vcmask 23552
      %v2543 = vsel %vm2542, %v367, 0
      %v2545 = vsel %vm2542, %v368, 0
      %vm2547 = vcmask 1042432
      %v2549 = vsel %vm2547, %v350, 0
      %2551 = vmatprep.subr.mxu0 0.0
      %2552 = vmatpush1.msra.mxu0 %v2549
      %2553 = vmatprep.subr.mxu0 0.0
      %2554 = vmatpush1.msra.mxu0 0.0
      %2555 = vmatprep.subr.mxu0 0.0
      %2556 = vmatpush1.msra.mxu0 0.0
      %2557 = vmatprep.subr.mxu0 0.0
      %2558 = vmatpush1.msra.mxu0 0.0
      %2559 = vmatprep.subr.mxu0 0.0
      %2560 = vmatpush1.msra.mxu0 0.0
      %2561 = vmatprep.subr.mxu0 0.0
      %2562 = vmatpush1.msra.mxu0 0.0
      %2563 = vmatprep.subr.mxu0 0.0
      %2564 = vmatpush1.msra.mxu0 0.0
      %2565 = vmatprep.subr.mxu0 0.0
      %2566 = vmatpush1.msra.mxu0 0.0
      %2567 = vmatprep.subr.mxu0 0.0
      %2568 = vmatpush1.msra.mxu0 0.0
      %2569 = vmatprep.subr.mxu0 0.0
      %2570 = vmatpush1.msra.mxu0 0.0
      %2571 = vmatprep.subr.mxu0 0.0
      %2572 = vmatpush1.msra.mxu0 0.0
      %2573 = vmatprep.subr.mxu0 0.0
      %2574 = vmatpush1.msra.mxu0 0.0
      %2575 = vmatprep.subr.mxu0 0.0
      %2576 = vmatpush1.msra.mxu0 0.0
      %2577 = vmatprep.subr.mxu0 0.0
      %2578 = vmatpush1.msra.mxu0 0.0
      %2579 = vmatprep.subr.mxu0 0.0
      %2580 = vmatpush1.msra.mxu0 0.0
      %2581 = vmatprep.subr.mxu0 0.0
      %2582 = vmatpush1.msra.mxu0 0.0
      %2583 = vmatprep.subr.mxu0 0.0
      %2584 = vmatpush1.msra.mxu0 0.0
      %2585 = vmatprep.subr.mxu0 0.0
      %2586 = vmatpush1.msra.mxu0 0.0
      %2587 = vmatprep.subr.mxu0 0.0
      %2588 = vmatpush1.msra.mxu0 0.0
      %2589 = vmatprep.subr.mxu0 0.0
      %2590 = vmatpush1.msra.mxu0 0.0
      %2591 = vmatprep.subr.mxu0 0.0
      %2592 = vmatpush1.msra.mxu0 0.0
      %2593 = vmatprep.subr.mxu0 0.0
      %2594 = vmatpush1.msra.mxu0 0.0
      %2595 = vmatprep.subr.mxu0 0.0
      %2596 = vmatpush1.msra.mxu0 0.0
      %2597 = vmatprep.subr.mxu0 0.0
      %2598 = vmatpush1.msra.mxu0 0.0
      %2599 = vmatprep.subr.mxu0 0.0
      %2600 = vmatpush1.msra.mxu0 0.0
      %2601 = vmatprep.subr.mxu0 0.0
      %2602 = vmatpush1.msra.mxu0 0.0
      %2603 = vmatprep.subr.mxu0 0.0
      %2604 = vmatpush1.msra.mxu0 0.0
      %2605 = vmatprep.subr.mxu0 0.0
      %2606 = vmatpush1.msra.mxu0 0.0
      %2607 = vmatprep.subr.mxu0 0.0
      %2608 = vmatpush1.msra.mxu0 0.0
      %2609 = vmatprep.subr.mxu0 0.0
      %2610 = vmatpush1.msra.mxu0 0.0
      %2611 = vmatprep.subr.mxu0 0.0
      %2612 = vmatpush1.msra.mxu0 0.0
      %2613 = vmatprep.subr.mxu0 0.0
      %2614 = vmatpush1.msra.mxu0 0.0
      %2615 = vmatprep.mubr.f32.mxu0 0.0
      %2616 = vmatmul.mubr.f32.gmra.mrb[0].mxu0 %v2543
      %v2617 = vpop.f32.mrb[0].mxu0
      %v2618 = vadd.f32 0.0, %v2617
      %v2619 = vpop.f32.mrb[0].mxu0
      %2620 = vmatprep.mubr.f32.mxu0 0.0
      %2621 = vmatmul.mubr.f32.gmra.mrb[0].mxu0 %v2545
      %v2622 = vpop.f32.mrb[0].mxu0
      %v2623 = vadd.f32 0.0, %v2622
      %v2624 = vpop.f32.mrb[0].mxu0
      %2625 = vdwg.mxu0
      %v2642 = vmul.f32 %v408, %v408
      %v2643 = vmul.f32 %v422, %v422
      %v2644 = vmul.f32 %v430, %v430
      %v2645 = vmul.f32 %v432, %v432
      %v2646 = vmul.f32 %v415, %v415
      %v2647 = vmul.f32 %v429, %v429
      %v2648 = vmul.f32 %v431, %v431
      %v2649 = vmul.f32 %v433, %v433
      %v2650 = vmul.f32 %v457, %v457
      %v2651 = vmul.f32 %v471, %v471
      %v2652 = vmul.f32 %v479, %v479
      %v2653 = vmul.f32 %v481, %v481
      %v2654 = vmul.f32 %v464, %v464
      %v2655 = vmul.f32 %v478, %v478
      %v2656 = vmul.f32 %v480, %v480
      %v2657 = vmul.f32 %v482, %v482
      %vm2658 = vcmask 16384
      %v2659 = vsel %vm2658, %v2642, 0.0
      %2660 = vadd.xlane.f32.xlu0 %v2659
      %v2661 = vpop.xlane.xlu0 %2660
      %v2662 = vsel %vm2658, %v2643, 0.0
      %2663 = vadd.xlane.f32.xlu0 %v2662
      %v2664 = vpop.xlane.xlu0 %2663
      %v2665 = vsel %vm2658, %v2644, 0.0
      %2666 = vadd.xlane.f32.xlu0 %v2665
      %v2667 = vpop.xlane.xlu0 %2666
      %v2668 = vsel %vm2658, %v2645, 0.0
      %2669 = vadd.xlane.f32.xlu0 %v2668
      %v2670 = vpop.xlane.xlu0 %2669
      %v2671 = vsel %vm2658, %v2646, 0.0
      %2672 = vadd.xlane.f32.xlu0 %v2671
      %v2673 = vpop.xlane.xlu0 %2672
      %v2674 = vsel %vm2658, %v2647, 0.0
      %2675 = vadd.xlane.f32.xlu0 %v2674
      %v2676 = vpop.xlane.xlu0 %2675
      %v2677 = vsel %vm2658, %v2648, 0.0
      %2678 = vadd.xlane.f32.xlu0 %v2677
      %v2679 = vpop.xlane.xlu0 %2678
      %v2680 = vsel %vm2658, %v2649, 0.0
      %2681 = vadd.xlane.f32.xlu0 %v2680
      %v2682 = vpop.xlane.xlu0 %2681
      %v2683 = vsel %vm2658, %v2650, 0.0
      %2684 = vadd.xlane.f32.xlu0 %v2683
      %v2685 = vpop.xlane.xlu0 %2684
      %v2686 = vsel %vm2658, %v2651, 0.0
      %2687 = vadd.xlane.f32.xlu0 %v2686
      %v2688 = vpop.xlane.xlu0 %2687
      %v2689 = vsel %vm2658, %v2652, 0.0
      %2690 = vadd.xlane.f32.xlu0 %v2689
      %v2691 = vpop.xlane.xlu0 %2690
      %v2692 = vsel %vm2658, %v2653, 0.0
      %2693 = vadd.xlane.f32.xlu0 %v2692
      %v2694 = vpop.xlane.xlu0 %2693
      %v2695 = vsel %vm2658, %v2654, 0.0
      %2696 = vadd.xlane.f32.xlu0 %v2695
      %v2697 = vpop.xlane.xlu0 %2696
      %v2698 = vsel %vm2658, %v2655, 0.0
      %2699 = vadd.xlane.f32.xlu0 %v2698
      %v2700 = vpop.xlane.xlu0 %2699
      %v2701 = vsel %vm2658, %v2656, 0.0
      %2702 = vadd.xlane.f32.xlu0 %v2701
      %v2703 = vpop.xlane.xlu0 %2702
      %v2704 = vsel %vm2658, %v2657, 0.0
      %2705 = vadd.xlane.f32.xlu0 %v2704
      %v2706 = vpop.xlane.xlu0 %2705
      %v2707 = vmul.f32 %v350, %v350
      %vm2708 = vcmask 124928
      %v2709 = vsel %vm2708, %v2707, 0.0
      %v2710 = vrot.slane %v2709, 4
      %v2711 = vadd.f32 %v2709, %v2710
      %v2712 = vrot.slane %v2711, 2
      %v2713 = vadd.f32 %v2711, %v2712
      %v2714 = vrot.slane %v2713, 1
      %v2715 = vadd.f32 %v2713, %v2714
      %v2716 = vadd.f32 %v2661, %v2715
      %v2717 = vadd.f32 %v2664, %v2715
      %v2718 = vadd.f32 %v2667, %v2715
      %v2719 = vadd.f32 %v2670, %v2715
      %v2720 = vadd.f32 %v2673, %v2715
      %v2721 = vadd.f32 %v2676, %v2715
      %v2722 = vadd.f32 %v2679, %v2715
      %v2723 = vadd.f32 %v2682, %v2715
      %v2724 = vadd.f32 %v2685, %v2715
      %v2725 = vadd.f32 %v2688, %v2715
      %v2726 = vadd.f32 %v2691, %v2715
      %v2727 = vadd.f32 %v2694, %v2715
      %v2728 = vadd.f32 %v2697, %v2715
      %v2729 = vadd.f32 %v2700, %v2715
      %v2730 = vadd.f32 %v2703, %v2715
      %v2731 = vadd.f32 %v2706, %v2715
      %v2734 = vcombine.high %v2618, %v2618
      %v2736 = vunpack.c.l.s4 1966171168
      %v2737 = vunpack.c.0.s8 %v2736
      %v2738 = vlaneseq
      %v2739 = vshrl.u32 %v2738, 7
      %v2740 = vsub.s32 %v2737, %v2739
      %v2741 = vrot.slane %v2618, %v2740
      %v2743 = vunpack.c.l.s4 1966171168
      %v2744 = vunpack.c.0.s8 %v2743
      %v2745 = vlaneseq
      %v2746 = vshrl.u32 %v2745, 7
      %v2747 = vsub.s32 %v2744, %v2746
      %v2748 = vrot.slane %v2734, %v2747
      %v2749 = vcombine.high %v2741, %v2741
      %v2750 = vcombine.high %v2748, %v2748
      %v2752 = vunpack.c.l.s4 1966171168
      %v2753 = vunpack.c.0.s8 %v2752
      %v2754 = vlaneseq
      %v2755 = vshrl.u32 %v2754, 7
      %v2756 = vsub.s32 %v2753, %v2755
      %v2757 = vrot.slane %v2741, %v2756
      %v2759 = vunpack.c.l.s4 1966171168
      %v2760 = vunpack.c.0.s8 %v2759
      %v2761 = vlaneseq
      %v2762 = vshrl.u32 %v2761, 7
      %v2763 = vsub.s32 %v2760, %v2762
      %v2764 = vrot.slane %v2748, %v2763
      %v2766 = vunpack.c.l.s4 1966171168
      %v2767 = vunpack.c.0.s8 %v2766
      %v2768 = vlaneseq
      %v2769 = vshrl.u32 %v2768, 7
      %v2770 = vsub.s32 %v2767, %v2769
      %v2771 = vrot.slane %v2749, %v2770
      %v2773 = vunpack.c.l.s4 1966171168
      %v2774 = vunpack.c.0.s8 %v2773
      %v2775 = vlaneseq
      %v2776 = vshrl.u32 %v2775, 7
      %v2777 = vsub.s32 %v2774, %v2776
      %v2778 = vrot.slane %v2750, %v2777
      %v2779 = vcombine.high %v2757, %v2757
      %v2780 = vcombine.high %v2764, %v2764
      %v2781 = vcombine.high %v2771, %v2771
      %v2782 = vcombine.high %v2778, %v2778
      %v2783 = vcombine.high %v2623, %v2623
      %v2785 = vunpack.c.l.s4 1966171168
      %v2786 = vunpack.c.0.s8 %v2785
      %v2787 = vlaneseq
      %v2788 = vshrl.u32 %v2787, 7
      %v2789 = vsub.s32 %v2786, %v2788
      %v2790 = vrot.slane %v2623, %v2789
      %v2792 = vunpack.c.l.s4 1966171168
      %v2793 = vunpack.c.0.s8 %v2792
      %v2794 = vlaneseq
      %v2795 = vshrl.u32 %v2794, 7
      %v2796 = vsub.s32 %v2793, %v2795
      %v2797 = vrot.slane %v2783, %v2796
      %v2798 = vcombine.high %v2790, %v2790
      %v2799 = vcombine.high %v2797, %v2797
      %v2801 = vunpack.c.l.s4 1966171168
      %v2802 = vunpack.c.0.s8 %v2801
      %v2803 = vlaneseq
      %v2804 = vshrl.u32 %v2803, 7
      %v2805 = vsub.s32 %v2802, %v2804
      %v2806 = vrot.slane %v2790, %v2805
      %v2808 = vunpack.c.l.s4 1966171168
      %v2809 = vunpack.c.0.s8 %v2808
      %v2810 = vlaneseq
      %v2811 = vshrl.u32 %v2810, 7
      %v2812 = vsub.s32 %v2809, %v2811
      %v2813 = vrot.slane %v2797, %v2812
      %v2815 = vunpack.c.l.s4 1966171168
      %v2816 = vunpack.c.0.s8 %v2815
      %v2817 = vlaneseq
      %v2818 = vshrl.u32 %v2817, 7
      %v2819 = vsub.s32 %v2816, %v2818
      %v2820 = vrot.slane %v2798, %v2819
      %v2822 = vunpack.c.l.s4 1966171168
      %v2823 = vunpack.c.0.s8 %v2822
      %v2824 = vlaneseq
      %v2825 = vshrl.u32 %v2824, 7
      %v2826 = vsub.s32 %v2823, %v2825
      %v2827 = vrot.slane %v2799, %v2826
      %v2828 = vcombine.high %v2806, %v2806
      %v2829 = vcombine.high %v2813, %v2813
      %v2830 = vcombine.high %v2820, %v2820
      %v2831 = vcombine.high %v2827, %v2827
      %v2848 = vmul.f32 %v2757, 2.0
      %v2849 = vmul.f32 %v2771, 2.0
      %v2850 = vmul.f32 %v2779, 2.0
      %v2851 = vmul.f32 %v2781, 2.0
      %v2852 = vmul.f32 %v2764, 2.0
      %v2853 = vmul.f32 %v2778, 2.0
      %v2854 = vmul.f32 %v2780, 2.0
      %v2855 = vmul.f32 %v2782, 2.0
      %v2856 = vmul.f32 %v2806, 2.0
      %v2857 = vmul.f32 %v2820, 2.0
      %v2858 = vmul.f32 %v2828, 2.0
      %v2859 = vmul.f32 %v2830, 2.0
      %v2860 = vmul.f32 %v2813, 2.0
      %v2861 = vmul.f32 %v2827, 2.0
      %v2862 = vmul.f32 %v2829, 2.0
      %v2863 = vmul.f32 %v2831, 2.0
      %v2864 = vsub.f32 %v2716, %v2848
      %v2865 = vsub.f32 %v2717, %v2849
      %v2866 = vsub.f32 %v2718, %v2850
      %v2867 = vsub.f32 %v2719, %v2851
      %v2868 = vsub.f32 %v2720, %v2852
      %v2869 = vsub.f32 %v2721, %v2853
      %v2870 = vsub.f32 %v2722, %v2854
      %v2871 = vsub.f32 %v2723, %v2855
      %v2872 = vsub.f32 %v2724, %v2856
      %v2873 = vsub.f32 %v2725, %v2857
      %v2874 = vsub.f32 %v2726, %v2858
      %v2875 = vsub.f32 %v2727, %v2859
      %v2876 = vsub.f32 %v2728, %v2860
      %v2877 = vsub.f32 %v2729, %v2861
      %v2878 = vsub.f32 %v2730, %v2862
      %v2879 = vsub.f32 %v2731, %v2863
      %vm2880 = vcmp.ge.f32.partialorder %v2864, 2.25
      %vm2881 = vcmp.ge.f32.partialorder %v2865, 2.25
      %vm2882 = vcmp.ge.f32.partialorder %v2866, 2.25
      %vm2883 = vcmp.ge.f32.partialorder %v2867, 2.25
      %vm2884 = vcmp.ge.f32.partialorder %v2868, 2.25
      %vm2885 = vcmp.ge.f32.partialorder %v2869, 2.25
      %vm2886 = vcmp.ge.f32.partialorder %v2870, 2.25
      %vm2887 = vcmp.ge.f32.partialorder %v2871, 2.25
      %vm2888 = vcmp.ge.f32.partialorder %v2872, 2.25
      %vm2889 = vcmp.ge.f32.partialorder %v2873, 2.25
      %vm2890 = vcmp.ge.f32.partialorder %v2874, 2.25
      %vm2891 = vcmp.ge.f32.partialorder %v2875, 2.25
      %vm2892 = vcmp.ge.f32.partialorder %v2876, 2.25
      %vm2893 = vcmp.ge.f32.partialorder %v2877, 2.25
      %vm2894 = vcmp.ge.f32.partialorder %v2878, 2.25
      %vm2895 = vcmp.ge.f32.partialorder %v2879, 2.25
      %v2896 = vsel %vm2880, 1, 0
      %v2897 = vsel %vm2881, 1, 0
      %v2898 = vsel %vm2882, 1, 0
      %v2899 = vsel %vm2883, 1, 0
      %v2900 = vsel %vm2884, 1, 0
      %v2901 = vsel %vm2885, 1, 0
      %v2902 = vsel %vm2886, 1, 0
      %v2903 = vsel %vm2887, 1, 0
      %v2904 = vsel %vm2888, 1, 0
      %v2905 = vsel %vm2889, 1, 0
      %v2906 = vsel %vm2890, 1, 0
      %v2907 = vsel %vm2891, 1, 0
      %v2908 = vsel %vm2892, 1, 0
      %v2909 = vsel %vm2893, 1, 0
      %v2910 = vsel %vm2894, 1, 0
      %v2911 = vsel %vm2895, 1, 0
      %v2912 = vlaneseq
      %v2913 = vshrl.u32 %v2912, 7
      %v2914 = vsub.s32 0, %v2913
      %v2915 = vrot.slane %v2896, %v2914
      %v2916 = vlaneseq
      %v2917 = vshrl.u32 %v2916, 7
      %v2918 = vsub.s32 0, %v2917
      %v2919 = vrot.slane %v2897, %v2918
      %v2920 = vlaneseq
      %v2921 = vshrl.u32 %v2920, 7
      %v2922 = vsub.s32 0, %v2921
      %v2923 = vrot.slane %v2898, %v2922
      %v2924 = vlaneseq
      %v2925 = vshrl.u32 %v2924, 7
      %v2926 = vsub.s32 0, %v2925
      %v2927 = vrot.slane %v2899, %v2926
      %v2928 = vlaneseq
      %v2929 = vshrl.u32 %v2928, 7
      %v2930 = vsub.s32 0, %v2929
      %v2931 = vrot.slane %v2900, %v2930
      %v2932 = vlaneseq
      %v2933 = vshrl.u32 %v2932, 7
      %v2934 = vsub.s32 0, %v2933
      %v2935 = vrot.slane %v2901, %v2934
      %v2936 = vlaneseq
      %v2937 = vshrl.u32 %v2936, 7
      %v2938 = vsub.s32 0, %v2937
      %v2939 = vrot.slane %v2902, %v2938
      %v2940 = vlaneseq
      %v2941 = vshrl.u32 %v2940, 7
      %v2942 = vsub.s32 0, %v2941
      %v2943 = vrot.slane %v2903, %v2942
      %v2944 = vlaneseq
      %v2945 = vshrl.u32 %v2944, 7
      %v2946 = vsub.s32 0, %v2945
      %v2947 = vrot.slane %v2904, %v2946
      %v2948 = vlaneseq
      %v2949 = vshrl.u32 %v2948, 7
      %v2950 = vsub.s32 0, %v2949
      %v2951 = vrot.slane %v2905, %v2950
      %v2952 = vlaneseq
      %v2953 = vshrl.u32 %v2952, 7
      %v2954 = vsub.s32 0, %v2953
      %v2955 = vrot.slane %v2906, %v2954
      %v2956 = vlaneseq
      %v2957 = vshrl.u32 %v2956, 7
      %v2958 = vsub.s32 0, %v2957
      %v2959 = vrot.slane %v2907, %v2958
      %v2960 = vlaneseq
      %v2961 = vshrl.u32 %v2960, 7
      %v2962 = vsub.s32 0, %v2961
      %v2963 = vrot.slane %v2908, %v2962
      %v2964 = vlaneseq
      %v2965 = vshrl.u32 %v2964, 7
      %v2966 = vsub.s32 0, %v2965
      %v2967 = vrot.slane %v2909, %v2966
      %v2968 = vlaneseq
      %v2969 = vshrl.u32 %v2968, 7
      %v2970 = vsub.s32 0, %v2969
      %v2971 = vrot.slane %v2910, %v2970
      %v2972 = vlaneseq
      %v2973 = vshrl.u32 %v2972, 7
      %v2974 = vsub.s32 0, %v2973
      %v2975 = vrot.slane %v2911, %v2974
      %vm2976 = vcmp.eq.s32.totalorder %v2915, 1
      %vm2977 = vcmp.eq.s32.totalorder %v2919, 1
      %vm2978 = vcmp.eq.s32.totalorder %v2923, 1
      %vm2979 = vcmp.eq.s32.totalorder %v2927, 1
      %vm2980 = vcmp.eq.s32.totalorder %v2931, 1
      %vm2981 = vcmp.eq.s32.totalorder %v2935, 1
      %vm2982 = vcmp.eq.s32.totalorder %v2939, 1
      %vm2983 = vcmp.eq.s32.totalorder %v2943, 1
      %vm2984 = vcmp.eq.s32.totalorder %v2947, 1
      %vm2985 = vcmp.eq.s32.totalorder %v2951, 1
      %vm2986 = vcmp.eq.s32.totalorder %v2955, 1
      %vm2987 = vcmp.eq.s32.totalorder %v2959, 1
      %vm2988 = vcmp.eq.s32.totalorder %v2963, 1
      %vm2989 = vcmp.eq.s32.totalorder %v2967, 1
      %vm2990 = vcmp.eq.s32.totalorder %v2971, 1
      %vm2991 = vcmp.eq.s32.totalorder %v2975, 1
      %v2992 = vsel %vm2976, 0.0, %v2478
      %v2993 = vsel %vm2976, 0.0, %v2479
      %v2994 = vsel %vm2976, 0.0, %v2480
      %v2995 = vsel %vm2976, 0.0, %v2481
      %v2996 = vsel %vm2977, 0.0, %v2482
      %v2997 = vsel %vm2977, 0.0, %v2483
      %v2998 = vsel %vm2977, 0.0, %v2484
      %v2999 = vsel %vm2977, 0.0, %v2485
      %v3000 = vsel %vm2978, 0.0, %v2486
      %v3001 = vsel %vm2978, 0.0, %v2487
      %v3002 = vsel %vm2978, 0.0, %v2488
      %v3003 = vsel %vm2978, 0.0, %v2489
      %v3004 = vsel %vm2979, 0.0, %v2490
      %v3005 = vsel %vm2979, 0.0, %v2491
      %v3006 = vsel %vm2979, 0.0, %v2492
      %v3007 = vsel %vm2979, 0.0, %v2493
      %v3008 = vsel %vm2980, 0.0, %v2494
      %v3009 = vsel %vm2980, 0.0, %v2495
      %v3010 = vsel %vm2980, 0.0, %v2496
      %v3011 = vsel %vm2980, 0.0, %v2497
      %v3012 = vsel %vm2981, 0.0, %v2498
      %v3013 = vsel %vm2981, 0.0, %v2499
      %v3014 = vsel %vm2981, 0.0, %v2500
      %v3015 = vsel %vm2981, 0.0, %v2501
      %v3016 = vsel %vm2982, 0.0, %v2502
      %v3017 = vsel %vm2982, 0.0, %v2503
      %v3018 = vsel %vm2982, 0.0, %v2504
      %v3019 = vsel %vm2982, 0.0, %v2505
      %v3020 = vsel %vm2983, 0.0, %v2506
      %v3021 = vsel %vm2983, 0.0, %v2507
      %v3022 = vsel %vm2983, 0.0, %v2508
      %v3023 = vsel %vm2983, 0.0, %v2509
      %v3024 = vsel %vm2984, 0.0, %v2510
      %v3025 = vsel %vm2984, 0.0, %v2511
      %v3026 = vsel %vm2984, 0.0, %v2512
      %v3027 = vsel %vm2984, 0.0, %v2513
      %v3028 = vsel %vm2985, 0.0, %v2514
      %v3029 = vsel %vm2985, 0.0, %v2515
      %v3030 = vsel %vm2985, 0.0, %v2516
      %v3031 = vsel %vm2985, 0.0, %v2517
      %v3032 = vsel %vm2986, 0.0, %v2518
      %v3033 = vsel %vm2986, 0.0, %v2519
      %v3034 = vsel %vm2986, 0.0, %v2520
      %v3035 = vsel %vm2986, 0.0, %v2521
      %v3036 = vsel %vm2987, 0.0, %v2522
      %v3037 = vsel %vm2987, 0.0, %v2523
      %v3038 = vsel %vm2987, 0.0, %v2524
      %v3039 = vsel %vm2987, 0.0, %v2525
      %v3040 = vsel %vm2988, 0.0, %v2526
      %v3041 = vsel %vm2988, 0.0, %v2527
      %v3042 = vsel %vm2988, 0.0, %v2528
      %v3043 = vsel %vm2988, 0.0, %v2529
      %v3044 = vsel %vm2989, 0.0, %v2530
      %v3045 = vsel %vm2989, 0.0, %v2531
      %v3046 = vsel %vm2989, 0.0, %v2532
      %v3047 = vsel %vm2989, 0.0, %v2533
      %v3048 = vsel %vm2990, 0.0, %v2534
      %v3049 = vsel %vm2990, 0.0, %v2535
      %v3050 = vsel %vm2990, 0.0, %v2536
      %v3051 = vsel %vm2990, 0.0, %v2537
      %v3052 = vsel %vm2991, 0.0, %v2538
      %v3053 = vsel %vm2991, 0.0, %v2539
      %v3054 = vsel %vm2991, 0.0, %v2540
      %v3055 = vsel %vm2991, 0.0, %v2541
      %vm3056 = vcmask 130048
      %v3057 = vsel %vm3056, %v2992, -inf
      %3058 = vmax.xlane.f32.xlu0 %v3057
      %v3059 = vpop.xlane.xlu0 %3058
      %v3060 = vsel %vm3056, %v2993, -inf
      %3061 = vmax.xlane.f32.xlu0 %v3060
      %v3062 = vpop.xlane.xlu0 %3061
      %v3063 = vsel %vm3056, %v2994, -inf
      %3064 = vmax.xlane.f32.xlu0 %v3063
      %v3065 = vpop.xlane.xlu0 %3064
      %v3066 = vsel %vm3056, %v2995, -inf
      %3067 = vmax.xlane.f32.xlu0 %v3066
      %v3068 = vpop.xlane.xlu0 %3067
      %v3069 = vsel %vm3056, %v2996, -inf
      %3070 = vmax.xlane.f32.xlu0 %v3069
      %v3071 = vpop.xlane.xlu0 %3070
      %v3072 = vsel %vm3056, %v2997, -inf
      %3073 = vmax.xlane.f32.xlu0 %v3072
      %v3074 = vpop.xlane.xlu0 %3073
      %v3075 = vsel %vm3056, %v2998, -inf
      %3076 = vmax.xlane.f32.xlu0 %v3075
      %v3077 = vpop.xlane.xlu0 %3076
      %v3078 = vsel %vm3056, %v2999, -inf
      %3079 = vmax.xlane.f32.xlu0 %v3078
      %v3080 = vpop.xlane.xlu0 %3079
      %v3081 = vsel %vm3056, %v3000, -inf
      %3082 = vmax.xlane.f32.xlu0 %v3081
      %v3083 = vpop.xlane.xlu0 %3082
      %v3084 = vsel %vm3056, %v3001, -inf
      %3085 = vmax.xlane.f32.xlu0 %v3084
      %v3086 = vpop.xlane.xlu0 %3085
      %v3087 = vsel %vm3056, %v3002, -inf
      %3088 = vmax.xlane.f32.xlu0 %v3087
      %v3089 = vpop.xlane.xlu0 %3088
      %v3090 = vsel %vm3056, %v3003, -inf
      %3091 = vmax.xlane.f32.xlu0 %v3090
      %v3092 = vpop.xlane.xlu0 %3091
      %v3093 = vsel %vm3056, %v3004, -inf
      %3094 = vmax.xlane.f32.xlu0 %v3093
      %v3095 = vpop.xlane.xlu0 %3094
      %v3096 = vsel %vm3056, %v3005, -inf
      %3097 = vmax.xlane.f32.xlu0 %v3096
      %v3098 = vpop.xlane.xlu0 %3097
      %v3099 = vsel %vm3056, %v3006, -inf
      %3100 = vmax.xlane.f32.xlu0 %v3099
      %v3101 = vpop.xlane.xlu0 %3100
      %v3102 = vsel %vm3056, %v3007, -inf
      %3103 = vmax.xlane.f32.xlu0 %v3102
      %v3104 = vpop.xlane.xlu0 %3103
      %v3105 = vsel %vm3056, %v3008, -inf
      %3106 = vmax.xlane.f32.xlu0 %v3105
      %v3107 = vpop.xlane.xlu0 %3106
      %v3108 = vsel %vm3056, %v3009, -inf
      %3109 = vmax.xlane.f32.xlu0 %v3108
      %v3110 = vpop.xlane.xlu0 %3109
      %v3111 = vsel %vm3056, %v3010, -inf
      %3112 = vmax.xlane.f32.xlu0 %v3111
      %v3113 = vpop.xlane.xlu0 %3112
      %v3114 = vsel %vm3056, %v3011, -inf
      %3115 = vmax.xlane.f32.xlu0 %v3114
      %v3116 = vpop.xlane.xlu0 %3115
      %v3117 = vsel %vm3056, %v3012, -inf
      %3118 = vmax.xlane.f32.xlu0 %v3117
      %v3119 = vpop.xlane.xlu0 %3118
      %v3120 = vsel %vm3056, %v3013, -inf
      %3121 = vmax.xlane.f32.xlu0 %v3120
      %v3122 = vpop.xlane.xlu0 %3121
      %v3123 = vsel %vm3056, %v3014, -inf
      %3124 = vmax.xlane.f32.xlu0 %v3123
      %v3125 = vpop.xlane.xlu0 %3124
      %v3126 = vsel %vm3056, %v3015, -inf
      %3127 = vmax.xlane.f32.xlu0 %v3126
      %v3128 = vpop.xlane.xlu0 %3127
      %v3129 = vsel %vm3056, %v3016, -inf
      %3130 = vmax.xlane.f32.xlu0 %v3129
      %v3131 = vpop.xlane.xlu0 %3130
      %v3132 = vsel %vm3056, %v3017, -inf
      %3133 = vmax.xlane.f32.xlu0 %v3132
      %v3134 = vpop.xlane.xlu0 %3133
      %v3135 = vsel %vm3056, %v3018, -inf
      %3136 = vmax.xlane.f32.xlu0 %v3135
      %v3137 = vpop.xlane.xlu0 %3136
      %v3138 = vsel %vm3056, %v3019, -inf
      %3139 = vmax.xlane.f32.xlu0 %v3138
      %v3140 = vpop.xlane.xlu0 %3139
      %v3141 = vsel %vm3056, %v3020, -inf
      %3142 = vmax.xlane.f32.xlu0 %v3141
      %v3143 = vpop.xlane.xlu0 %3142
      %v3144 = vsel %vm3056, %v3021, -inf
      %3145 = vmax.xlane.f32.xlu0 %v3144
      %v3146 = vpop.xlane.xlu0 %3145
      %v3147 = vsel %vm3056, %v3022, -inf
      %3148 = vmax.xlane.f32.xlu0 %v3147
      %v3149 = vpop.xlane.xlu0 %3148
      %v3150 = vsel %vm3056, %v3023, -inf
      %3151 = vmax.xlane.f32.xlu0 %v3150
      %v3152 = vpop.xlane.xlu0 %3151
      %v3153 = vsel %vm3056, %v3024, -inf
      %3154 = vmax.xlane.f32.xlu0 %v3153
      %v3155 = vpop.xlane.xlu0 %3154
      %v3156 = vsel %vm3056, %v3025, -inf
      %3157 = vmax.xlane.f32.xlu0 %v3156
      %v3158 = vpop.xlane.xlu0 %3157
      %v3159 = vsel %vm3056, %v3026, -inf
      %3160 = vmax.xlane.f32.xlu0 %v3159
      %v3161 = vpop.xlane.xlu0 %3160
      %v3162 = vsel %vm3056, %v3027, -inf
      %3163 = vmax.xlane.f32.xlu0 %v3162
      %v3164 = vpop.xlane.xlu0 %3163
      %v3165 = vsel %vm3056, %v3028, -inf
      %3166 = vmax.xlane.f32.xlu0 %v3165
      %v3167 = vpop.xlane.xlu0 %3166
      %v3168 = vsel %vm3056, %v3029, -inf
      %3169 = vmax.xlane.f32.xlu0 %v3168
      %v3170 = vpop.xlane.xlu0 %3169
      %v3171 = vsel %vm3056, %v3030, -inf
      %3172 = vmax.xlane.f32.xlu0 %v3171
      %v3173 = vpop.xlane.xlu0 %3172
      %v3174 = vsel %vm3056, %v3031, -inf
      %3175 = vmax.xlane.f32.xlu0 %v3174
      %v3176 = vpop.xlane.xlu0 %3175
      %v3177 = vsel %vm3056, %v3032, -inf
      %3178 = vmax.xlane.f32.xlu0 %v3177
      %v3179 = vpop.xlane.xlu0 %3178
      %v3180 = vsel %vm3056, %v3033, -inf
      %3181 = vmax.xlane.f32.xlu0 %v3180
      %v3182 = vpop.xlane.xlu0 %3181
      %v3183 = vsel %vm3056, %v3034, -inf
      %3184 = vmax.xlane.f32.xlu0 %v3183
      %v3185 = vpop.xlane.xlu0 %3184
      %v3186 = vsel %vm3056, %v3035, -inf
      %3187 = vmax.xlane.f32.xlu0 %v3186
      %v3188 = vpop.xlane.xlu0 %3187
      %v3189 = vsel %vm3056, %v3036, -inf
      %3190 = vmax.xlane.f32.xlu0 %v3189
      %v3191 = vpop.xlane.xlu0 %3190
      %v3192 = vsel %vm3056, %v3037, -inf
      %3193 = vmax.xlane.f32.xlu0 %v3192
      %v3194 = vpop.xlane.xlu0 %3193
      %v3195 = vsel %vm3056, %v3038, -inf
      %3196 = vmax.xlane.f32.xlu0 %v3195
      %v3197 = vpop.xlane.xlu0 %3196
      %v3198 = vsel %vm3056, %v3039, -inf
      %3199 = vmax.xlane.f32.xlu0 %v3198
      %v3200 = vpop.xlane.xlu0 %3199
      %v3201 = vsel %vm3056, %v3040, -inf
      %3202 = vmax.xlane.f32.xlu0 %v3201
      %v3203 = vpop.xlane.xlu0 %3202
      %v3204 = vsel %vm3056, %v3041, -inf
      %3205 = vmax.xlane.f32.xlu0 %v3204
      %v3206 = vpop.xlane.xlu0 %3205
      %v3207 = vsel %vm3056, %v3042, -inf
      %3208 = vmax.xlane.f32.xlu0 %v3207
      %v3209 = vpop.xlane.xlu0 %3208
      %v3210 = vsel %vm3056, %v3043, -inf
      %3211 = vmax.xlane.f32.xlu0 %v3210
      %v3212 = vpop.xlane.xlu0 %3211
      %v3213 = vsel %vm3056, %v3044, -inf
      %3214 = vmax.xlane.f32.xlu0 %v3213
      %v3215 = vpop.xlane.xlu0 %3214
      %v3216 = vsel %vm3056, %v3045, -inf
      %3217 = vmax.xlane.f32.xlu0 %v3216
      %v3218 = vpop.xlane.xlu0 %3217
      %v3219 = vsel %vm3056, %v3046, -inf
      %3220 = vmax.xlane.f32.xlu0 %v3219
      %v3221 = vpop.xlane.xlu0 %3220
      %v3222 = vsel %vm3056, %v3047, -inf
      %3223 = vmax.xlane.f32.xlu0 %v3222
      %v3224 = vpop.xlane.xlu0 %3223
      %v3225 = vsel %vm3056, %v3048, -inf
      %3226 = vmax.xlane.f32.xlu0 %v3225
      %v3227 = vpop.xlane.xlu0 %3226
      %v3228 = vsel %vm3056, %v3049, -inf
      %3229 = vmax.xlane.f32.xlu0 %v3228
      %v3230 = vpop.xlane.xlu0 %3229
      %v3231 = vsel %vm3056, %v3050, -inf
      %3232 = vmax.xlane.f32.xlu0 %v3231
      %v3233 = vpop.xlane.xlu0 %3232
      %v3234 = vsel %vm3056, %v3051, -inf
      %3235 = vmax.xlane.f32.xlu0 %v3234
      %v3236 = vpop.xlane.xlu0 %3235
      %v3237 = vsel %vm3056, %v3052, -inf
      %3238 = vmax.xlane.f32.xlu0 %v3237
      %v3239 = vpop.xlane.xlu0 %3238
      %v3240 = vsel %vm3056, %v3053, -inf
      %3241 = vmax.xlane.f32.xlu0 %v3240
      %v3242 = vpop.xlane.xlu0 %3241
      %v3243 = vsel %vm3056, %v3054, -inf
      %3244 = vmax.xlane.f32.xlu0 %v3243
      %v3245 = vpop.xlane.xlu0 %3244
      %v3246 = vsel %vm3056, %v3055, -inf
      %3247 = vmax.xlane.f32.xlu0 %v3246
      %v3248 = vpop.xlane.xlu0 %3247
      %p3249 = scmp.eq.s32.totalorder %s25, 0
      // Predicated region
      $region49: #{tpu_custom_call.1} parent=47 // pred_check
        %p3250 = pneg %p3249
      $region50: #{tpu_custom_call.1} parent=47 // pred_check_branch
        %3252 = sbr.rel (%p3250) target = $region52
      $region51: #{tpu_custom_call.1} parent=47 // pred_region
        %3253 = vst.msk [vmem:[#allocation2] sm:$0xff] %vm1105, 0.0
        %3254 = vst.msk [vmem:[#allocation2 + $0x8] sm:$0xff] %vm1105, 0.0
      $region52: #{tpu_custom_call.1} parent=47 // pred_fallthru
        _
      %v3255 = vld [vmem:[#allocation2] sm:$0xff]
      %v3256 = vld [vmem:[#allocation2 + $0x8] sm:$0xff]
      %v3321 = vlaneseq
      %v3322 = vand.u32 %v3321, 127
      %v3323 = vlaneseq
      %v3324 = vshrl.u32 %v3323, 7
      %v3325 = vsub.s32 %v3322, %v3324
      %v3326 = vrot.slane %v3059, %v3325
      %v3327 = vadd.s32 %v3322, 4294967288
      %v3328 = vlaneseq
      %v3329 = vshrl.u32 %v3328, 7
      %v3330 = vsub.s32 %v3327, %v3329
      %v3331 = vrot.slane %v3062, %v3330
      %vm3332 = vcmask 130112
      %v3333 = vsel %vm3332, %v3331, %v3326
      %v3334 = vadd.s32 %v3322, 4294967280
      %v3335 = vlaneseq
      %v3336 = vshrl.u32 %v3335, 7
      %v3337 = vsub.s32 %v3334, %v3336
      %v3338 = vrot.slane %v3065, %v3337
      %vm3339 = vcmask 195712
      %v3340 = vsel %vm3339, %v3338, %v3333
      %v3341 = vadd.s32 %v3322, 4294967272
      %v3342 = vlaneseq
      %v3343 = vshrl.u32 %v3342, 7
      %v3344 = vsub.s32 %v3341, %v3343
      %v3345 = vrot.slane %v3068, %v3344
      %vm3346 = vcmask 261312
      %v3347 = vsel %vm3346, %v3345, %v3340
      %v3348 = vlaneseq
      %v3349 = vshrl.u32 %v3348, 7
      %v3350 = vsub.s32 %v3322, %v3349
      %v3351 = vrot.slane %v3071, %v3350
      %v3352 = vlaneseq
      %v3353 = vshrl.u32 %v3352, 7
      %v3354 = vsub.s32 %v3327, %v3353
      %v3355 = vrot.slane %v3074, %v3354
      %v3356 = vsel %vm3332, %v3355, %v3351
      %v3357 = vlaneseq
      %v3358 = vshrl.u32 %v3357, 7
      %v3359 = vsub.s32 %v3334, %v3358
      %v3360 = vrot.slane %v3077, %v3359
      %v3361 = vsel %vm3339, %v3360, %v3356
      %v3362 = vlaneseq
      %v3363 = vshrl.u32 %v3362, 7
      %v3364 = vsub.s32 %v3341, %v3363
      %v3365 = vrot.slane %v3080, %v3364
      %v3366 = vsel %vm3346, %v3365, %v3361
      %v3367 = vlaneseq
      %v3368 = vshrl.u32 %v3367, 7
      %v3369 = vsub.s32 %v3322, %v3368
      %v3370 = vrot.slane %v3083, %v3369
      %v3371 = vlaneseq
      %v3372 = vshrl.u32 %v3371, 7
      %v3373 = vsub.s32 %v3327, %v3372
      %v3374 = vrot.slane %v3086, %v3373
      %v3375 = vsel %vm3332, %v3374, %v3370
      %v3376 = vlaneseq
      %v3377 = vshrl.u32 %v3376, 7
      %v3378 = vsub.s32 %v3334, %v3377
      %v3379 = vrot.slane %v3089, %v3378
      %v3380 = vsel %vm3339, %v3379, %v3375
      %v3381 = vlaneseq
      %v3382 = vshrl.u32 %v3381, 7
      %v3383 = vsub.s32 %v3341, %v3382
      %v3384 = vrot.slane %v3092, %v3383
      %v3385 = vsel %vm3346, %v3384, %v3380
      %v3386 = vlaneseq
      %v3387 = vshrl.u32 %v3386, 7
      %v3388 = vsub.s32 %v3322, %v3387
      %v3389 = vrot.slane %v3095, %v3388
      %v3390 = vlaneseq
      %v3391 = vshrl.u32 %v3390, 7
      %v3392 = vsub.s32 %v3327, %v3391
      %v3393 = vrot.slane %v3098, %v3392
      %v3394 = vsel %vm3332, %v3393, %v3389
      %v3395 = vlaneseq
      %v3396 = vshrl.u32 %v3395, 7
      %v3397 = vsub.s32 %v3334, %v3396
      %v3398 = vrot.slane %v3101, %v3397
      %v3399 = vsel %vm3339, %v3398, %v3394
      %v3400 = vlaneseq
      %v3401 = vshrl.u32 %v3400, 7
      %v3402 = vsub.s32 %v3341, %v3401
      %v3403 = vrot.slane %v3104, %v3402
      %v3404 = vsel %vm3346, %v3403, %v3399
      %v3405 = vlaneseq
      %v3406 = vshrl.u32 %v3405, 7
      %v3407 = vsub.s32 %v3322, %v3406
      %v3408 = vrot.slane %v3107, %v3407
      %v3409 = vlaneseq
      %v3410 = vshrl.u32 %v3409, 7
      %v3411 = vsub.s32 %v3327, %v3410
      %v3412 = vrot.slane %v3110, %v3411
      %v3413 = vsel %vm3332, %v3412, %v3408
      %v3414 = vlaneseq
      %v3415 = vshrl.u32 %v3414, 7
      %v3416 = vsub.s32 %v3334, %v3415
      %v3417 = vrot.slane %v3113, %v3416
      %v3418 = vsel %vm3339, %v3417, %v3413
      %v3419 = vlaneseq
      %v3420 = vshrl.u32 %v3419, 7
      %v3421 = vsub.s32 %v3341, %v3420
      %v3422 = vrot.slane %v3116, %v3421
      %v3423 = vsel %vm3346, %v3422, %v3418
      %v3424 = vlaneseq
      %v3425 = vshrl.u32 %v3424, 7
      %v3426 = vsub.s32 %v3322, %v3425
      %v3427 = vrot.slane %v3119, %v3426
      %v3428 = vlaneseq
      %v3429 = vshrl.u32 %v3428, 7
      %v3430 = vsub.s32 %v3327, %v3429
      %v3431 = vrot.slane %v3122, %v3430
      %v3432 = vsel %vm3332, %v3431, %v3427
      %v3433 = vlaneseq
      %v3434 = vshrl.u32 %v3433, 7
      %v3435 = vsub.s32 %v3334, %v3434
      %v3436 = vrot.slane %v3125, %v3435
      %v3437 = vsel %vm3339, %v3436, %v3432
      %v3438 = vlaneseq
      %v3439 = vshrl.u32 %v3438, 7
      %v3440 = vsub.s32 %v3341, %v3439
      %v3441 = vrot.slane %v3128, %v3440
      %v3442 = vsel %vm3346, %v3441, %v3437
      %v3443 = vlaneseq
      %v3444 = vshrl.u32 %v3443, 7
      %v3445 = vsub.s32 %v3322, %v3444
      %v3446 = vrot.slane %v3131, %v3445
      %v3447 = vlaneseq
      %v3448 = vshrl.u32 %v3447, 7
      %v3449 = vsub.s32 %v3327, %v3448
      %v3450 = vrot.slane %v3134, %v3449
      %v3451 = vsel %vm3332, %v3450, %v3446
      %v3452 = vlaneseq
      %v3453 = vshrl.u32 %v3452, 7
      %v3454 = vsub.s32 %v3334, %v3453
      %v3455 = vrot.slane %v3137, %v3454
      %v3456 = vsel %vm3339, %v3455, %v3451
      %v3457 = vlaneseq
      %v3458 = vshrl.u32 %v3457, 7
      %v3459 = vsub.s32 %v3341, %v3458
      %v3460 = vrot.slane %v3140, %v3459
      %v3461 = vsel %vm3346, %v3460, %v3456
      %v3462 = vlaneseq
      %v3463 = vshrl.u32 %v3462, 7
      %v3464 = vsub.s32 %v3322, %v3463
      %v3465 = vrot.slane %v3143, %v3464
      %v3466 = vlaneseq
      %v3467 = vshrl.u32 %v3466, 7
      %v3468 = vsub.s32 %v3327, %v3467
      %v3469 = vrot.slane %v3146, %v3468
      %v3470 = vsel %vm3332, %v3469, %v3465
      %v3471 = vlaneseq
      %v3472 = vshrl.u32 %v3471, 7
      %v3473 = vsub.s32 %v3334, %v3472
      %v3474 = vrot.slane %v3149, %v3473
      %v3475 = vsel %vm3339, %v3474, %v3470
      %v3476 = vlaneseq
      %v3477 = vshrl.u32 %v3476, 7
      %v3478 = vsub.s32 %v3341, %v3477
      %v3479 = vrot.slane %v3152, %v3478
      %v3480 = vsel %vm3346, %v3479, %v3475
      %v3481 = vlaneseq
      %v3482 = vshrl.u32 %v3481, 7
      %v3483 = vsub.s32 %v3322, %v3482
      %v3484 = vrot.slane %v3155, %v3483
      %v3485 = vlaneseq
      %v3486 = vshrl.u32 %v3485, 7
      %v3487 = vsub.s32 %v3327, %v3486
      %v3488 = vrot.slane %v3158, %v3487
      %v3489 = vsel %vm3332, %v3488, %v3484
      %v3490 = vlaneseq
      %v3491 = vshrl.u32 %v3490, 7
      %v3492 = vsub.s32 %v3334, %v3491
      %v3493 = vrot.slane %v3161, %v3492
      %v3494 = vsel %vm3339, %v3493, %v3489
      %v3495 = vlaneseq
      %v3496 = vshrl.u32 %v3495, 7
      %v3497 = vsub.s32 %v3341, %v3496
      %v3498 = vrot.slane %v3164, %v3497
      %v3499 = vsel %vm3346, %v3498, %v3494
      %v3500 = vlaneseq
      %v3501 = vshrl.u32 %v3500, 7
      %v3502 = vsub.s32 %v3322, %v3501
      %v3503 = vrot.slane %v3167, %v3502
      %v3504 = vlaneseq
      %v3505 = vshrl.u32 %v3504, 7
      %v3506 = vsub.s32 %v3327, %v3505
      %v3507 = vrot.slane %v3170, %v3506
      %v3508 = vsel %vm3332, %v3507, %v3503
      %v3509 = vlaneseq
      %v3510 = vshrl.u32 %v3509, 7
      %v3511 = vsub.s32 %v3334, %v3510
      %v3512 = vrot.slane %v3173, %v3511
      %v3513 = vsel %vm3339, %v3512, %v3508
      %v3514 = vlaneseq
      %v3515 = vshrl.u32 %v3514, 7
      %v3516 = vsub.s32 %v3341, %v3515
      %v3517 = vrot.slane %v3176, %v3516
      %v3518 = vsel %vm3346, %v3517, %v3513
      %v3519 = vlaneseq
      %v3520 = vshrl.u32 %v3519, 7
      %v3521 = vsub.s32 %v3322, %v3520
      %v3522 = vrot.slane %v3179, %v3521
      %v3523 = vlaneseq
      %v3524 = vshrl.u32 %v3523, 7
      %v3525 = vsub.s32 %v3327, %v3524
      %v3526 = vrot.slane %v3182, %v3525
      %v3527 = vsel %vm3332, %v3526, %v3522
      %v3528 = vlaneseq
      %v3529 = vshrl.u32 %v3528, 7
      %v3530 = vsub.s32 %v3334, %v3529
      %v3531 = vrot.slane %v3185, %v3530
      %v3532 = vsel %vm3339, %v3531, %v3527
      %v3533 = vlaneseq
      %v3534 = vshrl.u32 %v3533, 7
      %v3535 = vsub.s32 %v3341, %v3534
      %v3536 = vrot.slane %v3188, %v3535
      %v3537 = vsel %vm3346, %v3536, %v3532
      %v3538 = vlaneseq
      %v3539 = vshrl.u32 %v3538, 7
      %v3540 = vsub.s32 %v3322, %v3539
      %v3541 = vrot.slane %v3191, %v3540
      %v3542 = vlaneseq
      %v3543 = vshrl.u32 %v3542, 7
      %v3544 = vsub.s32 %v3327, %v3543
      %v3545 = vrot.slane %v3194, %v3544
      %v3546 = vsel %vm3332, %v3545, %v3541
      %v3547 = vlaneseq
      %v3548 = vshrl.u32 %v3547, 7
      %v3549 = vsub.s32 %v3334, %v3548
      %v3550 = vrot.slane %v3197, %v3549
      %v3551 = vsel %vm3339, %v3550, %v3546
      %v3552 = vlaneseq
      %v3553 = vshrl.u32 %v3552, 7
      %v3554 = vsub.s32 %v3341, %v3553
      %v3555 = vrot.slane %v3200, %v3554
      %v3556 = vsel %vm3346, %v3555, %v3551
      %v3557 = vlaneseq
      %v3558 = vshrl.u32 %v3557, 7
      %v3559 = vsub.s32 %v3322, %v3558
      %v3560 = vrot.slane %v3203, %v3559
      %v3561 = vlaneseq
      %v3562 = vshrl.u32 %v3561, 7
      %v3563 = vsub.s32 %v3327, %v3562
      %v3564 = vrot.slane %v3206, %v3563
      %v3565 = vsel %vm3332, %v3564, %v3560
      %v3566 = vlaneseq
      %v3567 = vshrl.u32 %v3566, 7
      %v3568 = vsub.s32 %v3334, %v3567
      %v3569 = vrot.slane %v3209, %v3568
      %v3570 = vsel %vm3339, %v3569, %v3565
      %v3571 = vlaneseq
      %v3572 = vshrl.u32 %v3571, 7
      %v3573 = vsub.s32 %v3341, %v3572
      %v3574 = vrot.slane %v3212, %v3573
      %v3575 = vsel %vm3346, %v3574, %v3570
      %v3576 = vlaneseq
      %v3577 = vshrl.u32 %v3576, 7
      %v3578 = vsub.s32 %v3322, %v3577
      %v3579 = vrot.slane %v3215, %v3578
      %v3580 = vlaneseq
      %v3581 = vshrl.u32 %v3580, 7
      %v3582 = vsub.s32 %v3327, %v3581
      %v3583 = vrot.slane %v3218, %v3582
      %v3584 = vsel %vm3332, %v3583, %v3579
      %v3585 = vlaneseq
      %v3586 = vshrl.u32 %v3585, 7
      %v3587 = vsub.s32 %v3334, %v3586
      %v3588 = vrot.slane %v3221, %v3587
      %v3589 = vsel %vm3339, %v3588, %v3584
      %v3590 = vlaneseq
      %v3591 = vshrl.u32 %v3590, 7
      %v3592 = vsub.s32 %v3341, %v3591
      %v3593 = vrot.slane %v3224, %v3592
      %v3594 = vsel %vm3346, %v3593, %v3589
      %v3595 = vlaneseq
      %v3596 = vshrl.u32 %v3595, 7
      %v3597 = vsub.s32 %v3322, %v3596
      %v3598 = vrot.slane %v3227, %v3597
      %v3599 = vlaneseq
      %v3600 = vshrl.u32 %v3599, 7
      %v3601 = vsub.s32 %v3327, %v3600
      %v3602 = vrot.slane %v3230, %v3601
      %v3603 = vsel %vm3332, %v3602, %v3598
      %v3604 = vlaneseq
      %v3605 = vshrl.u32 %v3604, 7
      %v3606 = vsub.s32 %v3334, %v3605
      %v3607 = vrot.slane %v3233, %v3606
      %v3608 = vsel %vm3339, %v3607, %v3603
      %v3609 = vlaneseq
      %v3610 = vshrl.u32 %v3609, 7
      %v3611 = vsub.s32 %v3341, %v3610
      %v3612 = vrot.slane %v3236, %v3611
      %v3613 = vsel %vm3346, %v3612, %v3608
      %v3614 = vlaneseq
      %v3615 = vshrl.u32 %v3614, 7
      %v3616 = vsub.s32 %v3322, %v3615
      %v3617 = vrot.slane %v3239, %v3616
      %v3618 = vlaneseq
      %v3619 = vshrl.u32 %v3618, 7
      %v3620 = vsub.s32 %v3327, %v3619
      %v3621 = vrot.slane %v3242, %v3620
      %v3622 = vsel %vm3332, %v3621, %v3617
      %v3623 = vlaneseq
      %v3624 = vshrl.u32 %v3623, 7
      %v3625 = vsub.s32 %v3334, %v3624
      %v3626 = vrot.slane %v3245, %v3625
      %v3627 = vsel %vm3339, %v3626, %v3622
      %v3628 = vlaneseq
      %v3629 = vshrl.u32 %v3628, 7
      %v3630 = vsub.s32 %v3341, %v3629
      %v3631 = vrot.slane %v3248, %v3630
      %v3632 = vsel %vm3346, %v3631, %v3627
      %vm3633 = vcmask 1041409
      %v3634 = vsel %vm3633, %v3366, %v3347
      %vm3635 = vcmask 1042434
      %v3636 = vsel %vm3635, %v3385, %v3634
      %vm3637 = vcmask 1043459
      %v3638 = vsel %vm3637, %v3404, %v3636
      %vm3639 = vcmask 1044484
      %v3640 = vsel %vm3639, %v3423, %v3638
      %vm3641 = vcmask 1045509
      %v3642 = vsel %vm3641, %v3442, %v3640
      %vm3643 = vcmask 1046534
      %v3644 = vsel %vm3643, %v3461, %v3642
      %vm3645 = vcmask 1047559
      %v3646 = vsel %vm3645, %v3480, %v3644
      %v3647 = vsel %vm3633, %v3518, %v3499
      %v3648 = vsel %vm3635, %v3537, %v3647
      %v3649 = vsel %vm3637, %v3556, %v3648
      %v3650 = vsel %vm3639, %v3575, %v3649
      %v3651 = vsel %vm3641, %v3594, %v3650
      %v3652 = vsel %vm3643, %v3613, %v3651
      %v3653 = vsel %vm3645, %v3632, %v3652
      %v3656 = vmax.f32 %v3255, %v3646
      %v3657 = vmax.f32 %v3256, %v3653
      %3658 = vst.msk [vmem:[#allocation2] sm:$0xff] %vm1105, %v3656
      %3659 = vst.msk [vmem:[#allocation2 + $0x8] sm:$0xff] %vm1105, %v3657
      // Predicated region
      $region53: #{tpu_custom_call.1} parent=47 // pred_check
        %p3660 = pneg %p3249
      $region54: #{tpu_custom_call.1} parent=47 // pred_check_branch
        %3662 = sbr.rel (%p3660) target = $region56
      $region55: #{tpu_custom_call.1} parent=47 // pred_region
        %3663 = vst.msk [vmem:[%s348] sm:$0x7] %vm2708, %v349
        %v3664 = vld [vmem:[#allocation2] sm:$0xff]
        %v3665 = vld [vmem:[#allocation2 + $0x8] sm:$0xff]
        %3666 = vxpose.xlu0.b32.start [1/16] %v3664, 128
        %3667 = vxpose.xlu0.b32.cont [2/16] %v3665, 128
        %3668 = vxpose.xlu0.b32.cont [3/16] 0.0, 128
        %3669 = vxpose.xlu0.b32.cont [4/16] 0.0, 128
        %3670 = vxpose.xlu0.b32.cont [5/16] 0.0, 128
        %3671 = vxpose.xlu0.b32.cont [6/16] 0.0, 128
        %3672 = vxpose.xlu0.b32.cont [7/16] 0.0, 128
        %3673 = vxpose.xlu0.b32.cont [8/16] 0.0, 128
        %3674 = vxpose.xlu0.b32.cont [9/16] 0.0, 128
        %3675 = vxpose.xlu0.b32.cont [10/16] 0.0, 128
        %3676 = vxpose.xlu0.b32.cont [11/16] 0.0, 128
        %3677 = vxpose.xlu0.b32.cont [12/16] 0.0, 128
        %3678 = vxpose.xlu0.b32.cont [13/16] 0.0, 128
        %3679 = vxpose.xlu0.b32.cont [14/16] 0.0, 128
        %3680 = vxpose.xlu0.b32.cont [15/16] 0.0, 128
        %3681 = vxpose.xlu0.b32.end [16/16] 0.0, 128
        %v3682 = vpop.trf.xlu0
        %v3683 = vpop.trf.xlu0
        %v3684 = vpop.trf.xlu0
        %v3685 = vpop.trf.xlu0
        %v3686 = vpop.trf.xlu0
        %v3687 = vpop.trf.xlu0
        %v3688 = vpop.trf.xlu0
        %v3689 = vpop.trf.xlu0
        %v3690 = vpop.trf.xlu0
        %v3691 = vpop.trf.xlu0
        %v3692 = vpop.trf.xlu0
        %v3693 = vpop.trf.xlu0
        %v3694 = vpop.trf.xlu0
        %v3695 = vpop.trf.xlu0
        %v3696 = vpop.trf.xlu0
        %v3697 = vpop.trf.xlu0
        %3698 = vst.msk [vmem:[%s348 + $0x3] sm:$0xff] %vm3056, %v3682
        %3699 = vst.msk [vmem:[%s348 + $0xb] sm:$0xff] %vm3056, %v3683
        %3700 = vst.msk [vmem:[%s348 + $0x13] sm:$0xff] %vm3056, %v3684
        %3701 = vst.msk [vmem:[%s348 + $0x1b] sm:$0xff] %vm3056, %v3685
      $region56: #{tpu_custom_call.1} parent=47 // pred_fallthru
        _
      %p3702 = scmp.lt.s32.totalorder %s23, 1
      %s3703 = scalar_select %p3702, %s23, 1
      %p3704 = scmp.lt.s32.totalorder %s24, 0
      %s3705 = scalar_select %p3704, %s24, 0
      %s3706 = smul.addr %s3703, 5
      %s3707 = sadd.s32 %s3705, %s3706
      %s3708 = smul.addr %s3707, 8
      %s3709 = scalar_lea.vmem %s7, %s3708
      // Predicated region
      $region57: #{tpu_custom_call.1} parent=47 // pred_check
        %p3710 = pneg %p220
      $region58: #{tpu_custom_call.1} parent=47 // pred_check_branch
        %3712 = sbr.rel (%p3710) target = $region60
      $region59: #{tpu_custom_call.1} parent=47 // pred_region
        _
      $region60: #{tpu_custom_call.1} parent=47 // pred_fallthru
        _
    $region48: #{tpu_custom_call.1} parent=5 // pred_fallthru
      _
    %p3713 = scmp.le.s32.totalorder 2, %s13
    // Predicated region
    $region61: #{tpu_custom_call.1} parent=5 // pred_check
      %p3714 = pneg %p3713
    $region62: #{tpu_custom_call.1} parent=5 // pred_check_branch
      %3716 = sbr.rel (%p3714) target = $region64
    $region63: #{tpu_custom_call.1} parent=5 // pred_region
      %s3717 = ssub.s32 %s13, 2
      // Predicated region
      $region65: #{tpu_custom_call.1} parent=63 // pred_check
        %p3718 = pneg %p226
      $region66: #{tpu_custom_call.1} parent=63 // pred_check_branch
        %3720 = sbr.rel (%p3718) target = $region68
      $region67: #{tpu_custom_call.1} parent=63 // pred_region
        %p3721 = scmp.lt.s32.totalorder %s26, 1
        %s3722 = scalar_select %p3721, %s26, 1
        %p3723 = scmp.lt.s32.totalorder %s27, 0
        %s3724 = scalar_select %p3723, %s27, 0
        %s3725 = smul.addr %s3722, 5
        %s3726 = sadd.s32 %s3724, %s3725
        %s3727 = smul.addr %s3726, 8
        %s3728 = scalar_lea.vmem %s7, %s3727
      $region68: #{tpu_custom_call.1} parent=63 // pred_fallthru
        _
    $region64: #{tpu_custom_call.1} parent=5 // pred_fallthru
      _
  $region6: #{tpu_custom_call.1} parent=0 // loop_footer
    %s17 = sadd.s32 1, %s13
  $region7: #{tpu_custom_call.1} parent=0 // loop_footer_branch
    %12 = sbr.rel target = $region3
  $region8: #{tpu_custom_call.1} parent=0 // loop_exit
    _

</llo_original>
